<compile_context>
chip_gen: v5e
topology: v5e:2x2
jax: 0.10.0
libtpu: 0.0.40
codegen_flags: <defaults>
</compile_context>

<pallas_src>
import functools
import math

import jax
import jax.numpy as jnp
from jax.experimental import pallas as pl
from jax.experimental.pallas import tpu as pltpu


MXU_DTYPE = jnp.bfloat16   # bf16 MXU inputs (v5e/v6e/v7x), f32 accumulation


# --------------------------------------------------------------------------
# small helpers
# --------------------------------------------------------------------------
def _silu(x):
    return x * jax.nn.sigmoid(x)


def _mxdot(a, b):
    # All MXU matmuls: bf16 operands, f32 accumulation.
    return jnp.dot(a.astype(MXU_DTYPE), b.astype(MXU_DTYPE),
                   preferred_element_type=jnp.float32)


def _res_block(x, w1, b1, w2, b2):
    # TODO(synk): ResidualLayer source not given; DimeNet-style x + silu(lin2(silu(lin1(x)))).
    h = _silu(_mxdot(x, w1) + b1)
    h = _silu(_mxdot(h, w2) + b2)
    return x + h


# --------------------------------------------------------------------------
# fused kernel: edgenn (once) + all conv layers + readout, grid = (conv_layers,)
# --------------------------------------------------------------------------
def _sbf_fused_kernel(
    # constant graph inputs (fetched once; constant block index)
    x0_ref, ea_raw_ref, sbf_ref, rbf_ref, vec_ref,
    src_col_ref, dst_col_ref, dst_row_ref, atom_row_ref,
    head_ind_ref, head_exp_ref,
    # edgenn weights (used only at layer 0)
    eg_w1_ref, eg_b1_ref, eg_w2_ref, eg_b2_ref,
    # per-layer stacked weights (layer-indexed BlockSpecs)
    w_node_x_ref, w_node_r_ref, b_node_ref,
    w_edge_e_ref, w_edge_s_ref, b_edge_ref,
    dbs_w_ref, dbs_b_ref,
    res_w1_ref, res_b1_ref, res_w2_ref, res_b2_ref,
    # readout weights (used only at the last layer)
    ro_wr_ref, ro_wo_ref,
    # output
    o_ref,
    # VMEM scratch (persists across grid iterations)
    x_scr, ea_scr, oh_src_scr, oh_dst_en_scr, oh_dst_ne_scr,
    *, heads, ln_eps,
):
    f32 = jnp.float32
    l = pl.program_id(0)
    n_layers = pl.num_programs(0)
    N, F = x_scr.shape
    E = oh_src_scr.shape[0]
    C = F // heads
    inv_sqrt_c = 1.0 / math.sqrt(C)

    # ---- one-time prologue: edgenn, activation load, one-hot indicators ----
    @pl.when(l == 0)
    def _prologue():
        x_scr[...] = x0_ref[...].astype(f32)
        # edgenn: Linear -> SiLU -> Linear
        h = _silu(_mxdot(ea_raw_ref[...], eg_w1_ref[...]) + eg_b1_ref[...])
        ea_scr[...] = _mxdot(h, eg_w2_ref[...]) + eg_b2_ref[...]
        # one-hot gather/scatter indicators (bf16 — 0/1 exact), built once, reused per layer
        iota_en = jax.lax.broadcasted_iota(jnp.int32, (E, N), 1)
        oh_src_scr[...] = (src_col_ref[...] == iota_en).astype(oh_src_scr.dtype)
        oh_dst_en_scr[...] = (dst_col_ref[...] == iota_en).astype(oh_dst_en_scr.dtype)
        iota_ne = jax.lax.broadcasted_iota(jnp.int32, (N, E), 0)
        oh_dst_ne_scr[...] = (dst_row_ref[...] == iota_ne).astype(oh_dst_ne_scr.dtype)

    # ---- per-layer SBFTransformerConv + LayerNorm + bf_skip + dense_bf_skip + af_skip ----
    # TODO(synk): SBFTransformerConv source not given; reconstructed as a PyG
    #             TransformerConv with rbf-gated values and sbf-filtered messages.
    x = x_scr[...]                          # [N, F]  (= out_res_0 for this layer)
    oh_src = oh_src_scr[...]                # [E, N] bf16
    oh_dst_en = oh_dst_en_scr[...]          # [E, N] bf16
    oh_dst_ne = oh_dst_ne_scr[...]          # [N, E] bf16

    # fused node projection -> one lane-dense [N, 5F] slab: q | k | v | skip | rgate
    node_proj = (_mxdot(x, w_node_x_ref[...])
                 + _mxdot(rbf_ref[...], w_node_r_ref[...])
                 + b_node_ref[...])                                   # [N, 5F]
    q = node_proj[:, 0 * F:1 * F]
    k = node_proj[:, 1 * F:2 * F]
    vg = node_proj[:, 2 * F:3 * F] * node_proj[:, 4 * F:5 * F]        # v * rgate
    skip = node_proj[:, 3 * F:4 * F]

    # fused edge projection -> one lane-dense [E, 2F] slab: e | sbf_w
    edge_proj = (_mxdot(ea_scr[...], w_edge_e_ref[...])
                 + _mxdot(sbf_ref[...], w_edge_s_ref[...])
                 + b_edge_ref[...])                                   # [E, 2F]
    e = edge_proj[:, 0:F]
    sbf_w = edge_proj[:, F:2 * F]

    # one-hot gathers on the MXU (bf16 operands, f32 accumulation)
    q_i = _mxdot(oh_dst_en, q)              # [E, F]  q[dst]
    k_j = _mxdot(oh_src, k)                 # [E, F]  k[src]
    v_j = _mxdot(oh_src, vg)                # [E, F]  (v * rgate)[src]

    # per-head attention logits via static block-indicator matmul
    s_full = q_i * (k_j + e)                                          # [E, F]
    logits = _mxdot(s_full, head_ind_ref[...]) * inv_sqrt_c           # [E, H]

    # segment softmax over dst, vectorized across heads.
    # Global per-head max is a valid shared shift within every segment (softmax-invariant)
    # and removes the per-head [E,N] masking / XLU-reduce passes.
    mx = jnp.max(logits, axis=0, keepdims=True)                       # [1, H]
    w = jnp.exp(logits - mx)                                          # [E, H]
    den_n = _mxdot(oh_dst_ne, w)                                      # [N, H] segment sums
    den_e = _mxdot(oh_dst_en, den_n)                                  # [E, H] gathered at dst
    alpha = w / (den_e + 1e-16)                                       # [E, H]
    alpha_full = _mxdot(alpha, head_exp_ref[...])                     # [E, F]

    # messages + segment-sum aggregation on the MXU
    msg = alpha_full * (v_j + e) * sbf_w                              # [E, F]
    out = _mxdot(oh_dst_ne, msg) + skip                               # [N, F]

    # TODO(synk): custom LayerNorm(x, batch) mode unknown; per-node, affine=False used.
    mean = jnp.mean(out, axis=-1, keepdims=True)
    var = jnp.mean(jnp.square(out - mean), axis=-1, keepdims=True)
    out = (out - mean) * jax.lax.rsqrt(var + ln_eps)

    rw1 = res_w1_ref[...]                   # [3, F, F]  (0=bf_skip, 1=af_skip0, 2=af_skip1)
    rb1 = res_b1_ref[...]                   # [3, 1, F]
    rw2 = res_w2_ref[...]
    rb2 = res_b2_ref[...]
    out = _res_block(out, rw1[0], rb1[0], rw2[0], rb2[0])                       # bf_skip
    out = _silu(_mxdot(out, dbs_w_ref[...]) + dbs_b_ref[...]) + x               # + out_res_0
    out = _res_block(out, rw1[1], rb1[1], rw2[1], rb2[1])                       # af_skip[0]
    out = _res_block(out, rw1[2], rb1[2], rw2[2], rb2[2])                       # af_skip[1]

    x_scr[...] = out

    # ---- epilogue (last layer): Vectorial readout + per-atom segment sum ----
    # TODO(synk): Vectorial source not given; coeff = ((x * (rbf@Wr)) @ Wo); out = coeff*node_vec.
    @pl.when(l == n_layers - 1)
    def _readout():
        gate = _mxdot(rbf_ref[...], ro_wr_ref[...])                   # [N, F]
        coeff = jnp.sum(out * gate * ro_wo_ref[...],
                        axis=-1, keepdims=True)                       # [N, 1] lane reduce
        vec = coeff * vec_ref[...].astype(f32)                        # [N, 3]
        A = o_ref.shape[0]
        iota_an = jax.lax.broadcasted_iota(jnp.int32, (A, N), 0)
        oh_atoms = (atom_row_ref[...] == iota_an).astype(f32)         # [A, N]
        # tiny, final-output matmul: keep f32 for output precision
        o_ref[...] = jnp.dot(oh_atoms, vec,
                             preferred_element_type=jnp.float32).astype(o_ref.dtype)


# --------------------------------------------------------------------------
# wrapper: one pallas_call for the whole forward
# --------------------------------------------------------------------------
def sbf_transformer_forward(params, data, edge_index_0, atom_batch, heads, conv_layers):
    x0 = data["x"].astype(jnp.float32)
    N, F_ = x0.shape
    ea_raw = data["edge_attr"].astype(jnp.float32)
    E, emb = ea_raw.shape
    sbf = data["edge_sbf"].astype(jnp.float32)
    rbf = data["node_rbf"].astype(jnp.float32)
    vec = data["node_vector"].astype(jnp.float32)
    A = atom_batch.shape[0]

    src = data["edge_index"][0].astype(jnp.int32)
    dst = data["edge_index"][1].astype(jnp.int32)
    src_col = src.reshape(E, 1)
    dst_col = dst.reshape(E, 1)
    dst_row = dst.reshape(1, E)
    atom_row = edge_index_0.reshape(1, N).astype(jnp.int32)

    # compile-time head indicator / expansion matrices (hoisted out of the kernel)
    C = F_ // heads
    head_id = jnp.arange(F_, dtype=jnp.int32) // C
    head_ind = (head_id[:, None] == jnp.arange(heads, dtype=jnp.int32)[None, :]
                ).astype(jnp.float32)                                 # [F, H]
    head_exp = head_ind.T                                             # [H, F]

    p = params
    args = (
        x0, ea_raw, sbf, rbf, vec,
        src_col, dst_col, dst_row, atom_row,
        head_ind, head_exp,
        p["edgenn"][0], p["edgenn"][1], p["edgenn"][2], p["edgenn"][3],
        p["w_node_x"], p["w_node_r"], p["b_node"],
        p["w_edge_e"], p["w_edge_s"], p["b_edge"],
        p["dbs_w"], p["dbs_b"],
        p["res_w1"], p["res_b1"], p["res_w2"], p["res_b2"],
        p["ro_wr"], p["ro_wo"],
    )

    def const_spec(a):
        return pl.BlockSpec(a.shape, lambda l, _nd=a.ndim: (0,) * _nd)

    def layer_spec(a):
        tail = tuple(a.shape[1:])
        nd = len(tail)
        return pl.BlockSpec((None,) + tail, lambda l, _nd=nd: (l,) + (0,) * _nd)

    in_specs = ([const_spec(a) for a in args[:15]]           # graph data + constants + edgenn
                + [layer_spec(a) for a in args[15:27]]       # per-layer stacked weights
                + [const_spec(a) for a in args[27:29]])      # readout weights

    kernel = functools.partial(_sbf_fused_kernel, heads=heads, ln_eps=1e-8)

    return pl.pallas_call(
        kernel,
        grid=(conv_layers,),
        out_shape=jax.ShapeDtypeStruct((A, 3), x0.dtype),
        in_specs=in_specs,
        out_specs=pl.BlockSpec((A, 3), lambda l: (0, 0)),
        scratch_shapes=[
            pltpu.VMEM((N, F_), jnp.float32),        # activation, carried across layers
            pltpu.VMEM((E, emb), jnp.float32),       # edgenn(edge_attr), computed once
            pltpu.VMEM((E, N), MXU_DTYPE),           # one-hot src  (gather)
            pltpu.VMEM((E, N), MXU_DTYPE),           # one-hot dst  (gather, [E,N])
            pltpu.VMEM((N, E), MXU_DTYPE),           # one-hot dst  (scatter, [N,E])
        ],
        compiler_params=pltpu.CompilerParams(
            dimension_semantics=("arbitrary",),       # layers are sequential
            vmem_limit_bytes=48 * 1024 * 1024,        # explicit; re-derive for big graphs / v7x
        ),
    )(*args)


# --------------------------------------------------------------------------
# deterministic parameter init (synthetic)
# --------------------------------------------------------------------------
def _glorot(key, fan_in, fan_out):
    # TODO(synk): Glorot_Ortho_ (orthogonal rescaled to glorot variance) approximated
    #             with a glorot-normal draw (deterministic, synthetic).
    return jnp.sqrt(2.0 / (fan_in + fan_out)) * jax.random.normal(
        key, (fan_in, fan_out), jnp.float32)


def _zb(d):
    return jnp.zeros((1, d), jnp.float32)


def init_params(key, conv_layers, emb_size, sbf_dim, rbf_dim, in_channels, heads):
    F_ = in_channels
    sbf_full = sbf_dim * rbf_dim
    keys = iter(jax.random.split(key, 8 + conv_layers * 16))
    nk = lambda: next(keys)

    edgenn = (_glorot(nk(), emb_size, emb_size), _zb(emb_size),
              _glorot(nk(), emb_size, emb_size), _zb(emb_size))

    w_node_x, w_node_r, b_node = [], [], []
    w_edge_e, w_edge_s, b_edge = [], [], []
    dbs_w, dbs_b = [], []
    res_w1, res_b1, res_w2, res_b2 = [], [], [], []

    for _ in range(conv_layers):
        # fused q|k|v|skip + rgate projection, stored as the two row-blocks of a
        # block-diagonal [F+rbf, 5F] weight (summed in-kernel into one [N,5F] slab)
        w_qkvs = jnp.concatenate([_glorot(nk(), F_, F_) for _ in range(4)], axis=1)
        wrbf = _glorot(nk(), rbf_dim, F_)
        wx = jnp.zeros((F_, 5 * F_), jnp.float32).at[:, :4 * F_].set(w_qkvs)
        wr = jnp.zeros((rbf_dim, 5 * F_), jnp.float32).at[:, 4 * F_:].set(wrbf)
        w_node_x.append(wx)
        w_node_r.append(wr)
        b_node.append(jnp.zeros((1, 5 * F_), jnp.float32))

        # fused e | sbf_w projection (row-blocks of a block-diag [emb+sbf_full, 2F] weight)
        we = _glorot(nk(), emb_size, F_)
        wsbf = _glorot(nk(), sbf_full, F_)
        wee = jnp.zeros((emb_size, 2 * F_), jnp.float32).at[:, :F_].set(we)
        wss = jnp.zeros((sbf_full, 2 * F_), jnp.float32).at[:, F_:].set(wsbf)
        w_edge_e.append(wee)
        w_edge_s.append(wss)
        b_edge.append(jnp.zeros((1, 2 * F_), jnp.float32))

        dbs_w.append(_glorot(nk(), F_, F_))
        dbs_b.append(_zb(F_))

        # residual blocks: 0 = bf_skip, 1 = af_skip[0], 2 = af_skip[1]
        res_w1.append(jnp.stack([_glorot(nk(), F_, F_) for _ in range(3)]))
        res_b1.append(jnp.stack([_zb(F_) for _ in range(3)]))
        res_w2.append(jnp.stack([_glorot(nk(), F_, F_) for _ in range(3)]))
        res_b2.append(jnp.stack([_zb(F_) for _ in range(3)]))

    params = dict(
        edgenn=edgenn,
        w_node_x=jnp.stack(w_node_x), w_node_r=jnp.stack(w_node_r), b_node=jnp.stack(b_node),
        w_edge_e=jnp.stack(w_edge_e), w_edge_s=jnp.stack(w_edge_s), b_edge=jnp.stack(b_edge),
        dbs_w=jnp.stack(dbs_w), dbs_b=jnp.stack(dbs_b),
        res_w1=jnp.stack(res_w1), res_b1=jnp.stack(res_b1),
        res_w2=jnp.stack(res_w2), res_b2=jnp.stack(res_b2),
        ro_wr=_glorot(nk(), rbf_dim, F_),
        ro_wo=_glorot(nk(), F_, 1).T,     # [1, F] row: readout coeff via lane reduction
    )
    return params


# --------------------------------------------------------------------------
# main
# --------------------------------------------------------------------------
if __name__ == "__main__":
    conv_layers = 2
    emb_size = 32
    sbf_dim = 8
    rbf_dim = 8
    in_channels = 32
    heads = 4

    num_atoms = 6
    num_nodes = 16     # "nodes" of the line graph (directed atom pairs)
    num_edges = 32     # edges between those nodes

    key = jax.random.PRNGKey(0)
    kp, kd = jax.random.split(key)
    params = init_params(kp, conv_layers, emb_size, sbf_dim, rbf_dim,
                         in_channels, heads)

    ks = jax.random.split(kd, 8)
    data = dict(
        x=jax.random.normal(ks[0], (num_nodes, in_channels), jnp.float32),
        edge_attr=jax.random.normal(ks[1], (num_edges, emb_size), jnp.float32),
        edge_sbf=jax.random.normal(ks[2], (num_edges, sbf_dim * rbf_dim), jnp.float32),
        node_rbf=jax.random.normal(ks[3], (num_nodes, rbf_dim), jnp.float32),
        edge_index=jax.random.randint(ks[4], (2, num_edges), 0, num_nodes, jnp.int32),
        node_vector=jax.random.normal(ks[5], (num_nodes, 3), jnp.float32),
        batch=jnp.zeros((num_nodes,), jnp.int32),
    )
    edge_index_0 = jax.random.randint(ks[6], (num_nodes,), 0, num_atoms, jnp.int32)
    atom_batch = jnp.zeros((num_atoms,), jnp.int32)

    fwd = jax.jit(functools.partial(sbf_transformer_forward, heads=heads,
                                    conv_layers=conv_layers))
    pred = jax.block_until_ready(fwd(params, data, edge_index_0, atom_batch))

    assert pred.shape == (num_atoms, 3), pred.shape
    assert bool(jnp.all(jnp.isfinite(pred)))
    print("KERNEL_OK")
</pallas_src>

<mosaic_0001>
module attributes {stable_mosaic.version = 11 : i64} {
  func.func @_sbf_fused_kernel(%arg0: i32, %arg1: memref<16x32xf32, #tpu.memory_space<vmem>>, %arg2: memref<32x32xf32, #tpu.memory_space<vmem>>, %arg3: memref<32x64xf32, #tpu.memory_space<vmem>>, %arg4: memref<16x8xf32, #tpu.memory_space<vmem>>, %arg5: memref<16x3xf32, #tpu.memory_space<vmem>>, %arg6: memref<32x1xi32, #tpu.memory_space<vmem>>, %arg7: memref<32x1xi32, #tpu.memory_space<vmem>>, %arg8: memref<1x32xi32, #tpu.memory_space<vmem>>, %arg9: memref<1x16xi32, #tpu.memory_space<vmem>>, %arg10: memref<32x4xf32, #tpu.memory_space<vmem>>, %arg11: memref<4x32xf32, #tpu.memory_space<vmem>>, %arg12: memref<32x32xf32, #tpu.memory_space<vmem>>, %arg13: memref<1x32xf32, #tpu.memory_space<vmem>>, %arg14: memref<32x32xf32, #tpu.memory_space<vmem>>, %arg15: memref<1x32xf32, #tpu.memory_space<vmem>>, %arg16: memref<1x32x160xf32, #tpu.memory_space<vmem>>, %arg17: memref<1x8x160xf32, #tpu.memory_space<vmem>>, %arg18: memref<1x1x160xf32, #tpu.memory_space<vmem>>, %arg19: memref<1x32x64xf32, #tpu.memory_space<vmem>>, %arg20: memref<1x64x64xf32, #tpu.memory_space<vmem>>, %arg21: memref<1x1x64xf32, #tpu.memory_space<vmem>>, %arg22: memref<1x32x32xf32, #tpu.memory_space<vmem>>, %arg23: memref<1x1x32xf32, #tpu.memory_space<vmem>>, %arg24: memref<1x3x32x32xf32, #tpu.memory_space<vmem>>, %arg25: memref<1x3x1x32xf32, #tpu.memory_space<vmem>>, %arg26: memref<1x3x32x32xf32, #tpu.memory_space<vmem>>, %arg27: memref<1x3x1x32xf32, #tpu.memory_space<vmem>>, %arg28: memref<8x32xf32, #tpu.memory_space<vmem>>, %arg29: memref<1x32xf32, #tpu.memory_space<vmem>>, %arg30: memref<6x3xf32, #tpu.memory_space<vmem>>, %arg31: memref<16x32xf32, #tpu.memory_space<vmem>>, %arg32: memref<32x32xf32, #tpu.memory_space<vmem>>, %arg33: memref<32x16xbf16, #tpu.memory_space<vmem>>, %arg34: memref<32x16xbf16, #tpu.memory_space<vmem>>, %arg35: memref<16x32xbf16, #tpu.memory_space<vmem>>) attributes {dimension_semantics = [#tpu.dimension_semantics<arbitrary>], iteration_bounds = array<i64: 2>, scalar_prefetch = 0 : i64, scratch_operands = 5 : i64, tpu.core_type = #tpu.core_type<tc>, window_params = [{pipeline_mode = #tpu.pipeline_mode<synchronous>, transform_indices = @transform_0, window_bounds = array<i64: 16, 32>}, {pipeline_mode = #tpu.pipeline_mode<synchronous>, transform_indices = @transform_1, window_bounds = array<i64: 32, 32>}, {pipeline_mode = #tpu.pipeline_mode<synchronous>, transform_indices = @transform_2, window_bounds = array<i64: 32, 64>}, {pipeline_mode = #tpu.pipeline_mode<synchronous>, transform_indices = @transform_3, window_bounds = array<i64: 16, 8>}, {pipeline_mode = #tpu.pipeline_mode<synchronous>, transform_indices = @transform_4, window_bounds = array<i64: 16, 3>}, {pipeline_mode = #tpu.pipeline_mode<synchronous>, transform_indices = @transform_5, window_bounds = array<i64: 32, 1>}, {pipeline_mode = #tpu.pipeline_mode<synchronous>, transform_indices = @transform_6, window_bounds = array<i64: 32, 1>}, {pipeline_mode = #tpu.pipeline_mode<synchronous>, transform_indices = @transform_7, window_bounds = array<i64: 1, 32>}, {pipeline_mode = #tpu.pipeline_mode<synchronous>, transform_indices = @transform_8, window_bounds = array<i64: 1, 16>}, {pipeline_mode = #tpu.pipeline_mode<synchronous>, transform_indices = @transform_9, window_bounds = array<i64: 32, 4>}, {pipeline_mode = #tpu.pipeline_mode<synchronous>, transform_indices = @transform_10, window_bounds = array<i64: 4, 32>}, {pipeline_mode = #tpu.pipeline_mode<synchronous>, transform_indices = @transform_11, window_bounds = array<i64: 32, 32>}, {pipeline_mode = #tpu.pipeline_mode<synchronous>, transform_indices = @transform_12, window_bounds = array<i64: 1, 32>}, {pipeline_mode = #tpu.pipeline_mode<synchronous>, transform_indices = @transform_13, window_bounds = array<i64: 32, 32>}, {pipeline_mode = #tpu.pipeline_mode<synchronous>, transform_indices = @transform_14, window_bounds = array<i64: 1, 32>}, {transform_indices = @transform_15, window_bounds = array<i64: 1, 32, 160>}, {transform_indices = @transform_16, window_bounds = array<i64: 1, 8, 160>}, {transform_indices = @transform_17, window_bounds = array<i64: 1, 1, 160>}, {transform_indices = @transform_18, window_bounds = array<i64: 1, 32, 64>}, {transform_indices = @transform_19, window_bounds = array<i64: 1, 64, 64>}, {transform_indices = @transform_20, window_bounds = array<i64: 1, 1, 64>}, {transform_indices = @transform_21, window_bounds = array<i64: 1, 32, 32>}, {transform_indices = @transform_22, window_bounds = array<i64: 1, 1, 32>}, {transform_indices = @transform_23, window_bounds = array<i64: 1, 3, 32, 32>}, {transform_indices = @transform_24, window_bounds = array<i64: 1, 3, 1, 32>}, {transform_indices = @transform_25, window_bounds = array<i64: 1, 3, 32, 32>}, {transform_indices = @transform_26, window_bounds = array<i64: 1, 3, 1, 32>}, {pipeline_mode = #tpu.pipeline_mode<synchronous>, transform_indices = @transform_27, window_bounds = array<i64: 8, 32>}, {pipeline_mode = #tpu.pipeline_mode<synchronous>, transform_indices = @transform_28, window_bounds = array<i64: 1, 32>}, {pipeline_mode = #tpu.pipeline_mode<synchronous>, transform_indices = @transform_29, window_bounds = array<i64: 6, 3>}]} {
    %c0_i32 = arith.constant 0 : i32
    %0 = arith.cmpi eq, %arg0, %c0_i32 : i32
    %1 = arith.extui %0 : i1 to i32
    %c0_i32_0 = arith.constant 0 : i32
    %2 = arith.cmpi ne, %1, %c0_i32_0 : i32
    scf.if %2 {
      %c0_94 = arith.constant 0 : index
      %c0_95 = arith.constant 0 : index
      %223 = vector.load %arg1[%c0_94, %c0_95] : memref<16x32xf32, #tpu.memory_space<vmem>>, vector<16x32xf32>
      %c0_96 = arith.constant 0 : index
      %c0_97 = arith.constant 0 : index
      %224 = vector.load %arg31[%c0_96, %c0_97] : memref<16x32xf32, #tpu.memory_space<vmem>>, vector<16x32xf32>
      tpu.vector_store %arg31[%c0_96, %c0_97], %223 {strides = array<i32>} : memref<16x32xf32, #tpu.memory_space<vmem>>, vector<16x32xf32>,
      %c0_98 = arith.constant 0 : index
      %c0_99 = arith.constant 0 : index
      %225 = vector.load %arg2[%c0_98, %c0_99] : memref<32x32xf32, #tpu.memory_space<vmem>>, vector<32x32xf32>
      %c0_100 = arith.constant 0 : index
      %c0_101 = arith.constant 0 : index
      %226 = vector.load %arg12[%c0_100, %c0_101] : memref<32x32xf32, #tpu.memory_space<vmem>>, vector<32x32xf32>
      %227 = arith.truncf %225 : vector<32x32xf32> to vector<32x32xbf16>
      %228 = arith.truncf %226 : vector<32x32xf32> to vector<32x32xbf16>
      %cst_102 = arith.constant dense<0.000000e+00> : vector<32x32xf32>
      %229 = tpu.matmul %227, %228, %cst_102 {dimension_numbers = #tpu.dot_dimension_numbers<[1], [0], [0], [1], [0, 0, 1, 1], [], []>} : vector<32x32xbf16>, vector<32x32xbf16>, vector<32x32xf32> -> vector<32x32xf32>
      %c0_103 = arith.constant 0 : index
      %c0_104 = arith.constant 0 : index
      %230 = vector.load %arg13[%c0_103, %c0_104] : memref<1x32xf32, #tpu.memory_space<vmem>>, vector<1x32xf32>
      %231 = vector.broadcast %230 : vector<1x32xf32> to vector<32x32xf32>
      %232 = arith.addf %229, %231 : vector<32x32xf32>
      %233 = arith.negf %232 : vector<32x32xf32>
      %234 = math.exp %233 : vector<32x32xf32>
      %cst_105 = arith.constant 1.000000e+00 : f32
      %235 = vector.broadcast %cst_105 : f32 to vector<32x32xf32>
      %236 = arith.addf %235, %234 : vector<32x32xf32>
      %237 = arith.divf %235, %236 : vector<32x32xf32>
      %238 = arith.mulf %232, %237 : vector<32x32xf32>
      %c0_106 = arith.constant 0 : index
      %c0_107 = arith.constant 0 : index
      %239 = vector.load %arg14[%c0_106, %c0_107] : memref<32x32xf32, #tpu.memory_space<vmem>>, vector<32x32xf32>
      %240 = arith.truncf %238 : vector<32x32xf32> to vector<32x32xbf16>
      %241 = arith.truncf %239 : vector<32x32xf32> to vector<32x32xbf16>
      %cst_108 = arith.constant dense<0.000000e+00> : vector<32x32xf32>
      %242 = tpu.matmul %240, %241, %cst_108 {dimension_numbers = #tpu.dot_dimension_numbers<[1], [0], [0], [1], [0, 0, 1, 1], [], []>} : vector<32x32xbf16>, vector<32x32xbf16>, vector<32x32xf32> -> vector<32x32xf32>
      %c0_109 = arith.constant 0 : index
      %c0_110 = arith.constant 0 : index
      %243 = vector.load %arg15[%c0_109, %c0_110] : memref<1x32xf32, #tpu.memory_space<vmem>>, vector<1x32xf32>
      %244 = vector.broadcast %243 : vector<1x32xf32> to vector<32x32xf32>
      %245 = arith.addf %242, %244 : vector<32x32xf32>
      %c0_111 = arith.constant 0 : index
      %c0_112 = arith.constant 0 : index
      %246 = vector.load %arg32[%c0_111, %c0_112] : memref<32x32xf32, #tpu.memory_space<vmem>>, vector<32x32xf32>
      tpu.vector_store %arg32[%c0_111, %c0_112], %245 {strides = array<i32>} : memref<32x32xf32, #tpu.memory_space<vmem>>, vector<32x32xf32>,
      %247 = tpu.iota {dimensions = array<i32: 1>} : vector<32x16xi32>
      %c0_113 = arith.constant 0 : index
      %c0_114 = arith.constant 0 : index
      %248 = vector.load %arg6[%c0_113, %c0_114] : memref<32x1xi32, #tpu.memory_space<vmem>>, vector<32x1xi32>
      %249 = vector.broadcast %248 : vector<32x1xi32> to vector<32x16xi32>
      %250 = arith.cmpi eq, %249, %247 : vector<32x16xi32>
      %251 = arith.extui %250 : vector<32x16xi1> to vector<32x16xi32>
      %252 = arith.sitofp %251 : vector<32x16xi32> to vector<32x16xf32>
      %253 = arith.truncf %252 : vector<32x16xf32> to vector<32x16xbf16>
      %c0_115 = arith.constant 0 : index
      %c0_116 = arith.constant 0 : index
      %254 = vector.load %arg33[%c0_115, %c0_116] : memref<32x16xbf16, #tpu.memory_space<vmem>>, vector<32x16xbf16>
      tpu.vector_store %arg33[%c0_115, %c0_116], %253 {strides = array<i32>} : memref<32x16xbf16, #tpu.memory_space<vmem>>, vector<32x16xbf16>,
      %c0_117 = arith.constant 0 : index
      %c0_118 = arith.constant 0 : index
      %255 = vector.load %arg7[%c0_117, %c0_118] : memref<32x1xi32, #tpu.memory_space<vmem>>, vector<32x1xi32>
      %256 = vector.broadcast %255 : vector<32x1xi32> to vector<32x16xi32>
      %257 = arith.cmpi eq, %256, %247 : vector<32x16xi32>
      %258 = arith.extui %257 : vector<32x16xi1> to vector<32x16xi32>
      %259 = arith.sitofp %258 : vector<32x16xi32> to vector<32x16xf32>
      %260 = arith.truncf %259 : vector<32x16xf32> to vector<32x16xbf16>
      %c0_119 = arith.constant 0 : index
      %c0_120 = arith.constant 0 : index
      %261 = vector.load %arg34[%c0_119, %c0_120] : memref<32x16xbf16, #tpu.memory_space<vmem>>, vector<32x16xbf16>
      tpu.vector_store %arg34[%c0_119, %c0_120], %260 {strides = array<i32>} : memref<32x16xbf16, #tpu.memory_space<vmem>>, vector<32x16xbf16>,
      %262 = tpu.iota {dimensions = array<i32: 0>} : vector<16x32xi32>
      %c0_121 = arith.constant 0 : index
      %c0_122 = arith.constant 0 : index
      %263 = vector.load %arg8[%c0_121, %c0_122] : memref<1x32xi32, #tpu.memory_space<vmem>>, vector<1x32xi32>
      %264 = vector.broadcast %263 : vector<1x32xi32> to vector<16x32xi32>
      %265 = arith.cmpi eq, %264, %262 : vector<16x32xi32>
      %266 = arith.extui %265 : vector<16x32xi1> to vector<16x32xi32>
      %267 = arith.sitofp %266 : vector<16x32xi32> to vector<16x32xf32>
      %268 = arith.truncf %267 : vector<16x32xf32> to vector<16x32xbf16>
      %c0_123 = arith.constant 0 : index
      %c0_124 = arith.constant 0 : index
      %269 = vector.load %arg35[%c0_123, %c0_124] : memref<16x32xbf16, #tpu.memory_space<vmem>>, vector<16x32xbf16>
      tpu.vector_store %arg35[%c0_123, %c0_124], %268 {strides = array<i32>} : memref<16x32xbf16, #tpu.memory_space<vmem>>, vector<16x32xbf16>,
    } else {
    }
    %c0 = arith.constant 0 : index
    %c0_1 = arith.constant 0 : index
    %3 = vector.load %arg31[%c0, %c0_1] : memref<16x32xf32, #tpu.memory_space<vmem>>, vector<16x32xf32>
    %c0_2 = arith.constant 0 : index
    %c0_3 = arith.constant 0 : index
    %4 = vector.load %arg33[%c0_2, %c0_3] : memref<32x16xbf16, #tpu.memory_space<vmem>>, vector<32x16xbf16>
    %c0_4 = arith.constant 0 : index
    %c0_5 = arith.constant 0 : index
    %5 = vector.load %arg34[%c0_4, %c0_5] : memref<32x16xbf16, #tpu.memory_space<vmem>>, vector<32x16xbf16>
    %c0_6 = arith.constant 0 : index
    %c0_7 = arith.constant 0 : index
    %6 = vector.load %arg35[%c0_6, %c0_7] : memref<16x32xbf16, #tpu.memory_space<vmem>>, vector<16x32xbf16>
    %c0_8 = arith.constant 0 : index
    %c0_9 = arith.constant 0 : index
    %c0_10 = arith.constant 0 : index
    %7 = vector.load %arg16[%c0_8, %c0_9, %c0_10] : memref<1x32x160xf32, #tpu.memory_space<vmem>>, vector<1x32x160xf32>
    %8 = vector.shape_cast %7 : vector<1x32x160xf32> to vector<32x160xf32>
    %9 = arith.truncf %3 : vector<16x32xf32> to vector<16x32xbf16>
    %10 = arith.truncf %8 : vector<32x160xf32> to vector<32x160xbf16>
    %cst = arith.constant dense<0.000000e+00> : vector<16x160xf32>
    %11 = tpu.matmul %9, %10, %cst {dimension_numbers = #tpu.dot_dimension_numbers<[1], [0], [0], [1], [0, 0, 1, 1], [], []>} : vector<16x32xbf16>, vector<32x160xbf16>, vector<16x160xf32> -> vector<16x160xf32>
    %c0_11 = arith.constant 0 : index
    %c0_12 = arith.constant 0 : index
    %12 = vector.load %arg4[%c0_11, %c0_12] : memref<16x8xf32, #tpu.memory_space<vmem>>, vector<16x8xf32>
    %c0_13 = arith.constant 0 : index
    %c0_14 = arith.constant 0 : index
    %c0_15 = arith.constant 0 : index
    %13 = vector.load %arg17[%c0_13, %c0_14, %c0_15] : memref<1x8x160xf32, #tpu.memory_space<vmem>>, vector<1x8x160xf32>
    %14 = vector.shape_cast %13 : vector<1x8x160xf32> to vector<8x160xf32>
    %15 = arith.truncf %12 : vector<16x8xf32> to vector<16x8xbf16>
    %16 = arith.truncf %14 : vector<8x160xf32> to vector<8x160xbf16>
    %cst_16 = arith.constant dense<0.000000e+00> : vector<16x160xf32>
    %17 = tpu.matmul %15, %16, %cst_16 {dimension_numbers = #tpu.dot_dimension_numbers<[1], [0], [0], [1], [0, 0, 1, 1], [], []>} : vector<16x8xbf16>, vector<8x160xbf16>, vector<16x160xf32> -> vector<16x160xf32>
    %18 = arith.addf %11, %17 : vector<16x160xf32>
    %c0_17 = arith.constant 0 : index
    %c0_18 = arith.constant 0 : index
    %c0_19 = arith.constant 0 : index
    %19 = vector.load %arg18[%c0_17, %c0_18, %c0_19] : memref<1x1x160xf32, #tpu.memory_space<vmem>>, vector<1x1x160xf32>
    %20 = vector.shape_cast %19 : vector<1x1x160xf32> to vector<1x160xf32>
    %21 = vector.broadcast %20 : vector<1x160xf32> to vector<16x160xf32>
    %22 = arith.addf %18, %21 : vector<16x160xf32>
    %23 = vector.extract_strided_slice %22 {offsets = [0, 0], sizes = [16, 32], strides = [1, 1]} : vector<16x160xf32> to vector<16x32xf32>
    %24 = vector.extract_strided_slice %22 {offsets = [0, 32], sizes = [16, 32], strides = [1, 1]} : vector<16x160xf32> to vector<16x32xf32>
    %25 = vector.extract_strided_slice %22 {offsets = [0, 64], sizes = [16, 32], strides = [1, 1]} : vector<16x160xf32> to vector<16x32xf32>
    %26 = vector.extract_strided_slice %22 {offsets = [0, 128], sizes = [16, 32], strides = [1, 1]} : vector<16x160xf32> to vector<16x32xf32>
    %27 = arith.mulf %25, %26 : vector<16x32xf32>
    %28 = vector.extract_strided_slice %22 {offsets = [0, 96], sizes = [16, 32], strides = [1, 1]} : vector<16x160xf32> to vector<16x32xf32>
    %c0_20 = arith.constant 0 : index
    %c0_21 = arith.constant 0 : index
    %29 = vector.load %arg32[%c0_20, %c0_21] : memref<32x32xf32, #tpu.memory_space<vmem>>, vector<32x32xf32>
    %c0_22 = arith.constant 0 : index
    %c0_23 = arith.constant 0 : index
    %c0_24 = arith.constant 0 : index
    %30 = vector.load %arg19[%c0_22, %c0_23, %c0_24] : memref<1x32x64xf32, #tpu.memory_space<vmem>>, vector<1x32x64xf32>
    %31 = vector.shape_cast %30 : vector<1x32x64xf32> to vector<32x64xf32>
    %32 = arith.truncf %29 : vector<32x32xf32> to vector<32x32xbf16>
    %33 = arith.truncf %31 : vector<32x64xf32> to vector<32x64xbf16>
    %cst_25 = arith.constant dense<0.000000e+00> : vector<32x64xf32>
    %34 = tpu.matmul %32, %33, %cst_25 {dimension_numbers = #tpu.dot_dimension_numbers<[1], [0], [0], [1], [0, 0, 1, 1], [], []>} : vector<32x32xbf16>, vector<32x64xbf16>, vector<32x64xf32> -> vector<32x64xf32>
    %c0_26 = arith.constant 0 : index
    %c0_27 = arith.constant 0 : index
    %35 = vector.load %arg3[%c0_26, %c0_27] : memref<32x64xf32, #tpu.memory_space<vmem>>, vector<32x64xf32>
    %c0_28 = arith.constant 0 : index
    %c0_29 = arith.constant 0 : index
    %c0_30 = arith.constant 0 : index
    %36 = vector.load %arg20[%c0_28, %c0_29, %c0_30] : memref<1x64x64xf32, #tpu.memory_space<vmem>>, vector<1x64x64xf32>
    %37 = vector.shape_cast %36 : vector<1x64x64xf32> to vector<64x64xf32>
    %38 = arith.truncf %35 : vector<32x64xf32> to vector<32x64xbf16>
    %39 = arith.truncf %37 : vector<64x64xf32> to vector<64x64xbf16>
    %cst_31 = arith.constant dense<0.000000e+00> : vector<32x64xf32>
    %40 = tpu.matmul %38, %39, %cst_31 {dimension_numbers = #tpu.dot_dimension_numbers<[1], [0], [0], [1], [0, 0, 1, 1], [], []>} : vector<32x64xbf16>, vector<64x64xbf16>, vector<32x64xf32> -> vector<32x64xf32>
    %41 = arith.addf %34, %40 : vector<32x64xf32>
    %c0_32 = arith.constant 0 : index
    %c0_33 = arith.constant 0 : index
    %c0_34 = arith.constant 0 : index
    %42 = vector.load %arg21[%c0_32, %c0_33, %c0_34] : memref<1x1x64xf32, #tpu.memory_space<vmem>>, vector<1x1x64xf32>
    %43 = vector.shape_cast %42 : vector<1x1x64xf32> to vector<1x64xf32>
    %44 = vector.broadcast %43 : vector<1x64xf32> to vector<32x64xf32>
    %45 = arith.addf %41, %44 : vector<32x64xf32>
    %46 = vector.extract_strided_slice %45 {offsets = [0, 0], sizes = [32, 32], strides = [1, 1]} : vector<32x64xf32> to vector<32x32xf32>
    %47 = vector.extract_strided_slice %45 {offsets = [0, 32], sizes = [32, 32], strides = [1, 1]} : vector<32x64xf32> to vector<32x32xf32>
    %48 = arith.truncf %23 : vector<16x32xf32> to vector<16x32xbf16>
    %cst_35 = arith.constant dense<0.000000e+00> : vector<32x32xf32>
    %49 = tpu.matmul %5, %48, %cst_35 {dimension_numbers = #tpu.dot_dimension_numbers<[1], [0], [0], [1], [0, 0, 1, 1], [], []>} : vector<32x16xbf16>, vector<16x32xbf16>, vector<32x32xf32> -> vector<32x32xf32>
    %50 = arith.truncf %24 : vector<16x32xf32> to vector<16x32xbf16>
    %cst_36 = arith.constant dense<0.000000e+00> : vector<32x32xf32>
    %51 = tpu.matmul %4, %50, %cst_36 {dimension_numbers = #tpu.dot_dimension_numbers<[1], [0], [0], [1], [0, 0, 1, 1], [], []>} : vector<32x16xbf16>, vector<16x32xbf16>, vector<32x32xf32> -> vector<32x32xf32>
    %52 = arith.truncf %27 : vector<16x32xf32> to vector<16x32xbf16>
    %cst_37 = arith.constant dense<0.000000e+00> : vector<32x32xf32>
    %53 = tpu.matmul %4, %52, %cst_37 {dimension_numbers = #tpu.dot_dimension_numbers<[1], [0], [0], [1], [0, 0, 1, 1], [], []>} : vector<32x16xbf16>, vector<16x32xbf16>, vector<32x32xf32> -> vector<32x32xf32>
    %54 = arith.addf %51, %46 : vector<32x32xf32>
    %55 = arith.mulf %49, %54 : vector<32x32xf32>
    %c0_38 = arith.constant 0 : index
    %c0_39 = arith.constant 0 : index
    %56 = vector.load %arg10[%c0_38, %c0_39] : memref<32x4xf32, #tpu.memory_space<vmem>>, vector<32x4xf32>
    %57 = arith.truncf %55 : vector<32x32xf32> to vector<32x32xbf16>
    %58 = arith.truncf %56 : vector<32x4xf32> to vector<32x4xbf16>
    %cst_40 = arith.constant dense<0.000000e+00> : vector<32x4xf32>
    %59 = tpu.matmul %57, %58, %cst_40 {dimension_numbers = #tpu.dot_dimension_numbers<[1], [0], [0], [1], [0, 0, 1, 1], [], []>} : vector<32x32xbf16>, vector<32x4xbf16>, vector<32x4xf32> -> vector<32x4xf32>
    %cst_41 = arith.constant 0.353553385 : f32
    %60 = vector.broadcast %cst_41 : f32 to vector<32x4xf32>
    %61 = arith.mulf %59, %60 : vector<32x4xf32>
    %cst_42 = arith.constant dense<0xFF800000> : vector<4xf32>
    %62 = vector.multi_reduction <maximumf>, %61, %cst_42 [0] : vector<32x4xf32> to vector<4xf32>
    %63 = vector.shape_cast %62 : vector<4xf32> to vector<1x4xf32>
    %64 = vector.broadcast %63 : vector<1x4xf32> to vector<32x4xf32>
    %65 = arith.subf %61, %64 : vector<32x4xf32>
    %66 = math.exp %65 : vector<32x4xf32>
    %67 = arith.truncf %66 : vector<32x4xf32> to vector<32x4xbf16>
    %cst_43 = arith.constant dense<0.000000e+00> : vector<16x4xf32>
    %68 = tpu.matmul %6, %67, %cst_43 {dimension_numbers = #tpu.dot_dimension_numbers<[1], [0], [0], [1], [0, 0, 1, 1], [], []>} : vector<16x32xbf16>, vector<32x4xbf16>, vector<16x4xf32> -> vector<16x4xf32>
    %69 = arith.truncf %68 : vector<16x4xf32> to vector<16x4xbf16>
    %cst_44 = arith.constant dense<0.000000e+00> : vector<32x4xf32>
    %70 = tpu.matmul %5, %69, %cst_44 {dimension_numbers = #tpu.dot_dimension_numbers<[1], [0], [0], [1], [0, 0, 1, 1], [], []>} : vector<32x16xbf16>, vector<16x4xbf16>, vector<32x4xf32> -> vector<32x4xf32>
    %cst_45 = arith.constant 1.000000e-16 : f32
    %71 = vector.broadcast %cst_45 : f32 to vector<32x4xf32>
    %72 = arith.addf %70, %71 : vector<32x4xf32>
    %73 = arith.divf %66, %72 : vector<32x4xf32>
    %c0_46 = arith.constant 0 : index
    %c0_47 = arith.constant 0 : index
    %74 = vector.load %arg11[%c0_46, %c0_47] : memref<4x32xf32, #tpu.memory_space<vmem>>, vector<4x32xf32>
    %75 = arith.truncf %73 : vector<32x4xf32> to vector<32x4xbf16>
    %76 = arith.truncf %74 : vector<4x32xf32> to vector<4x32xbf16>
    %cst_48 = arith.constant dense<0.000000e+00> : vector<32x32xf32>
    %77 = tpu.matmul %75, %76, %cst_48 {dimension_numbers = #tpu.dot_dimension_numbers<[1], [0], [0], [1], [0, 0, 1, 1], [], []>} : vector<32x4xbf16>, vector<4x32xbf16>, vector<32x32xf32> -> vector<32x32xf32>
    %78 = arith.addf %53, %46 : vector<32x32xf32>
    %79 = arith.mulf %77, %78 : vector<32x32xf32>
    %80 = arith.mulf %79, %47 : vector<32x32xf32>
    %81 = arith.truncf %80 : vector<32x32xf32> to vector<32x32xbf16>
    %cst_49 = arith.constant dense<0.000000e+00> : vector<16x32xf32>
    %82 = tpu.matmul %6, %81, %cst_49 {dimension_numbers = #tpu.dot_dimension_numbers<[1], [0], [0], [1], [0, 0, 1, 1], [], []>} : vector<16x32xbf16>, vector<32x32xbf16>, vector<16x32xf32> -> vector<16x32xf32>
    %83 = arith.addf %82, %28 : vector<16x32xf32>
    %cst_50 = arith.constant dense<0.000000e+00> : vector<16xf32>
    %84 = vector.multi_reduction <add>, %83, %cst_50 [1] : vector<16x32xf32> to vector<16xf32>
    %85 = vector.shape_cast %84 : vector<16xf32> to vector<16x1xf32>
    %cst_51 = arith.constant 3.200000e+01 : f32
    %86 = vector.broadcast %cst_51 : f32 to vector<16x1xf32>
    %87 = arith.divf %85, %86 : vector<16x1xf32>
    %88 = vector.broadcast %87 : vector<16x1xf32> to vector<16x32xf32>
    %89 = arith.subf %83, %88 : vector<16x32xf32>
    %90 = arith.mulf %89, %89 : vector<16x32xf32>
    %cst_52 = arith.constant dense<0.000000e+00> : vector<16xf32>
    %91 = vector.multi_reduction <add>, %90, %cst_52 [1] : vector<16x32xf32> to vector<16xf32>
    %92 = vector.shape_cast %91 : vector<16xf32> to vector<16x1xf32>
    %cst_53 = arith.constant 3.200000e+01 : f32
    %93 = vector.broadcast %cst_53 : f32 to vector<16x1xf32>
    %94 = arith.divf %92, %93 : vector<16x1xf32>
    %95 = vector.broadcast %87 : vector<16x1xf32> to vector<16x32xf32>
    %96 = arith.subf %83, %95 : vector<16x32xf32>
    %cst_54 = arith.constant 9.99999993E-9 : f32
    %97 = vector.broadcast %cst_54 : f32 to vector<16x1xf32>
    %98 = arith.addf %94, %97 : vector<16x1xf32>
    %99 = math.rsqrt %98 : vector<16x1xf32>
    %100 = vector.broadcast %99 : vector<16x1xf32> to vector<16x32xf32>
    %101 = arith.mulf %96, %100 : vector<16x32xf32>
    %c0_55 = arith.constant 0 : index
    %c0_56 = arith.constant 0 : index
    %c0_57 = arith.constant 0 : index
    %c0_58 = arith.constant 0 : index
    %102 = vector.load %arg24[%c0_55, %c0_56, %c0_57, %c0_58] : memref<1x3x32x32xf32, #tpu.memory_space<vmem>>, vector<1x3x32x32xf32>
    %103 = vector.shape_cast %102 : vector<1x3x32x32xf32> to vector<3x32x32xf32>
    %c0_59 = arith.constant 0 : index
    %c0_60 = arith.constant 0 : index
    %c0_61 = arith.constant 0 : index
    %c0_62 = arith.constant 0 : index
    %104 = vector.load %arg25[%c0_59, %c0_60, %c0_61, %c0_62] : memref<1x3x1x32xf32, #tpu.memory_space<vmem>>, vector<1x3x1x32xf32>
    %105 = vector.shape_cast %104 : vector<1x3x1x32xf32> to vector<3x1x32xf32>
    %c0_63 = arith.constant 0 : index
    %c0_64 = arith.constant 0 : index
    %c0_65 = arith.constant 0 : index
    %c0_66 = arith.constant 0 : index
    %106 = vector.load %arg26[%c0_63, %c0_64, %c0_65, %c0_66] : memref<1x3x32x32xf32, #tpu.memory_space<vmem>>, vector<1x3x32x32xf32>
    %107 = vector.shape_cast %106 : vector<1x3x32x32xf32> to vector<3x32x32xf32>
    %c0_67 = arith.constant 0 : index
    %c0_68 = arith.constant 0 : index
    %c0_69 = arith.constant 0 : index
    %c0_70 = arith.constant 0 : index
    %108 = vector.load %arg27[%c0_67, %c0_68, %c0_69, %c0_70] : memref<1x3x1x32xf32, #tpu.memory_space<vmem>>, vector<1x3x1x32xf32>
    %109 = vector.shape_cast %108 : vector<1x3x1x32xf32> to vector<3x1x32xf32>
    %110 = vector.extract_strided_slice %103 {offsets = [0, 0, 0], sizes = [1, 32, 32], strides = [1, 1, 1]} : vector<3x32x32xf32> to vector<1x32x32xf32>
    %111 = vector.shape_cast %110 : vector<1x32x32xf32> to vector<32x32xf32>
    %112 = vector.extract_strided_slice %105 {offsets = [0, 0, 0], sizes = [1, 1, 32], strides = [1, 1, 1]} : vector<3x1x32xf32> to vector<1x1x32xf32>
    %113 = vector.shape_cast %112 : vector<1x1x32xf32> to vector<1x32xf32>
    %114 = vector.extract_strided_slice %107 {offsets = [0, 0, 0], sizes = [1, 32, 32], strides = [1, 1, 1]} : vector<3x32x32xf32> to vector<1x32x32xf32>
    %115 = vector.shape_cast %114 : vector<1x32x32xf32> to vector<32x32xf32>
    %116 = vector.extract_strided_slice %109 {offsets = [0, 0, 0], sizes = [1, 1, 32], strides = [1, 1, 1]} : vector<3x1x32xf32> to vector<1x1x32xf32>
    %117 = vector.shape_cast %116 : vector<1x1x32xf32> to vector<1x32xf32>
    %118 = arith.truncf %101 : vector<16x32xf32> to vector<16x32xbf16>
    %119 = arith.truncf %111 : vector<32x32xf32> to vector<32x32xbf16>
    %cst_71 = arith.constant dense<0.000000e+00> : vector<16x32xf32>
    %120 = tpu.matmul %118, %119, %cst_71 {dimension_numbers = #tpu.dot_dimension_numbers<[1], [0], [0], [1], [0, 0, 1, 1], [], []>} : vector<16x32xbf16>, vector<32x32xbf16>, vector<16x32xf32> -> vector<16x32xf32>
    %121 = vector.broadcast %113 : vector<1x32xf32> to vector<16x32xf32>
    %122 = arith.addf %120, %121 : vector<16x32xf32>
    %123 = arith.negf %122 : vector<16x32xf32>
    %124 = math.exp %123 : vector<16x32xf32>
    %cst_72 = arith.constant 1.000000e+00 : f32
    %125 = vector.broadcast %cst_72 : f32 to vector<16x32xf32>
    %126 = arith.addf %125, %124 : vector<16x32xf32>
    %127 = arith.divf %125, %126 : vector<16x32xf32>
    %128 = arith.mulf %122, %127 : vector<16x32xf32>
    %129 = arith.truncf %128 : vector<16x32xf32> to vector<16x32xbf16>
    %130 = arith.truncf %115 : vector<32x32xf32> to vector<32x32xbf16>
    %cst_73 = arith.constant dense<0.000000e+00> : vector<16x32xf32>
    %131 = tpu.matmul %129, %130, %cst_73 {dimension_numbers = #tpu.dot_dimension_numbers<[1], [0], [0], [1], [0, 0, 1, 1], [], []>} : vector<16x32xbf16>, vector<32x32xbf16>, vector<16x32xf32> -> vector<16x32xf32>
    %132 = vector.broadcast %117 : vector<1x32xf32> to vector<16x32xf32>
    %133 = arith.addf %131, %132 : vector<16x32xf32>
    %134 = arith.negf %133 : vector<16x32xf32>
    %135 = math.exp %134 : vector<16x32xf32>
    %cst_74 = arith.constant 1.000000e+00 : f32
    %136 = vector.broadcast %cst_74 : f32 to vector<16x32xf32>
    %137 = arith.addf %136, %135 : vector<16x32xf32>
    %138 = arith.divf %136, %137 : vector<16x32xf32>
    %139 = arith.mulf %133, %138 : vector<16x32xf32>
    %140 = arith.addf %101, %139 : vector<16x32xf32>
    %c0_75 = arith.constant 0 : index
    %c0_76 = arith.constant 0 : index
    %c0_77 = arith.constant 0 : index
    %141 = vector.load %arg22[%c0_75, %c0_76, %c0_77] : memref<1x32x32xf32, #tpu.memory_space<vmem>>, vector<1x32x32xf32>
    %142 = vector.shape_cast %141 : vector<1x32x32xf32> to vector<32x32xf32>
    %143 = arith.truncf %140 : vector<16x32xf32> to vector<16x32xbf16>
    %144 = arith.truncf %142 : vector<32x32xf32> to vector<32x32xbf16>
    %cst_78 = arith.constant dense<0.000000e+00> : vector<16x32xf32>
    %145 = tpu.matmul %143, %144, %cst_78 {dimension_numbers = #tpu.dot_dimension_numbers<[1], [0], [0], [1], [0, 0, 1, 1], [], []>} : vector<16x32xbf16>, vector<32x32xbf16>, vector<16x32xf32> -> vector<16x32xf32>
    %c0_79 = arith.constant 0 : index
    %c0_80 = arith.constant 0 : index
    %c0_81 = arith.constant 0 : index
    %146 = vector.load %arg23[%c0_79, %c0_80, %c0_81] : memref<1x1x32xf32, #tpu.memory_space<vmem>>, vector<1x1x32xf32>
    %147 = vector.shape_cast %146 : vector<1x1x32xf32> to vector<1x32xf32>
    %148 = vector.broadcast %147 : vector<1x32xf32> to vector<16x32xf32>
    %149 = arith.addf %145, %148 : vector<16x32xf32>
    %150 = arith.negf %149 : vector<16x32xf32>
    %151 = math.exp %150 : vector<16x32xf32>
    %cst_82 = arith.constant 1.000000e+00 : f32
    %152 = vector.broadcast %cst_82 : f32 to vector<16x32xf32>
    %153 = arith.addf %152, %151 : vector<16x32xf32>
    %154 = arith.divf %152, %153 : vector<16x32xf32>
    %155 = arith.mulf %149, %154 : vector<16x32xf32>
    %156 = arith.addf %155, %3 : vector<16x32xf32>
    %157 = vector.extract_strided_slice %103 {offsets = [1, 0, 0], sizes = [1, 32, 32], strides = [1, 1, 1]} : vector<3x32x32xf32> to vector<1x32x32xf32>
    %158 = vector.shape_cast %157 : vector<1x32x32xf32> to vector<32x32xf32>
    %159 = vector.extract_strided_slice %105 {offsets = [1, 0, 0], sizes = [1, 1, 32], strides = [1, 1, 1]} : vector<3x1x32xf32> to vector<1x1x32xf32>
    %160 = vector.shape_cast %159 : vector<1x1x32xf32> to vector<1x32xf32>
    %161 = vector.extract_strided_slice %107 {offsets = [1, 0, 0], sizes = [1, 32, 32], strides = [1, 1, 1]} : vector<3x32x32xf32> to vector<1x32x32xf32>
    %162 = vector.shape_cast %161 : vector<1x32x32xf32> to vector<32x32xf32>
    %163 = vector.extract_strided_slice %109 {offsets = [1, 0, 0], sizes = [1, 1, 32], strides = [1, 1, 1]} : vector<3x1x32xf32> to vector<1x1x32xf32>
    %164 = vector.shape_cast %163 : vector<1x1x32xf32> to vector<1x32xf32>
    %165 = arith.truncf %156 : vector<16x32xf32> to vector<16x32xbf16>
    %166 = arith.truncf %158 : vector<32x32xf32> to vector<32x32xbf16>
    %cst_83 = arith.constant dense<0.000000e+00> : vector<16x32xf32>
    %167 = tpu.matmul %165, %166, %cst_83 {dimension_numbers = #tpu.dot_dimension_numbers<[1], [0], [0], [1], [0, 0, 1, 1], [], []>} : vector<16x32xbf16>, vector<32x32xbf16>, vector<16x32xf32> -> vector<16x32xf32>
    %168 = vector.broadcast %160 : vector<1x32xf32> to vector<16x32xf32>
    %169 = arith.addf %167, %168 : vector<16x32xf32>
    %170 = arith.negf %169 : vector<16x32xf32>
    %171 = math.exp %170 : vector<16x32xf32>
    %cst_84 = arith.constant 1.000000e+00 : f32
    %172 = vector.broadcast %cst_84 : f32 to vector<16x32xf32>
    %173 = arith.addf %172, %171 : vector<16x32xf32>
    %174 = arith.divf %172, %173 : vector<16x32xf32>
    %175 = arith.mulf %169, %174 : vector<16x32xf32>
    %176 = arith.truncf %175 : vector<16x32xf32> to vector<16x32xbf16>
    %177 = arith.truncf %162 : vector<32x32xf32> to vector<32x32xbf16>
    %cst_85 = arith.constant dense<0.000000e+00> : vector<16x32xf32>
    %178 = tpu.matmul %176, %177, %cst_85 {dimension_numbers = #tpu.dot_dimension_numbers<[1], [0], [0], [1], [0, 0, 1, 1], [], []>} : vector<16x32xbf16>, vector<32x32xbf16>, vector<16x32xf32> -> vector<16x32xf32>
    %179 = vector.broadcast %164 : vector<1x32xf32> to vector<16x32xf32>
    %180 = arith.addf %178, %179 : vector<16x32xf32>
    %181 = arith.negf %180 : vector<16x32xf32>
    %182 = math.exp %181 : vector<16x32xf32>
    %cst_86 = arith.constant 1.000000e+00 : f32
    %183 = vector.broadcast %cst_86 : f32 to vector<16x32xf32>
    %184 = arith.addf %183, %182 : vector<16x32xf32>
    %185 = arith.divf %183, %184 : vector<16x32xf32>
    %186 = arith.mulf %180, %185 : vector<16x32xf32>
    %187 = arith.addf %156, %186 : vector<16x32xf32>
    %188 = vector.extract_strided_slice %103 {offsets = [2, 0, 0], sizes = [1, 32, 32], strides = [1, 1, 1]} : vector<3x32x32xf32> to vector<1x32x32xf32>
    %189 = vector.shape_cast %188 : vector<1x32x32xf32> to vector<32x32xf32>
    %190 = vector.extract_strided_slice %105 {offsets = [2, 0, 0], sizes = [1, 1, 32], strides = [1, 1, 1]} : vector<3x1x32xf32> to vector<1x1x32xf32>
    %191 = vector.shape_cast %190 : vector<1x1x32xf32> to vector<1x32xf32>
    %192 = vector.extract_strided_slice %107 {offsets = [2, 0, 0], sizes = [1, 32, 32], strides = [1, 1, 1]} : vector<3x32x32xf32> to vector<1x32x32xf32>
    %193 = vector.shape_cast %192 : vector<1x32x32xf32> to vector<32x32xf32>
    %194 = vector.extract_strided_slice %109 {offsets = [2, 0, 0], sizes = [1, 1, 32], strides = [1, 1, 1]} : vector<3x1x32xf32> to vector<1x1x32xf32>
    %195 = vector.shape_cast %194 : vector<1x1x32xf32> to vector<1x32xf32>
    %196 = arith.truncf %187 : vector<16x32xf32> to vector<16x32xbf16>
    %197 = arith.truncf %189 : vector<32x32xf32> to vector<32x32xbf16>
    %cst_87 = arith.constant dense<0.000000e+00> : vector<16x32xf32>
    %198 = tpu.matmul %196, %197, %cst_87 {dimension_numbers = #tpu.dot_dimension_numbers<[1], [0], [0], [1], [0, 0, 1, 1], [], []>} : vector<16x32xbf16>, vector<32x32xbf16>, vector<16x32xf32> -> vector<16x32xf32>
    %199 = vector.broadcast %191 : vector<1x32xf32> to vector<16x32xf32>
    %200 = arith.addf %198, %199 : vector<16x32xf32>
    %201 = arith.negf %200 : vector<16x32xf32>
    %202 = math.exp %201 : vector<16x32xf32>
    %cst_88 = arith.constant 1.000000e+00 : f32
    %203 = vector.broadcast %cst_88 : f32 to vector<16x32xf32>
    %204 = arith.addf %203, %202 : vector<16x32xf32>
    %205 = arith.divf %203, %204 : vector<16x32xf32>
    %206 = arith.mulf %200, %205 : vector<16x32xf32>
    %207 = arith.truncf %206 : vector<16x32xf32> to vector<16x32xbf16>
    %208 = arith.truncf %193 : vector<32x32xf32> to vector<32x32xbf16>
    %cst_89 = arith.constant dense<0.000000e+00> : vector<16x32xf32>
    %209 = tpu.matmul %207, %208, %cst_89 {dimension_numbers = #tpu.dot_dimension_numbers<[1], [0], [0], [1], [0, 0, 1, 1], [], []>} : vector<16x32xbf16>, vector<32x32xbf16>, vector<16x32xf32> -> vector<16x32xf32>
    %210 = vector.broadcast %195 : vector<1x32xf32> to vector<16x32xf32>
    %211 = arith.addf %209, %210 : vector<16x32xf32>
    %212 = arith.negf %211 : vector<16x32xf32>
    %213 = math.exp %212 : vector<16x32xf32>
    %cst_90 = arith.constant 1.000000e+00 : f32
    %214 = vector.broadcast %cst_90 : f32 to vector<16x32xf32>
    %215 = arith.addf %214, %213 : vector<16x32xf32>
    %216 = arith.divf %214, %215 : vector<16x32xf32>
    %217 = arith.mulf %211, %216 : vector<16x32xf32>
    %218 = arith.addf %187, %217 : vector<16x32xf32>
    %c0_91 = arith.constant 0 : index
    %c0_92 = arith.constant 0 : index
    %219 = vector.load %arg31[%c0_91, %c0_92] : memref<16x32xf32, #tpu.memory_space<vmem>>, vector<16x32xf32>
    tpu.vector_store %arg31[%c0_91, %c0_92], %218 {strides = array<i32>} : memref<16x32xf32, #tpu.memory_space<vmem>>, vector<16x32xf32>,
    %c1_i32 = arith.constant 1 : i32
    %220 = arith.cmpi eq, %arg0, %c1_i32 : i32
    %221 = arith.extui %220 : i1 to i32
    %c0_i32_93 = arith.constant 0 : i32
    %222 = arith.cmpi ne, %221, %c0_i32_93 : i32
    scf.if %222 {
      %c0_94 = arith.constant 0 : index
      %c0_95 = arith.constant 0 : index
      %223 = vector.load %arg4[%c0_94, %c0_95] : memref<16x8xf32, #tpu.memory_space<vmem>>, vector<16x8xf32>
      %c0_96 = arith.constant 0 : index
      %c0_97 = arith.constant 0 : index
      %224 = vector.load %arg28[%c0_96, %c0_97] : memref<8x32xf32, #tpu.memory_space<vmem>>, vector<8x32xf32>
      %225 = arith.truncf %223 : vector<16x8xf32> to vector<16x8xbf16>
      %226 = arith.truncf %224 : vector<8x32xf32> to vector<8x32xbf16>
      %cst_98 = arith.constant dense<0.000000e+00> : vector<16x32xf32>
      %227 = tpu.matmul %225, %226, %cst_98 {dimension_numbers = #tpu.dot_dimension_numbers<[1], [0], [0], [1], [0, 0, 1, 1], [], []>} : vector<16x8xbf16>, vector<8x32xbf16>, vector<16x32xf32> -> vector<16x32xf32>
      %228 = arith.mulf %218, %227 : vector<16x32xf32>
      %c0_99 = arith.constant 0 : index
      %c0_100 = arith.constant 0 : index
      %229 = vector.load %arg29[%c0_99, %c0_100] : memref<1x32xf32, #tpu.memory_space<vmem>>, vector<1x32xf32>
      %230 = vector.broadcast %229 : vector<1x32xf32> to vector<16x32xf32>
      %231 = arith.mulf %228, %230 : vector<16x32xf32>
      %cst_101 = arith.constant dense<0.000000e+00> : vector<16xf32>
      %232 = vector.multi_reduction <add>, %231, %cst_101 [1] : vector<16x32xf32> to vector<16xf32>
      %233 = vector.shape_cast %232 : vector<16xf32> to vector<16x1xf32>
      %c0_102 = arith.constant 0 : index
      %c0_103 = arith.constant 0 : index
      %234 = vector.load %arg5[%c0_102, %c0_103] : memref<16x3xf32, #tpu.memory_space<vmem>>, vector<16x3xf32>
      %235 = vector.broadcast %233 : vector<16x1xf32> to vector<16x3xf32>
      %236 = arith.mulf %235, %234 : vector<16x3xf32>
      %237 = tpu.iota {dimensions = array<i32: 0>} : vector<6x16xi32>
      %c0_104 = arith.constant 0 : index
      %c0_105 = arith.constant 0 : index
      %238 = vector.load %arg9[%c0_104, %c0_105] : memref<1x16xi32, #tpu.memory_space<vmem>>, vector<1x16xi32>
      %239 = vector.broadcast %238 : vector<1x16xi32> to vector<6x16xi32>
      %240 = arith.cmpi eq, %239, %237 : vector<6x16xi32>
      %241 = arith.extui %240 : vector<6x16xi1> to vector<6x16xi32>
      %242 = arith.sitofp %241 : vector<6x16xi32> to vector<6x16xf32>
      %cst_106 = arith.constant dense<0.000000e+00> : vector<6x3xf32>
      %243 = tpu.matmul %242, %236, %cst_106 {dimension_numbers = #tpu.dot_dimension_numbers<[1], [0], [0], [1], [0, 0, 1, 1], [], []>} : vector<6x16xf32>, vector<16x3xf32>, vector<6x3xf32> -> vector<6x3xf32>
      %c0_107 = arith.constant 0 : index
      %c0_108 = arith.constant 0 : index
      %244 = vector.load %arg30[%c0_107, %c0_108] : memref<6x3xf32, #tpu.memory_space<vmem>>, vector<6x3xf32>
      tpu.vector_store %arg30[%c0_107, %c0_108], %243 {strides = array<i32>} : memref<6x3xf32, #tpu.memory_space<vmem>>, vector<6x3xf32>,
    } else {
    }
    return
  }
  func.func @transform_0(%arg0: i32) -> (i32, i32) {
    %c0_i32 = arith.constant 0 : i32
    %c0_i32_0 = arith.constant 0 : i32
    %c0_i32_1 = arith.constant 0 : i32
    return %c0_i32, %c0_i32_0 : i32, i32
  }
  func.func @transform_1(%arg0: i32) -> (i32, i32) {
    %c0_i32 = arith.constant 0 : i32
    %c0_i32_0 = arith.constant 0 : i32
    %c0_i32_1 = arith.constant 0 : i32
    return %c0_i32, %c0_i32_0 : i32, i32
  }
  func.func @transform_2(%arg0: i32) -> (i32, i32) {
    %c0_i32 = arith.constant 0 : i32
    %c0_i32_0 = arith.constant 0 : i32
    %c0_i32_1 = arith.constant 0 : i32
    return %c0_i32, %c0_i32_0 : i32, i32
  }
  func.func @transform_3(%arg0: i32) -> (i32, i32) {
    %c0_i32 = arith.constant 0 : i32
    %c0_i32_0 = arith.constant 0 : i32
    %c0_i32_1 = arith.constant 0 : i32
    return %c0_i32, %c0_i32_0 : i32, i32
  }
  func.func @transform_4(%arg0: i32) -> (i32, i32) {
    %c0_i32 = arith.constant 0 : i32
    %c0_i32_0 = arith.constant 0 : i32
    %c0_i32_1 = arith.constant 0 : i32
    return %c0_i32, %c0_i32_0 : i32, i32
  }
  func.func @transform_5(%arg0: i32) -> (i32, i32) {
    %c0_i32 = arith.constant 0 : i32
    %c0_i32_0 = arith.constant 0 : i32
    %c0_i32_1 = arith.constant 0 : i32
    return %c0_i32, %c0_i32_0 : i32, i32
  }
  func.func @transform_6(%arg0: i32) -> (i32, i32) {
    %c0_i32 = arith.constant 0 : i32
    %c0_i32_0 = arith.constant 0 : i32
    %c0_i32_1 = arith.constant 0 : i32
    return %c0_i32, %c0_i32_0 : i32, i32
  }
  func.func @transform_7(%arg0: i32) -> (i32, i32) {
    %c0_i32 = arith.constant 0 : i32
    %c0_i32_0 = arith.constant 0 : i32
    %c0_i32_1 = arith.constant 0 : i32
    return %c0_i32, %c0_i32_0 : i32, i32
  }
  func.func @transform_8(%arg0: i32) -> (i32, i32) {
    %c0_i32 = arith.constant 0 : i32
    %c0_i32_0 = arith.constant 0 : i32
    %c0_i32_1 = arith.constant 0 : i32
    return %c0_i32, %c0_i32_0 : i32, i32
  }
  func.func @transform_9(%arg0: i32) -> (i32, i32) {
    %c0_i32 = arith.constant 0 : i32
    %c0_i32_0 = arith.constant 0 : i32
    %c0_i32_1 = arith.constant 0 : i32
    return %c0_i32, %c0_i32_0 : i32, i32
  }
  func.func @transform_10(%arg0: i32) -> (i32, i32) {
    %c0_i32 = arith.constant 0 : i32
    %c0_i32_0 = arith.constant 0 : i32
    %c0_i32_1 = arith.constant 0 : i32
    return %c0_i32, %c0_i32_0 : i32, i32
  }
  func.func @transform_11(%arg0: i32) -> (i32, i32) {
    %c0_i32 = arith.constant 0 : i32
    %c0_i32_0 = arith.constant 0 : i32
    %c0_i32_1 = arith.constant 0 : i32
    return %c0_i32, %c0_i32_0 : i32, i32
  }
  func.func @transform_12(%arg0: i32) -> (i32, i32) {
    %c0_i32 = arith.constant 0 : i32
    %c0_i32_0 = arith.constant 0 : i32
    %c0_i32_1 = arith.constant 0 : i32
    return %c0_i32, %c0_i32_0 : i32, i32
  }
  func.func @transform_13(%arg0: i32) -> (i32, i32) {
    %c0_i32 = arith.constant 0 : i32
    %c0_i32_0 = arith.constant 0 : i32
    %c0_i32_1 = arith.constant 0 : i32
    return %c0_i32, %c0_i32_0 : i32, i32
  }
  func.func @transform_14(%arg0: i32) -> (i32, i32) {
    %c0_i32 = arith.constant 0 : i32
    %c0_i32_0 = arith.constant 0 : i32
    %c0_i32_1 = arith.constant 0 : i32
    return %c0_i32, %c0_i32_0 : i32, i32
  }
  func.func @transform_15(%arg0: i32) -> (i32, i32, i32) {
    %c0_i32 = arith.constant 0 : i32
    %c0_i32_0 = arith.constant 0 : i32
    %c0_i32_1 = arith.constant 0 : i32
    return %arg0, %c0_i32, %c0_i32_0 : i32, i32, i32
  }
  func.func @transform_16(%arg0: i32) -> (i32, i32, i32) {
    %c0_i32 = arith.constant 0 : i32
    %c0_i32_0 = arith.constant 0 : i32
    %c0_i32_1 = arith.constant 0 : i32
    return %arg0, %c0_i32, %c0_i32_0 : i32, i32, i32
  }
  func.func @transform_17(%arg0: i32) -> (i32, i32, i32) {
    %c0_i32 = arith.constant 0 : i32
    %c0_i32_0 = arith.constant 0 : i32
    %c0_i32_1 = arith.constant 0 : i32
    return %arg0, %c0_i32, %c0_i32_0 : i32, i32, i32
  }
  func.func @transform_18(%arg0: i32) -> (i32, i32, i32) {
    %c0_i32 = arith.constant 0 : i32
    %c0_i32_0 = arith.constant 0 : i32
    %c0_i32_1 = arith.constant 0 : i32
    return %arg0, %c0_i32, %c0_i32_0 : i32, i32, i32
  }
  func.func @transform_19(%arg0: i32) -> (i32, i32, i32) {
    %c0_i32 = arith.constant 0 : i32
    %c0_i32_0 = arith.constant 0 : i32
    %c0_i32_1 = arith.constant 0 : i32
    return %arg0, %c0_i32, %c0_i32_0 : i32, i32, i32
  }
  func.func @transform_20(%arg0: i32) -> (i32, i32, i32) {
    %c0_i32 = arith.constant 0 : i32
    %c0_i32_0 = arith.constant 0 : i32
    %c0_i32_1 = arith.constant 0 : i32
    return %arg0, %c0_i32, %c0_i32_0 : i32, i32, i32
  }
  func.func @transform_21(%arg0: i32) -> (i32, i32, i32) {
    %c0_i32 = arith.constant 0 : i32
    %c0_i32_0 = arith.constant 0 : i32
    %c0_i32_1 = arith.constant 0 : i32
    return %arg0, %c0_i32, %c0_i32_0 : i32, i32, i32
  }
  func.func @transform_22(%arg0: i32) -> (i32, i32, i32) {
    %c0_i32 = arith.constant 0 : i32
    %c0_i32_0 = arith.constant 0 : i32
    %c0_i32_1 = arith.constant 0 : i32
    return %arg0, %c0_i32, %c0_i32_0 : i32, i32, i32
  }
  func.func @transform_23(%arg0: i32) -> (i32, i32, i32, i32) {
    %c0_i32 = arith.constant 0 : i32
    %c0_i32_0 = arith.constant 0 : i32
    %c0_i32_1 = arith.constant 0 : i32
    %c0_i32_2 = arith.constant 0 : i32
    return %arg0, %c0_i32, %c0_i32_0, %c0_i32_1 : i32, i32, i32, i32
  }
  func.func @transform_24(%arg0: i32) -> (i32, i32, i32, i32) {
    %c0_i32 = arith.constant 0 : i32
    %c0_i32_0 = arith.constant 0 : i32
    %c0_i32_1 = arith.constant 0 : i32
    %c0_i32_2 = arith.constant 0 : i32
    return %arg0, %c0_i32, %c0_i32_0, %c0_i32_1 : i32, i32, i32, i32
  }
  func.func @transform_25(%arg0: i32) -> (i32, i32, i32, i32) {
    %c0_i32 = arith.constant 0 : i32
    %c0_i32_0 = arith.constant 0 : i32
    %c0_i32_1 = arith.constant 0 : i32
    %c0_i32_2 = arith.constant 0 : i32
    return %arg0, %c0_i32, %c0_i32_0, %c0_i32_1 : i32, i32, i32, i32
  }
  func.func @transform_26(%arg0: i32) -> (i32, i32, i32, i32) {
    %c0_i32 = arith.constant 0 : i32
    %c0_i32_0 = arith.constant 0 : i32
    %c0_i32_1 = arith.constant 0 : i32
    %c0_i32_2 = arith.constant 0 : i32
    return %arg0, %c0_i32, %c0_i32_0, %c0_i32_1 : i32, i32, i32, i32
  }
  func.func @transform_27(%arg0: i32) -> (i32, i32) {
    %c0_i32 = arith.constant 0 : i32
    %c0_i32_0 = arith.constant 0 : i32
    %c0_i32_1 = arith.constant 0 : i32
    return %c0_i32, %c0_i32_0 : i32, i32
  }
  func.func @transform_28(%arg0: i32) -> (i32, i32) {
    %c0_i32 = arith.constant 0 : i32
    %c0_i32_0 = arith.constant 0 : i32
    %c0_i32_1 = arith.constant 0 : i32
    return %c0_i32, %c0_i32_0 : i32, i32
  }
  func.func @transform_29(%arg0: i32) -> (i32, i32) {
    %c0_i32 = arith.constant 0 : i32
    %c0_i32_0 = arith.constant 0 : i32
    %c0_i32_1 = arith.constant 0 : i32
    return %c0_i32, %c0_i32_0 : i32, i32
  }
}

</mosaic_0001>

<llo_original>
// kernel: sbf_transformer_forward.1
$region0: #{sbf_transformer_forward.1}
  #allocation0 [shape = 'u32[]', space=smem, size = 0x4, offset = 0x4, fixed_abs, tag = 'smem constant byte address 0x4 - core index']
  #allocation1 [shape = 'u32[72,128]{1,0:T(1,128)}', space=vmem, size = 0x9000, scoped, tag = 'internal scratch']
  #allocation2 [shape = 'f32[16,32]{1,0:T(8,128)}', space=vmem, size = 0x2000, scoped, tag = 'scratch operand']
  #allocation3 [shape = 'f32[32,32]{1,0:T(8,128)}', space=vmem, size = 0x4000, scoped, tag = 'scratch operand']
  #allocation4 [shape = 'bf16[32,16]{1,0:T(8,128)(2,1)}', space=vmem, size = 0x2000, scoped, tag = 'scratch operand']
  #allocation5 [shape = 'bf16[32,16]{1,0:T(8,128)(2,1)}', space=vmem, size = 0x2000, scoped, tag = 'scratch operand']
  #allocation6 [shape = 'bf16[16,32]{1,0:T(8,128)(2,1)}', space=vmem, size = 0x1000, scoped, tag = 'scratch operand']
  %s0 = inlined_call_operand.smem [shape: u32[30], index: -1, kind: input, shape index: {}]
  %s1 = sld [smem:[%s0]]
  %s2 = scalar_lea.smem %s0, 1
  %s3 = sld [smem:[%s2]]
  %s4 = scalar_lea.smem %s0, 2
  %s5 = sld [smem:[%s4]]
  %s6 = scalar_lea.smem %s0, 3
  %s7 = sld [smem:[%s6]]
  %s8 = scalar_lea.smem %s0, 4
  %s9 = sld [smem:[%s8]]
  %s10 = scalar_lea.smem %s0, 5
  %s11 = sld [smem:[%s10]]
  %s12 = scalar_lea.smem %s0, 6
  %s13 = sld [smem:[%s12]]
  %s14 = scalar_lea.smem %s0, 7
  %s15 = sld [smem:[%s14]]
  %s16 = scalar_lea.smem %s0, 8
  %s17 = sld [smem:[%s16]]
  %s18 = scalar_lea.smem %s0, 9
  %s19 = sld [smem:[%s18]]
  %s20 = scalar_lea.smem %s0, 10
  %s21 = sld [smem:[%s20]]
  %s22 = scalar_lea.smem %s0, 11
  %s23 = sld [smem:[%s22]]
  %s24 = scalar_lea.smem %s0, 12
  %s25 = sld [smem:[%s24]]
  %s26 = scalar_lea.smem %s0, 13
  %s27 = sld [smem:[%s26]]
  %s28 = scalar_lea.smem %s0, 14
  %s29 = sld [smem:[%s28]]
  %s30 = scalar_lea.smem %s0, 15
  %s31 = sld [smem:[%s30]]
  %s32 = scalar_lea.smem %s0, 16
  %s33 = sld [smem:[%s32]]
  %s34 = scalar_lea.smem %s0, 17
  %s35 = sld [smem:[%s34]]
  %s36 = scalar_lea.smem %s0, 18
  %s37 = sld [smem:[%s36]]
  %s38 = scalar_lea.smem %s0, 19
  %s39 = sld [smem:[%s38]]
  %s40 = scalar_lea.smem %s0, 20
  %s41 = sld [smem:[%s40]]
  %s42 = scalar_lea.smem %s0, 21
  %s43 = sld [smem:[%s42]]
  %s44 = scalar_lea.smem %s0, 22
  %s45 = sld [smem:[%s44]]
  %s46 = scalar_lea.smem %s0, 23
  %s47 = sld [smem:[%s46]]
  %s48 = scalar_lea.smem %s0, 24
  %s49 = sld [smem:[%s48]]
  %s50 = scalar_lea.smem %s0, 25
  %s51 = sld [smem:[%s50]]
  %s52 = scalar_lea.smem %s0, 26
  %s53 = sld [smem:[%s52]]
  %s54 = scalar_lea.smem %s0, 27
  %s55 = sld [smem:[%s54]]
  %s56 = scalar_lea.smem %s0, 28
  %s57 = sld [smem:[%s56]]
  %s58 = scalar_lea.smem %s0, 29
  %s59 = sld [smem:[%s58]]
  %s60 = sld [smem:[#allocation0]]
  $region225: #{sbf_transformer_forward.1} parent=0
    _
  %s62 = ssub.s32 1, %s60
  %s63 = scalar_select 0, %s62, %s60
  $region1: #{sbf_transformer_forward.1} parent=0
    #allocation7 [shape = 'u8[16384]{0}', space=vmem, size = 0x4000, scoped, tag = 'input window, operand 1, single buffered']
    #allocation8 [shape = 's32[2]{0}', space=sflag, size = 0x8, scoped, tag = 'scoped memory for sbf_transformer_forward.1']
    #allocation9 [shape = 'u8[16384]{0}', space=vmem, size = 0x4000, scoped, tag = 'input window, operand 2, single buffered']
    #allocation10 [shape = 's32[1]{0}', space=sflag, size = 0x4, scoped, tag = 'scoped memory for sbf_transformer_forward.1']
    #allocation11 [shape = 'u8[16384]{0}', space=vmem, size = 0x4000, scoped, tag = 'input window, operand 11, single buffered']
    #allocation12 [shape = 'u8[512]{0}', space=vmem, size = 0x400, scoped, tag = 'input window, operand 12, single buffered']
    #allocation13 [shape = 's32[1]{0}', space=sflag, size = 0x4, scoped, tag = 'scoped memory for sbf_transformer_forward.1']
    #allocation14 [shape = 'u8[16384]{0}', space=vmem, size = 0x4000, scoped, tag = 'input window, operand 13, single buffered']
    #allocation15 [shape = 'u8[512]{0}', space=vmem, size = 0x400, scoped, tag = 'input window, operand 14, single buffered']
    #allocation16 [shape = 's32[1]{0}', space=sflag, size = 0x4, scoped, tag = 'scoped memory for sbf_transformer_forward.1']
    #allocation17 [shape = 'u8[16384]{0}', space=vmem, size = 0x4000, scoped, tag = 'input window, operand 16']
    #allocation18 [shape = 'u8[2048]{0}', space=vmem, size = 0x800, scoped, tag = 'input window, operand 17']
    #allocation19 [shape = 'u8[32768]{0}', space=vmem, size = 0x8000, scoped, tag = 'input window, operand 18']
    #allocation20 [shape = 'u8[65536]{0}', space=vmem, size = 0x10000, scoped, tag = 'input window, operand 19']
    #allocation21 [shape = 'u8[1024]{0}', space=vmem, size = 0x400, scoped, tag = 'input window, operand 20']
    #allocation22 [shape = 'u8[32768]{0}', space=vmem, size = 0x8000, scoped, tag = 'input window, operand 21']
    #allocation23 [shape = 'u8[1024]{0}', space=vmem, size = 0x400, scoped, tag = 'input window, operand 22']
    #allocation24 [shape = 'u8[98304]{0}', space=vmem, size = 0x18000, scoped, tag = 'input window, operand 23']
    #allocation25 [shape = 'u8[3072]{0}', space=vmem, size = 0xc00, scoped, tag = 'input window, operand 24']
    #allocation26 [shape = 'u8[98304]{0}', space=vmem, size = 0x18000, scoped, tag = 'input window, operand 25']
    #allocation27 [shape = 'u8[3072]{0}', space=vmem, size = 0xc00, scoped, tag = 'input window, operand 26']
    %64 = vsyncpa [#allocation8], 0
    %65 = vsyncpa [#allocation10], 0
    %66 = vsyncpa [#allocation13], 0
    %67 = vsyncpa [#allocation16], 0
    loop: start=0, step=1, limit=4
    $region2: #{sbf_transformer_forward.1} parent=1 // loop_pre_header
      _
    $region3: #{sbf_transformer_forward.1} parent=1 // loop_header
      %s69 = sphi 0, %s73
      %p70 = scmp.ge.s32.totalorder %s69, 4
      %s77 = sphi 0, %s77
      %s79 = sphi 0, %s77
      %s80 = sphi 0, %s79
      %s94 = sphi 0, %s80
      %s98 = sphi 0, %s98
      %s100 = sphi 0, %s98
      %s101 = sphi 0, %s100
      %s115 = sphi 0, %s101
      %s119 = sphi 0, %s119
      %s121 = sphi 0, %s119
      %s122 = sphi 0, %s121
      %s136 = sphi 0, %s122
      %s140 = sphi 0, %s140
      %s142 = sphi 0, %s140
      %s143 = sphi 0, %s142
      %s157 = sphi 0, %s143
      %s161 = sphi 0, %s161
      %s163 = sphi 0, %s161
      %s164 = sphi 0, %s163
      %s178 = sphi 0, %s164
      %s182 = sphi 0, %s182
      %s184 = sphi 0, %s182
      %s185 = sphi 0, %s184
      %s199 = sphi 0, %s185
      %s203 = sphi 0, %s203
      %s205 = sphi 0, %s203
      %s206 = sphi 0, %s205
      %s220 = sphi 0, %s206
      %s224 = sphi 0, %s224
      %s226 = sphi 0, %s224
      %s227 = sphi 0, %s226
      %s241 = sphi 0, %s227
      %s245 = sphi 0, %s245
      %s247 = sphi 0, %s245
      %s248 = sphi 0, %s247
      %s262 = sphi 0, %s248
      %s266 = sphi 0, %s266
      %s268 = sphi 0, %s266
      %s269 = sphi 0, %s268
      %s283 = sphi 0, %s269
      %s287 = sphi 0, %s287
      %s289 = sphi 0, %s287
      %s290 = sphi 0, %s289
      %s304 = sphi 0, %s290
      %s308 = sphi 0, %s308
      %s310 = sphi 0, %s308
      %s311 = sphi 0, %s310
      %s325 = sphi 0, %s311
      %s329 = sphi 0, %s329
      %s331 = sphi 0, %s329
      %s332 = sphi 0, %s331
      %s346 = sphi 0, %s332
      %s350 = sphi 0, %s350
      %s352 = sphi 0, %s350
      %s353 = sphi 0, %s352
      %s367 = sphi 0, %s353
      %s371 = sphi 0, %s371
      %s373 = sphi 0, %s371
      %s374 = sphi 0, %s373
      %s388 = sphi 0, %s374
      %s394 = sphi 0, %s396
      %s397 = sphi 0, %s394
      %s398 = sphi 0, %s397
      %s414 = sphi 0, %s398
      %s420 = sphi 0, %s422
      %s423 = sphi 0, %s420
      %s424 = sphi 0, %s423
      %s440 = sphi 0, %s424
      %s446 = sphi 0, %s448
      %s449 = sphi 0, %s446
      %s450 = sphi 0, %s449
      %s466 = sphi 0, %s450
      %s472 = sphi 0, %s474
      %s475 = sphi 0, %s472
      %s476 = sphi 0, %s475
      %s492 = sphi 0, %s476
      %s498 = sphi 0, %s500
      %s501 = sphi 0, %s498
      %s502 = sphi 0, %s501
      %s518 = sphi 0, %s502
      %s524 = sphi 0, %s526
      %s527 = sphi 0, %s524
      %s528 = sphi 0, %s527
      %s544 = sphi 0, %s528
      %s550 = sphi 0, %s552
      %s553 = sphi 0, %s550
      %s554 = sphi 0, %s553
      %s570 = sphi 0, %s554
      %s576 = sphi 0, %s578
      %s579 = sphi 0, %s576
      %s580 = sphi 0, %s579
      %s596 = sphi 0, %s580
      %s602 = sphi 0, %s604
      %s605 = sphi 0, %s602
      %s606 = sphi 0, %s605
      %s622 = sphi 0, %s606
      %s628 = sphi 0, %s630
      %s631 = sphi 0, %s628
      %s632 = sphi 0, %s631
      %s648 = sphi 0, %s632
      %s654 = sphi 0, %s656
      %s657 = sphi 0, %s654
      %s658 = sphi 0, %s657
      %s674 = sphi 0, %s658
      %s680 = sphi 0, %s682
      %s683 = sphi 0, %s680
      %s684 = sphi 0, %s683
      %s700 = sphi 0, %s684
      %s704 = sphi 0, %s704
      %s706 = sphi 0, %s704
      %s707 = sphi 0, %s706
      %s721 = sphi 0, %s707
      %s725 = sphi 0, %s725
      %s727 = sphi 0, %s725
      %s728 = sphi 0, %s727
      %s742 = sphi 0, %s728
      %s746 = sphi 0, %s746
      %s748 = sphi 0, %s746
      %s749 = sphi 0, %s748
      %s763 = sphi 0, %s749
    $region4: #{sbf_transformer_forward.1} parent=1 // loop_header_branch
      %72 = sbr.rel (%p70) target = $region8
    $region5: #{sbf_transformer_forward.1} parent=1 // loop_body
      %s74 = ssub.s32 %s69, 1
      %s75 = ssub.s32 %s69, 2
      %s76 = sadd.s32 %s69, 1
      %s78 = sadd.s32 %s77, 1
      %p81 = scmp.eq.s32.totalorder %s69, 1
      %p82 = scmp.ne.s32.totalorder %s77, %s79
      %p83 = scmp.eq.s32.totalorder %s69, 0
      %p84 = por %p82, %p83
      %p85 = scmp.ne.s32.totalorder %s77, %s79
      %p86 = scmp.eq.s32.totalorder %s74, 1
      %p87 = por %p85, %p86
      %p88 = scmp.ne.s32.totalorder %s79, %s80
      %p89 = scmp.eq.s32.totalorder %s74, 0
      %p90 = por %p88, %p89
      %p91 = scmp.ne.s32.totalorder %s79, %s80
      %p92 = scmp.eq.s32.totalorder %s75, 1
      %p93 = por %p91, %p92
      %p95 = scmp.ne.s32.totalorder %s80, %s94
      %p96 = scmp.eq.s32.totalorder %s75, 0
      %p97 = por %p95, %p96
      %s99 = sadd.s32 %s98, 1
      %p102 = scmp.eq.s32.totalorder %s69, 1
      %p103 = scmp.ne.s32.totalorder %s98, %s100
      %p104 = scmp.eq.s32.totalorder %s69, 0
      %p105 = por %p103, %p104
      %p106 = scmp.ne.s32.totalorder %s98, %s100
      %p107 = scmp.eq.s32.totalorder %s74, 1
      %p108 = por %p106, %p107
      %p109 = scmp.ne.s32.totalorder %s100, %s101
      %p110 = scmp.eq.s32.totalorder %s74, 0
      %p111 = por %p109, %p110
      %p112 = scmp.ne.s32.totalorder %s100, %s101
      %p113 = scmp.eq.s32.totalorder %s75, 1
      %p114 = por %p112, %p113
      %p116 = scmp.ne.s32.totalorder %s101, %s115
      %p117 = scmp.eq.s32.totalorder %s75, 0
      %p118 = por %p116, %p117
      %s120 = sadd.s32 %s119, 1
      %p123 = scmp.eq.s32.totalorder %s69, 1
      %p124 = scmp.ne.s32.totalorder %s119, %s121
      %p125 = scmp.eq.s32.totalorder %s69, 0
      %p126 = por %p124, %p125
      %p127 = scmp.ne.s32.totalorder %s119, %s121
      %p128 = scmp.eq.s32.totalorder %s74, 1
      %p129 = por %p127, %p128
      %p130 = scmp.ne.s32.totalorder %s121, %s122
      %p131 = scmp.eq.s32.totalorder %s74, 0
      %p132 = por %p130, %p131
      %p133 = scmp.ne.s32.totalorder %s121, %s122
      %p134 = scmp.eq.s32.totalorder %s75, 1
      %p135 = por %p133, %p134
      %p137 = scmp.ne.s32.totalorder %s122, %s136
      %p138 = scmp.eq.s32.totalorder %s75, 0
      %p139 = por %p137, %p138
      %s141 = sadd.s32 %s140, 1
      %p144 = scmp.eq.s32.totalorder %s69, 1
      %p145 = scmp.ne.s32.totalorder %s140, %s142
      %p146 = scmp.eq.s32.totalorder %s69, 0
      %p147 = por %p145, %p146
      %p148 = scmp.ne.s32.totalorder %s140, %s142
      %p149 = scmp.eq.s32.totalorder %s74, 1
      %p150 = por %p148, %p149
      %p151 = scmp.ne.s32.totalorder %s142, %s143
      %p152 = scmp.eq.s32.totalorder %s74, 0
      %p153 = por %p151, %p152
      %p154 = scmp.ne.s32.totalorder %s142, %s143
      %p155 = scmp.eq.s32.totalorder %s75, 1
      %p156 = por %p154, %p155
      %p158 = scmp.ne.s32.totalorder %s143, %s157
      %p159 = scmp.eq.s32.totalorder %s75, 0
      %p160 = por %p158, %p159
      %s162 = sadd.s32 %s161, 1
      %p165 = scmp.eq.s32.totalorder %s69, 1
      %p166 = scmp.ne.s32.totalorder %s161, %s163
      %p167 = scmp.eq.s32.totalorder %s69, 0
      %p168 = por %p166, %p167
      %p169 = scmp.ne.s32.totalorder %s161, %s163
      %p170 = scmp.eq.s32.totalorder %s74, 1
      %p171 = por %p169, %p170
      %p172 = scmp.ne.s32.totalorder %s163, %s164
      %p173 = scmp.eq.s32.totalorder %s74, 0
      %p174 = por %p172, %p173
      %p175 = scmp.ne.s32.totalorder %s163, %s164
      %p176 = scmp.eq.s32.totalorder %s75, 1
      %p177 = por %p175, %p176
      %p179 = scmp.ne.s32.totalorder %s164, %s178
      %p180 = scmp.eq.s32.totalorder %s75, 0
      %p181 = por %p179, %p180
      %s183 = sadd.s32 %s182, 1
      %p186 = scmp.eq.s32.totalorder %s69, 1
      %p187 = scmp.ne.s32.totalorder %s182, %s184
      %p188 = scmp.eq.s32.totalorder %s69, 0
      %p189 = por %p187, %p188
      %p190 = scmp.ne.s32.totalorder %s182, %s184
      %p191 = scmp.eq.s32.totalorder %s74, 1
      %p192 = por %p190, %p191
      %p193 = scmp.ne.s32.totalorder %s184, %s185
      %p194 = scmp.eq.s32.totalorder %s74, 0
      %p195 = por %p193, %p194
      %p196 = scmp.ne.s32.totalorder %s184, %s185
      %p197 = scmp.eq.s32.totalorder %s75, 1
      %p198 = por %p196, %p197
      %p200 = scmp.ne.s32.totalorder %s185, %s199
      %p201 = scmp.eq.s32.totalorder %s75, 0
      %p202 = por %p200, %p201
      %s204 = sadd.s32 %s203, 1
      %p207 = scmp.eq.s32.totalorder %s69, 1
      %p208 = scmp.ne.s32.totalorder %s203, %s205
      %p209 = scmp.eq.s32.totalorder %s69, 0
      %p210 = por %p208, %p209
      %p211 = scmp.ne.s32.totalorder %s203, %s205
      %p212 = scmp.eq.s32.totalorder %s74, 1
      %p213 = por %p211, %p212
      %p214 = scmp.ne.s32.totalorder %s205, %s206
      %p215 = scmp.eq.s32.totalorder %s74, 0
      %p216 = por %p214, %p215
      %p217 = scmp.ne.s32.totalorder %s205, %s206
      %p218 = scmp.eq.s32.totalorder %s75, 1
      %p219 = por %p217, %p218
      %p221 = scmp.ne.s32.totalorder %s206, %s220
      %p222 = scmp.eq.s32.totalorder %s75, 0
      %p223 = por %p221, %p222
      %s225 = sadd.s32 %s224, 1
      %p228 = scmp.eq.s32.totalorder %s69, 1
      %p229 = scmp.ne.s32.totalorder %s224, %s226
      %p230 = scmp.eq.s32.totalorder %s69, 0
      %p231 = por %p229, %p230
      %p232 = scmp.ne.s32.totalorder %s224, %s226
      %p233 = scmp.eq.s32.totalorder %s74, 1
      %p234 = por %p232, %p233
      %p235 = scmp.ne.s32.totalorder %s226, %s227
      %p236 = scmp.eq.s32.totalorder %s74, 0
      %p237 = por %p235, %p236
      %p238 = scmp.ne.s32.totalorder %s226, %s227
      %p239 = scmp.eq.s32.totalorder %s75, 1
      %p240 = por %p238, %p239
      %p242 = scmp.ne.s32.totalorder %s227, %s241
      %p243 = scmp.eq.s32.totalorder %s75, 0
      %p244 = por %p242, %p243
      %s246 = sadd.s32 %s245, 1
      %p249 = scmp.eq.s32.totalorder %s69, 1
      %p250 = scmp.ne.s32.totalorder %s245, %s247
      %p251 = scmp.eq.s32.totalorder %s69, 0
      %p252 = por %p250, %p251
      %p253 = scmp.ne.s32.totalorder %s245, %s247
      %p254 = scmp.eq.s32.totalorder %s74, 1
      %p255 = por %p253, %p254
      %p256 = scmp.ne.s32.totalorder %s247, %s248
      %p257 = scmp.eq.s32.totalorder %s74, 0
      %p258 = por %p256, %p257
      %p259 = scmp.ne.s32.totalorder %s247, %s248
      %p260 = scmp.eq.s32.totalorder %s75, 1
      %p261 = por %p259, %p260
      %p263 = scmp.ne.s32.totalorder %s248, %s262
      %p264 = scmp.eq.s32.totalorder %s75, 0
      %p265 = por %p263, %p264
      %s267 = sadd.s32 %s266, 1
      %p270 = scmp.eq.s32.totalorder %s69, 1
      %p271 = scmp.ne.s32.totalorder %s266, %s268
      %p272 = scmp.eq.s32.totalorder %s69, 0
      %p273 = por %p271, %p272
      %p274 = scmp.ne.s32.totalorder %s266, %s268
      %p275 = scmp.eq.s32.totalorder %s74, 1
      %p276 = por %p274, %p275
      %p277 = scmp.ne.s32.totalorder %s268, %s269
      %p278 = scmp.eq.s32.totalorder %s74, 0
      %p279 = por %p277, %p278
      %p280 = scmp.ne.s32.totalorder %s268, %s269
      %p281 = scmp.eq.s32.totalorder %s75, 1
      %p282 = por %p280, %p281
      %p284 = scmp.ne.s32.totalorder %s269, %s283
      %p285 = scmp.eq.s32.totalorder %s75, 0
      %p286 = por %p284, %p285
      %s288 = sadd.s32 %s287, 1
      %p291 = scmp.eq.s32.totalorder %s69, 1
      %p292 = scmp.ne.s32.totalorder %s287, %s289
      %p293 = scmp.eq.s32.totalorder %s69, 0
      %p294 = por %p292, %p293
      %p295 = scmp.ne.s32.totalorder %s287, %s289
      %p296 = scmp.eq.s32.totalorder %s74, 1
      %p297 = por %p295, %p296
      %p298 = scmp.ne.s32.totalorder %s289, %s290
      %p299 = scmp.eq.s32.totalorder %s74, 0
      %p300 = por %p298, %p299
      %p301 = scmp.ne.s32.totalorder %s289, %s290
      %p302 = scmp.eq.s32.totalorder %s75, 1
      %p303 = por %p301, %p302
      %p305 = scmp.ne.s32.totalorder %s290, %s304
      %p306 = scmp.eq.s32.totalorder %s75, 0
      %p307 = por %p305, %p306
      %s309 = sadd.s32 %s308, 1
      %p312 = scmp.eq.s32.totalorder %s69, 1
      %p313 = scmp.ne.s32.totalorder %s308, %s310
      %p314 = scmp.eq.s32.totalorder %s69, 0
      %p315 = por %p313, %p314
      %p316 = scmp.ne.s32.totalorder %s308, %s310
      %p317 = scmp.eq.s32.totalorder %s74, 1
      %p318 = por %p316, %p317
      %p319 = scmp.ne.s32.totalorder %s310, %s311
      %p320 = scmp.eq.s32.totalorder %s74, 0
      %p321 = por %p319, %p320
      %p322 = scmp.ne.s32.totalorder %s310, %s311
      %p323 = scmp.eq.s32.totalorder %s75, 1
      %p324 = por %p322, %p323
      %p326 = scmp.ne.s32.totalorder %s311, %s325
      %p327 = scmp.eq.s32.totalorder %s75, 0
      %p328 = por %p326, %p327
      %s330 = sadd.s32 %s329, 1
      %p333 = scmp.eq.s32.totalorder %s69, 1
      %p334 = scmp.ne.s32.totalorder %s329, %s331
      %p335 = scmp.eq.s32.totalorder %s69, 0
      %p336 = por %p334, %p335
      %p337 = scmp.ne.s32.totalorder %s329, %s331
      %p338 = scmp.eq.s32.totalorder %s74, 1
      %p339 = por %p337, %p338
      %p340 = scmp.ne.s32.totalorder %s331, %s332
      %p341 = scmp.eq.s32.totalorder %s74, 0
      %p342 = por %p340, %p341
      %p343 = scmp.ne.s32.totalorder %s331, %s332
      %p344 = scmp.eq.s32.totalorder %s75, 1
      %p345 = por %p343, %p344
      %p347 = scmp.ne.s32.totalorder %s332, %s346
      %p348 = scmp.eq.s32.totalorder %s75, 0
      %p349 = por %p347, %p348
      %s351 = sadd.s32 %s350, 1
      %p354 = scmp.eq.s32.totalorder %s69, 1
      %p355 = scmp.ne.s32.totalorder %s350, %s352
      %p356 = scmp.eq.s32.totalorder %s69, 0
      %p357 = por %p355, %p356
      %p358 = scmp.ne.s32.totalorder %s350, %s352
      %p359 = scmp.eq.s32.totalorder %s74, 1
      %p360 = por %p358, %p359
      %p361 = scmp.ne.s32.totalorder %s352, %s353
      %p362 = scmp.eq.s32.totalorder %s74, 0
      %p363 = por %p361, %p362
      %p364 = scmp.ne.s32.totalorder %s352, %s353
      %p365 = scmp.eq.s32.totalorder %s75, 1
      %p366 = por %p364, %p365
      %p368 = scmp.ne.s32.totalorder %s353, %s367
      %p369 = scmp.eq.s32.totalorder %s75, 0
      %p370 = por %p368, %p369
      %s372 = sadd.s32 %s371, 1
      %p375 = scmp.eq.s32.totalorder %s69, 1
      %p376 = scmp.ne.s32.totalorder %s371, %s373
      %p377 = scmp.eq.s32.totalorder %s69, 0
      %p378 = por %p376, %p377
      %p379 = scmp.ne.s32.totalorder %s371, %s373
      %p380 = scmp.eq.s32.totalorder %s74, 1
      %p381 = por %p379, %p380
      %p382 = scmp.ne.s32.totalorder %s373, %s374
      %p383 = scmp.eq.s32.totalorder %s74, 0
      %p384 = por %p382, %p383
      %p385 = scmp.ne.s32.totalorder %s373, %s374
      %p386 = scmp.eq.s32.totalorder %s75, 1
      %p387 = por %p385, %p386
      %p389 = scmp.ne.s32.totalorder %s374, %s388
      %p390 = scmp.eq.s32.totalorder %s75, 0
      %p391 = por %p389, %p390
      %s392 = ssub.s32 %s69, %s76
      %p393 = scmp.eq.s32.totalorder %s392, 0
      %s395 = sadd.s32 %s394, 1
      %s396 = scalar_select %p393, %s394, %s395
      %p399 = pneg %p393
      %p400 = scmp.eq.s32.totalorder %s69, 1
      %p401 = por %p399, %p400
      %p402 = scmp.ne.s32.totalorder %s394, %s397
      %p403 = scmp.eq.s32.totalorder %s69, 0
      %p404 = por %p402, %p403
      %p405 = scmp.ne.s32.totalorder %s394, %s397
      %p406 = scmp.eq.s32.totalorder %s74, 1
      %p407 = por %p405, %p406
      %p408 = scmp.ne.s32.totalorder %s397, %s398
      %p409 = scmp.eq.s32.totalorder %s74, 0
      %p410 = por %p408, %p409
      %p411 = scmp.ne.s32.totalorder %s397, %s398
      %p412 = scmp.eq.s32.totalorder %s75, 1
      %p413 = por %p411, %p412
      %p415 = scmp.ne.s32.totalorder %s398, %s414
      %p416 = scmp.eq.s32.totalorder %s75, 0
      %p417 = por %p415, %p416
      %s418 = ssub.s32 %s69, %s76
      %p419 = scmp.eq.s32.totalorder %s418, 0
      %s421 = sadd.s32 %s420, 1
      %s422 = scalar_select %p419, %s420, %s421
      %p425 = pneg %p419
      %p426 = scmp.eq.s32.totalorder %s69, 1
      %p427 = por %p425, %p426
      %p428 = scmp.ne.s32.totalorder %s420, %s423
      %p429 = scmp.eq.s32.totalorder %s69, 0
      %p430 = por %p428, %p429
      %p431 = scmp.ne.s32.totalorder %s420, %s423
      %p432 = scmp.eq.s32.totalorder %s74, 1
      %p433 = por %p431, %p432
      %p434 = scmp.ne.s32.totalorder %s423, %s424
      %p435 = scmp.eq.s32.totalorder %s74, 0
      %p436 = por %p434, %p435
      %p437 = scmp.ne.s32.totalorder %s423, %s424
      %p438 = scmp.eq.s32.totalorder %s75, 1
      %p439 = por %p437, %p438
      %p441 = scmp.ne.s32.totalorder %s424, %s440
      %p442 = scmp.eq.s32.totalorder %s75, 0
      %p443 = por %p441, %p442
      %s444 = ssub.s32 %s69, %s76
      %p445 = scmp.eq.s32.totalorder %s444, 0
      %s447 = sadd.s32 %s446, 1
      %s448 = scalar_select %p445, %s446, %s447
      %p451 = pneg %p445
      %p452 = scmp.eq.s32.totalorder %s69, 1
      %p453 = por %p451, %p452
      %p454 = scmp.ne.s32.totalorder %s446, %s449
      %p455 = scmp.eq.s32.totalorder %s69, 0
      %p456 = por %p454, %p455
      %p457 = scmp.ne.s32.totalorder %s446, %s449
      %p458 = scmp.eq.s32.totalorder %s74, 1
      %p459 = por %p457, %p458
      %p460 = scmp.ne.s32.totalorder %s449, %s450
      %p461 = scmp.eq.s32.totalorder %s74, 0
      %p462 = por %p460, %p461
      %p463 = scmp.ne.s32.totalorder %s449, %s450
      %p464 = scmp.eq.s32.totalorder %s75, 1
      %p465 = por %p463, %p464
      %p467 = scmp.ne.s32.totalorder %s450, %s466
      %p468 = scmp.eq.s32.totalorder %s75, 0
      %p469 = por %p467, %p468
      %s470 = ssub.s32 %s69, %s76
      %p471 = scmp.eq.s32.totalorder %s470, 0
      %s473 = sadd.s32 %s472, 1
      %s474 = scalar_select %p471, %s472, %s473
      %p477 = pneg %p471
      %p478 = scmp.eq.s32.totalorder %s69, 1
      %p479 = por %p477, %p478
      %p480 = scmp.ne.s32.totalorder %s472, %s475
      %p481 = scmp.eq.s32.totalorder %s69, 0
      %p482 = por %p480, %p481
      %p483 = scmp.ne.s32.totalorder %s472, %s475
      %p484 = scmp.eq.s32.totalorder %s74, 1
      %p485 = por %p483, %p484
      %p486 = scmp.ne.s32.totalorder %s475, %s476
      %p487 = scmp.eq.s32.totalorder %s74, 0
      %p488 = por %p486, %p487
      %p489 = scmp.ne.s32.totalorder %s475, %s476
      %p490 = scmp.eq.s32.totalorder %s75, 1
      %p491 = por %p489, %p490
      %p493 = scmp.ne.s32.totalorder %s476, %s492
      %p494 = scmp.eq.s32.totalorder %s75, 0
      %p495 = por %p493, %p494
      %s496 = ssub.s32 %s69, %s76
      %p497 = scmp.eq.s32.totalorder %s496, 0
      %s499 = sadd.s32 %s498, 1
      %s500 = scalar_select %p497, %s498, %s499
      %p503 = pneg %p497
      %p504 = scmp.eq.s32.totalorder %s69, 1
      %p505 = por %p503, %p504
      %p506 = scmp.ne.s32.totalorder %s498, %s501
      %p507 = scmp.eq.s32.totalorder %s69, 0
      %p508 = por %p506, %p507
      %p509 = scmp.ne.s32.totalorder %s498, %s501
      %p510 = scmp.eq.s32.totalorder %s74, 1
      %p511 = por %p509, %p510
      %p512 = scmp.ne.s32.totalorder %s501, %s502
      %p513 = scmp.eq.s32.totalorder %s74, 0
      %p514 = por %p512, %p513
      %p515 = scmp.ne.s32.totalorder %s501, %s502
      %p516 = scmp.eq.s32.totalorder %s75, 1
      %p517 = por %p515, %p516
      %p519 = scmp.ne.s32.totalorder %s502, %s518
      %p520 = scmp.eq.s32.totalorder %s75, 0
      %p521 = por %p519, %p520
      %s522 = ssub.s32 %s69, %s76
      %p523 = scmp.eq.s32.totalorder %s522, 0
      %s525 = sadd.s32 %s524, 1
      %s526 = scalar_select %p523, %s524, %s525
      %p529 = pneg %p523
      %p530 = scmp.eq.s32.totalorder %s69, 1
      %p531 = por %p529, %p530
      %p532 = scmp.ne.s32.totalorder %s524, %s527
      %p533 = scmp.eq.s32.totalorder %s69, 0
      %p534 = por %p532, %p533
      %p535 = scmp.ne.s32.totalorder %s524, %s527
      %p536 = scmp.eq.s32.totalorder %s74, 1
      %p537 = por %p535, %p536
      %p538 = scmp.ne.s32.totalorder %s527, %s528
      %p539 = scmp.eq.s32.totalorder %s74, 0
      %p540 = por %p538, %p539
      %p541 = scmp.ne.s32.totalorder %s527, %s528
      %p542 = scmp.eq.s32.totalorder %s75, 1
      %p543 = por %p541, %p542
      %p545 = scmp.ne.s32.totalorder %s528, %s544
      %p546 = scmp.eq.s32.totalorder %s75, 0
      %p547 = por %p545, %p546
      %s548 = ssub.s32 %s69, %s76
      %p549 = scmp.eq.s32.totalorder %s548, 0
      %s551 = sadd.s32 %s550, 1
      %s552 = scalar_select %p549, %s550, %s551
      %p555 = pneg %p549
      %p556 = scmp.eq.s32.totalorder %s69, 1
      %p557 = por %p555, %p556
      %p558 = scmp.ne.s32.totalorder %s550, %s553
      %p559 = scmp.eq.s32.totalorder %s69, 0
      %p560 = por %p558, %p559
      %p561 = scmp.ne.s32.totalorder %s550, %s553
      %p562 = scmp.eq.s32.totalorder %s74, 1
      %p563 = por %p561, %p562
      %p564 = scmp.ne.s32.totalorder %s553, %s554
      %p565 = scmp.eq.s32.totalorder %s74, 0
      %p566 = por %p564, %p565
      %p567 = scmp.ne.s32.totalorder %s553, %s554
      %p568 = scmp.eq.s32.totalorder %s75, 1
      %p569 = por %p567, %p568
      %p571 = scmp.ne.s32.totalorder %s554, %s570
      %p572 = scmp.eq.s32.totalorder %s75, 0
      %p573 = por %p571, %p572
      %s574 = ssub.s32 %s69, %s76
      %p575 = scmp.eq.s32.totalorder %s574, 0
      %s577 = sadd.s32 %s576, 1
      %s578 = scalar_select %p575, %s576, %s577
      %p581 = pneg %p575
      %p582 = scmp.eq.s32.totalorder %s69, 1
      %p583 = por %p581, %p582
      %p584 = scmp.ne.s32.totalorder %s576, %s579
      %p585 = scmp.eq.s32.totalorder %s69, 0
      %p586 = por %p584, %p585
      %p587 = scmp.ne.s32.totalorder %s576, %s579
      %p588 = scmp.eq.s32.totalorder %s74, 1
      %p589 = por %p587, %p588
      %p590 = scmp.ne.s32.totalorder %s579, %s580
      %p591 = scmp.eq.s32.totalorder %s74, 0
      %p592 = por %p590, %p591
      %p593 = scmp.ne.s32.totalorder %s579, %s580
      %p594 = scmp.eq.s32.totalorder %s75, 1
      %p595 = por %p593, %p594
      %p597 = scmp.ne.s32.totalorder %s580, %s596
      %p598 = scmp.eq.s32.totalorder %s75, 0
      %p599 = por %p597, %p598
      %s600 = ssub.s32 %s69, %s76
      %p601 = scmp.eq.s32.totalorder %s600, 0
      %s603 = sadd.s32 %s602, 1
      %s604 = scalar_select %p601, %s602, %s603
      %p607 = pneg %p601
      %p608 = scmp.eq.s32.totalorder %s69, 1
      %p609 = por %p607, %p608
      %p610 = scmp.ne.s32.totalorder %s602, %s605
      %p611 = scmp.eq.s32.totalorder %s69, 0
      %p612 = por %p610, %p611
      %p613 = scmp.ne.s32.totalorder %s602, %s605
      %p614 = scmp.eq.s32.totalorder %s74, 1
      %p615 = por %p613, %p614
      %p616 = scmp.ne.s32.totalorder %s605, %s606
      %p617 = scmp.eq.s32.totalorder %s74, 0
      %p618 = por %p616, %p617
      %p619 = scmp.ne.s32.totalorder %s605, %s606
      %p620 = scmp.eq.s32.totalorder %s75, 1
      %p621 = por %p619, %p620
      %p623 = scmp.ne.s32.totalorder %s606, %s622
      %p624 = scmp.eq.s32.totalorder %s75, 0
      %p625 = por %p623, %p624
      %s626 = ssub.s32 %s69, %s76
      %p627 = scmp.eq.s32.totalorder %s626, 0
      %s629 = sadd.s32 %s628, 1
      %s630 = scalar_select %p627, %s628, %s629
      %p633 = pneg %p627
      %p634 = scmp.eq.s32.totalorder %s69, 1
      %p635 = por %p633, %p634
      %p636 = scmp.ne.s32.totalorder %s628, %s631
      %p637 = scmp.eq.s32.totalorder %s69, 0
      %p638 = por %p636, %p637
      %p639 = scmp.ne.s32.totalorder %s628, %s631
      %p640 = scmp.eq.s32.totalorder %s74, 1
      %p641 = por %p639, %p640
      %p642 = scmp.ne.s32.totalorder %s631, %s632
      %p643 = scmp.eq.s32.totalorder %s74, 0
      %p644 = por %p642, %p643
      %p645 = scmp.ne.s32.totalorder %s631, %s632
      %p646 = scmp.eq.s32.totalorder %s75, 1
      %p647 = por %p645, %p646
      %p649 = scmp.ne.s32.totalorder %s632, %s648
      %p650 = scmp.eq.s32.totalorder %s75, 0
      %p651 = por %p649, %p650
      %s652 = ssub.s32 %s69, %s76
      %p653 = scmp.eq.s32.totalorder %s652, 0
      %s655 = sadd.s32 %s654, 1
      %s656 = scalar_select %p653, %s654, %s655
      %p659 = pneg %p653
      %p660 = scmp.eq.s32.totalorder %s69, 1
      %p661 = por %p659, %p660
      %p662 = scmp.ne.s32.totalorder %s654, %s657
      %p663 = scmp.eq.s32.totalorder %s69, 0
      %p664 = por %p662, %p663
      %p665 = scmp.ne.s32.totalorder %s654, %s657
      %p666 = scmp.eq.s32.totalorder %s74, 1
      %p667 = por %p665, %p666
      %p668 = scmp.ne.s32.totalorder %s657, %s658
      %p669 = scmp.eq.s32.totalorder %s74, 0
      %p670 = por %p668, %p669
      %p671 = scmp.ne.s32.totalorder %s657, %s658
      %p672 = scmp.eq.s32.totalorder %s75, 1
      %p673 = por %p671, %p672
      %p675 = scmp.ne.s32.totalorder %s658, %s674
      %p676 = scmp.eq.s32.totalorder %s75, 0
      %p677 = por %p675, %p676
      %s678 = ssub.s32 %s69, %s76
      %p679 = scmp.eq.s32.totalorder %s678, 0
      %s681 = sadd.s32 %s680, 1
      %s682 = scalar_select %p679, %s680, %s681
      %p685 = pneg %p679
      %p686 = scmp.eq.s32.totalorder %s69, 1
      %p687 = por %p685, %p686
      %p688 = scmp.ne.s32.totalorder %s680, %s683
      %p689 = scmp.eq.s32.totalorder %s69, 0
      %p690 = por %p688, %p689
      %p691 = scmp.ne.s32.totalorder %s680, %s683
      %p692 = scmp.eq.s32.totalorder %s74, 1
      %p693 = por %p691, %p692
      %p694 = scmp.ne.s32.totalorder %s683, %s684
      %p695 = scmp.eq.s32.totalorder %s74, 0
      %p696 = por %p694, %p695
      %p697 = scmp.ne.s32.totalorder %s683, %s684
      %p698 = scmp.eq.s32.totalorder %s75, 1
      %p699 = por %p697, %p698
      %p701 = scmp.ne.s32.totalorder %s684, %s700
      %p702 = scmp.eq.s32.totalorder %s75, 0
      %p703 = por %p701, %p702
      %s705 = sadd.s32 %s704, 1
      %p708 = scmp.eq.s32.totalorder %s69, 1
      %p709 = scmp.ne.s32.totalorder %s704, %s706
      %p710 = scmp.eq.s32.totalorder %s69, 0
      %p711 = por %p709, %p710
      %p712 = scmp.ne.s32.totalorder %s704, %s706
      %p713 = scmp.eq.s32.totalorder %s74, 1
      %p714 = por %p712, %p713
      %p715 = scmp.ne.s32.totalorder %s706, %s707
      %p716 = scmp.eq.s32.totalorder %s74, 0
      %p717 = por %p715, %p716
      %p718 = scmp.ne.s32.totalorder %s706, %s707
      %p719 = scmp.eq.s32.totalorder %s75, 1
      %p720 = por %p718, %p719
      %p722 = scmp.ne.s32.totalorder %s707, %s721
      %p723 = scmp.eq.s32.totalorder %s75, 0
      %p724 = por %p722, %p723
      %s726 = sadd.s32 %s725, 1
      %p729 = scmp.eq.s32.totalorder %s69, 1
      %p730 = scmp.ne.s32.totalorder %s725, %s727
      %p731 = scmp.eq.s32.totalorder %s69, 0
      %p732 = por %p730, %p731
      %p733 = scmp.ne.s32.totalorder %s725, %s727
      %p734 = scmp.eq.s32.totalorder %s74, 1
      %p735 = por %p733, %p734
      %p736 = scmp.ne.s32.totalorder %s727, %s728
      %p737 = scmp.eq.s32.totalorder %s74, 0
      %p738 = por %p736, %p737
      %p739 = scmp.ne.s32.totalorder %s727, %s728
      %p740 = scmp.eq.s32.totalorder %s75, 1
      %p741 = por %p739, %p740
      %p743 = scmp.ne.s32.totalorder %s728, %s742
      %p744 = scmp.eq.s32.totalorder %s75, 0
      %p745 = por %p743, %p744
      %s747 = sadd.s32 %s746, 1
      %p750 = scmp.eq.s32.totalorder %s69, 1
      %p751 = scmp.ne.s32.totalorder %s746, %s748
      %p752 = scmp.eq.s32.totalorder %s69, 0
      %p753 = por %p751, %p752
      %p754 = scmp.ne.s32.totalorder %s746, %s748
      %p755 = scmp.eq.s32.totalorder %s74, 1
      %p756 = por %p754, %p755
      %p757 = scmp.ne.s32.totalorder %s748, %s749
      %p758 = scmp.eq.s32.totalorder %s74, 0
      %p759 = por %p757, %p758
      %p760 = scmp.ne.s32.totalorder %s748, %s749
      %p761 = scmp.eq.s32.totalorder %s75, 1
      %p762 = por %p760, %p761
      %p764 = scmp.ne.s32.totalorder %s749, %s763
      %p765 = scmp.eq.s32.totalorder %s75, 0
      %p766 = por %p764, %p765
      %p767 = scmp.le.s32.totalorder 1, %s69
      %p768 = scmp.lt.s32.totalorder %s69, 3
      %p769 = pnand %p767, %p768
      %p770 = pneg %p769
      // Predicated region
      $region9: #{sbf_transformer_forward.1} parent=5 // pred_check
        _
      $region10: #{sbf_transformer_forward.1} parent=5 // pred_check_branch
        %772 = sbr.rel (%p769) target = $region12
      $region11: #{sbf_transformer_forward.1} parent=5 // pred_region
        %s773 = ssub.s32 %s69, 1
        // Predicated region
        $region13: #{sbf_transformer_forward.1} parent=11 // pred_check
          %p774 = pneg %p90
        $region14: #{sbf_transformer_forward.1} parent=11 // pred_check_branch
          %776 = sbr.rel (%p774) target = $region16
        $region15: #{sbf_transformer_forward.1} parent=11 // pred_region
          _
        $region16: #{sbf_transformer_forward.1} parent=11 // pred_fallthru
          _
        // Predicated region
        $region17: #{sbf_transformer_forward.1} parent=11 // pred_check
          %p777 = pneg %p111
        $region18: #{sbf_transformer_forward.1} parent=11 // pred_check_branch
          %779 = sbr.rel (%p777) target = $region20
        $region19: #{sbf_transformer_forward.1} parent=11 // pred_region
          %781 = vsyncadd [#allocation8], 0
          %s782 = sshll.u32 %s3, 4
          %s783 = int_to_ptr.hbm [resolvable:$true] %s782
          %s784 = sshll.u32 [#allocation7], 4
          %s785 = int_to_ptr.vmem [resolvable:$true] %s784
          %790 = dma.hbm_to_vmem [thread:$0]  %s783, 512, %s785, [#allocation8], 128, 128, 8
        $region20: #{sbf_transformer_forward.1} parent=11 // pred_fallthru
          _
        // Predicated region
        $region21: #{sbf_transformer_forward.1} parent=11 // pred_check
          %p791 = pneg %p132
        $region22: #{sbf_transformer_forward.1} parent=11 // pred_check_branch
          %793 = sbr.rel (%p791) target = $region24
        $region23: #{sbf_transformer_forward.1} parent=11 // pred_region
          %795 = vsyncadd [#allocation10], 0
          %s796 = sshll.u32 %s5, 4
          %s797 = int_to_ptr.hbm [resolvable:$true] %s796
          %s798 = sshll.u32 [#allocation9], 4
          %s799 = int_to_ptr.vmem [resolvable:$true] %s798
          %804 = dma.hbm_to_vmem [thread:$0]  %s797, 512, %s799, [#allocation10], 128, 128, 8
        $region24: #{sbf_transformer_forward.1} parent=11 // pred_fallthru
          _
        // Predicated region
        $region25: #{sbf_transformer_forward.1} parent=11 // pred_check
          %p805 = pneg %p153
        $region26: #{sbf_transformer_forward.1} parent=11 // pred_check_branch
          %807 = sbr.rel (%p805) target = $region28
        $region27: #{sbf_transformer_forward.1} parent=11 // pred_region
          _
        $region28: #{sbf_transformer_forward.1} parent=11 // pred_fallthru
          _
        // Predicated region
        $region29: #{sbf_transformer_forward.1} parent=11 // pred_check
          %p808 = pneg %p174
        $region30: #{sbf_transformer_forward.1} parent=11 // pred_check_branch
          %810 = sbr.rel (%p808) target = $region32
        $region31: #{sbf_transformer_forward.1} parent=11 // pred_region
          _
        $region32: #{sbf_transformer_forward.1} parent=11 // pred_fallthru
          _
        // Predicated region
        $region33: #{sbf_transformer_forward.1} parent=11 // pred_check
          %p811 = pneg %p195
        $region34: #{sbf_transformer_forward.1} parent=11 // pred_check_branch
          %813 = sbr.rel (%p811) target = $region36
        $region35: #{sbf_transformer_forward.1} parent=11 // pred_region
          _
        $region36: #{sbf_transformer_forward.1} parent=11 // pred_fallthru
          _
        // Predicated region
        $region37: #{sbf_transformer_forward.1} parent=11 // pred_check
          %p814 = pneg %p216
        $region38: #{sbf_transformer_forward.1} parent=11 // pred_check_branch
          %816 = sbr.rel (%p814) target = $region40
        $region39: #{sbf_transformer_forward.1} parent=11 // pred_region
          _
        $region40: #{sbf_transformer_forward.1} parent=11 // pred_fallthru
          _
        // Predicated region
        $region41: #{sbf_transformer_forward.1} parent=11 // pred_check
          %p817 = pneg %p237
        $region42: #{sbf_transformer_forward.1} parent=11 // pred_check_branch
          %819 = sbr.rel (%p817) target = $region44
        $region43: #{sbf_transformer_forward.1} parent=11 // pred_region
          _
        $region44: #{sbf_transformer_forward.1} parent=11 // pred_fallthru
          _
        // Predicated region
        $region45: #{sbf_transformer_forward.1} parent=11 // pred_check
          %p820 = pneg %p258
        $region46: #{sbf_transformer_forward.1} parent=11 // pred_check_branch
          %822 = sbr.rel (%p820) target = $region48
        $region47: #{sbf_transformer_forward.1} parent=11 // pred_region
          _
        $region48: #{sbf_transformer_forward.1} parent=11 // pred_fallthru
          _
        // Predicated region
        $region49: #{sbf_transformer_forward.1} parent=11 // pred_check
          %p823 = pneg %p279
        $region50: #{sbf_transformer_forward.1} parent=11 // pred_check_branch
          %825 = sbr.rel (%p823) target = $region52
        $region51: #{sbf_transformer_forward.1} parent=11 // pred_region
          _
        $region52: #{sbf_transformer_forward.1} parent=11 // pred_fallthru
          _
        // Predicated region
        $region53: #{sbf_transformer_forward.1} parent=11 // pred_check
          %p826 = pneg %p300
        $region54: #{sbf_transformer_forward.1} parent=11 // pred_check_branch
          %828 = sbr.rel (%p826) target = $region56
        $region55: #{sbf_transformer_forward.1} parent=11 // pred_region
          _
        $region56: #{sbf_transformer_forward.1} parent=11 // pred_fallthru
          _
        // Predicated region
        $region57: #{sbf_transformer_forward.1} parent=11 // pred_check
          %p829 = pneg %p321
        $region58: #{sbf_transformer_forward.1} parent=11 // pred_check_branch
          %831 = sbr.rel (%p829) target = $region60
        $region59: #{sbf_transformer_forward.1} parent=11 // pred_region
          %833 = vsyncadd [#allocation10], 0
          %s834 = sshll.u32 %s23, 4
          %s835 = int_to_ptr.hbm [resolvable:$true] %s834
          %s836 = sshll.u32 [#allocation11], 4
          %s837 = int_to_ptr.vmem [resolvable:$true] %s836
          %842 = dma.hbm_to_vmem [thread:$0]  %s835, 512, %s837, [#allocation10], 128, 128, 8
        $region60: #{sbf_transformer_forward.1} parent=11 // pred_fallthru
          _
        // Predicated region
        $region61: #{sbf_transformer_forward.1} parent=11 // pred_check
          %p843 = pneg %p342
        $region62: #{sbf_transformer_forward.1} parent=11 // pred_check_branch
          %845 = sbr.rel (%p843) target = $region64
        $region63: #{sbf_transformer_forward.1} parent=11 // pred_region
          %847 = vsyncadd [#allocation13], 0
          %s849 = sshll.u32 %s25, 4
          %s850 = int_to_ptr.hbm [resolvable:$true] %s849
          %s851 = sshll.u32 [#allocation12], 4
          %s852 = int_to_ptr.vmem [resolvable:$true] %s851
          %854 = dma.hbm_to_vmem [thread:$0]  %s850, 16, %s852, [#allocation13]
        $region64: #{sbf_transformer_forward.1} parent=11 // pred_fallthru
          _
        // Predicated region
        $region65: #{sbf_transformer_forward.1} parent=11 // pred_check
          %p855 = pneg %p363
        $region66: #{sbf_transformer_forward.1} parent=11 // pred_check_branch
          %857 = sbr.rel (%p855) target = $region68
        $region67: #{sbf_transformer_forward.1} parent=11 // pred_region
          %859 = vsyncadd [#allocation13], 0
          %s860 = sshll.u32 %s27, 4
          %s861 = int_to_ptr.hbm [resolvable:$true] %s860
          %s862 = sshll.u32 [#allocation14], 4
          %s863 = int_to_ptr.vmem [resolvable:$true] %s862
          %868 = dma.hbm_to_vmem [thread:$0]  %s861, 512, %s863, [#allocation13], 128, 128, 8
        $region68: #{sbf_transformer_forward.1} parent=11 // pred_fallthru
          _
        // Predicated region
        $region69: #{sbf_transformer_forward.1} parent=11 // pred_check
          %p869 = pneg %p384
        $region70: #{sbf_transformer_forward.1} parent=11 // pred_check_branch
          %871 = sbr.rel (%p869) target = $region72
        $region71: #{sbf_transformer_forward.1} parent=11 // pred_region
          %873 = vsyncadd [#allocation16], 0
          %s875 = sshll.u32 %s29, 4
          %s876 = int_to_ptr.hbm [resolvable:$true] %s875
          %s877 = sshll.u32 [#allocation15], 4
          %s878 = int_to_ptr.vmem [resolvable:$true] %s877
          %880 = dma.hbm_to_vmem [thread:$0]  %s876, 16, %s878, [#allocation16]
        $region72: #{sbf_transformer_forward.1} parent=11 // pred_fallthru
          _
        // Predicated region
        $region73: #{sbf_transformer_forward.1} parent=11 // pred_check
          %p881 = pneg %p717
        $region74: #{sbf_transformer_forward.1} parent=11 // pred_check_branch
          %883 = sbr.rel (%p881) target = $region76
        $region75: #{sbf_transformer_forward.1} parent=11 // pred_region
          _
        $region76: #{sbf_transformer_forward.1} parent=11 // pred_fallthru
          _
        // Predicated region
        $region77: #{sbf_transformer_forward.1} parent=11 // pred_check
          %p884 = pneg %p738
        $region78: #{sbf_transformer_forward.1} parent=11 // pred_check_branch
          %886 = sbr.rel (%p884) target = $region80
        $region79: #{sbf_transformer_forward.1} parent=11 // pred_region
          _
        $region80: #{sbf_transformer_forward.1} parent=11 // pred_fallthru
          _
      $region12: #{sbf_transformer_forward.1} parent=5 // pred_fallthru
        _
      %p887 = scmp.lt.s32.totalorder %s69, 2
      // Predicated region
      $region81: #{sbf_transformer_forward.1} parent=5 // pred_check
        %p888 = pneg %p887
      $region82: #{sbf_transformer_forward.1} parent=5 // pred_check_branch
        %890 = sbr.rel (%p888) target = $region84
      $region83: #{sbf_transformer_forward.1} parent=5 // pred_region
        // Predicated region
        $region85: #{sbf_transformer_forward.1} parent=83 // pred_check
          %p891 = pneg %p404
        $region86: #{sbf_transformer_forward.1} parent=83 // pred_check_branch
          %893 = sbr.rel (%p891) target = $region88
        $region87: #{sbf_transformer_forward.1} parent=83 // pred_region
          %p894 = scmp.lt.s32.totalorder %s69, 1
          %s895 = scalar_select %p894, %s69, 1
          %s896 = smul.addr %s895, 8
          %s897 = smul.addr %s896, 8
          %s898 = scalar_lea.vmem %s31, %s897
        $region88: #{sbf_transformer_forward.1} parent=83 // pred_fallthru
          _
        // Predicated region
        $region89: #{sbf_transformer_forward.1} parent=83 // pred_check
          %p899 = pneg %p430
        $region90: #{sbf_transformer_forward.1} parent=83 // pred_check_branch
          %901 = sbr.rel (%p899) target = $region92
        $region91: #{sbf_transformer_forward.1} parent=83 // pred_region
          %s902 = sand.u32 %s69, 1
          %s903 = scalar_lea.sflag [#allocation8], %s902
          %s904 = sand.u32 %s420, 1
          %s905 = smul.addr %s904, 16
          %s906 = scalar_lea.vmem [#allocation17], %s905
          %908 = vsyncadd %s903, 0
          %s909 = smul.addr %s69, 2
          %s910 = smul.addr %s909, 8
          %s911 = scalar_lea.hbm %s33, %s910
          %s913 = sshll.u32 %s911, 4
          %s914 = int_to_ptr.hbm [resolvable:$true] %s913
          %s915 = sshll.u32 %s906, 4
          %s916 = int_to_ptr.vmem [resolvable:$true] %s915
          %918 = dma.hbm_to_vmem [thread:$0]  %s914, 256, %s916, %s903
        $region92: #{sbf_transformer_forward.1} parent=83 // pred_fallthru
          _
        // Predicated region
        $region93: #{sbf_transformer_forward.1} parent=83 // pred_check
          %p919 = pneg %p456
        $region94: #{sbf_transformer_forward.1} parent=83 // pred_check_branch
          %921 = sbr.rel (%p919) target = $region96
        $region95: #{sbf_transformer_forward.1} parent=83 // pred_region
          %s922 = sand.u32 %s69, 1
          %s923 = scalar_lea.sflag [#allocation8], %s922
          %s924 = sand.u32 %s446, 1
          %s925 = smul.addr %s924, 2
          %s926 = scalar_lea.vmem [#allocation18], %s925
          %928 = vsyncadd %s923, 0
          %s929 = smul.addr %s69, 2
          %s930 = scalar_lea.hbm %s35, %s929
          %s932 = sshll.u32 %s930, 4
          %s933 = int_to_ptr.hbm [resolvable:$true] %s932
          %s934 = sshll.u32 %s926, 4
          %s935 = int_to_ptr.vmem [resolvable:$true] %s934
          %937 = dma.hbm_to_vmem [thread:$0]  %s933, 32, %s935, %s923
        $region96: #{sbf_transformer_forward.1} parent=83 // pred_fallthru
          _
        // Predicated region
        $region97: #{sbf_transformer_forward.1} parent=83 // pred_check
          %p938 = pneg %p482
        $region98: #{sbf_transformer_forward.1} parent=83 // pred_check_branch
          %940 = sbr.rel (%p938) target = $region100
        $region99: #{sbf_transformer_forward.1} parent=83 // pred_region
          %s941 = sand.u32 %s69, 1
          %s942 = scalar_lea.sflag [#allocation8], %s941
          %s943 = sand.u32 %s472, 1
          %s944 = smul.addr %s943, 32
          %s945 = scalar_lea.vmem [#allocation19], %s944
          %947 = vsyncadd %s942, 0
          %s948 = smul.addr %s69, 4
          %s949 = smul.addr %s948, 8
          %s950 = scalar_lea.hbm %s37, %s949
          %s951 = sshll.u32 %s950, 4
          %s952 = int_to_ptr.hbm [resolvable:$true] %s951
          %s953 = sshll.u32 %s945, 4
          %s954 = int_to_ptr.vmem [resolvable:$true] %s953
          %959 = dma.hbm_to_vmem [thread:$0]  %s952, 512, %s954, %s942, 128, 128, 8
        $region100: #{sbf_transformer_forward.1} parent=83 // pred_fallthru
          _
        // Predicated region
        $region101: #{sbf_transformer_forward.1} parent=83 // pred_check
          %p960 = pneg %p508
        $region102: #{sbf_transformer_forward.1} parent=83 // pred_check_branch
          %962 = sbr.rel (%p960) target = $region104
        $region103: #{sbf_transformer_forward.1} parent=83 // pred_region
          %s963 = sand.u32 %s69, 1
          %s964 = scalar_lea.sflag [#allocation8], %s963
          %s965 = sand.u32 %s498, 1
          %s966 = smul.addr %s965, 64
          %s967 = scalar_lea.vmem [#allocation20], %s966
          %969 = vsyncadd %s964, 0
          %s970 = smul.addr %s69, 8
          %s971 = smul.addr %s970, 8
          %s972 = scalar_lea.hbm %s39, %s971
          %s973 = sshll.u32 %s972, 4
          %s974 = int_to_ptr.hbm [resolvable:$true] %s973
          %s975 = sshll.u32 %s967, 4
          %s976 = int_to_ptr.vmem [resolvable:$true] %s975
          %981 = dma.hbm_to_vmem [thread:$0]  %s974, 1024, %s976, %s964, 128, 128, 8
        $region104: #{sbf_transformer_forward.1} parent=83 // pred_fallthru
          _
        // Predicated region
        $region105: #{sbf_transformer_forward.1} parent=83 // pred_check
          %p982 = pneg %p534
        $region106: #{sbf_transformer_forward.1} parent=83 // pred_check_branch
          %984 = sbr.rel (%p982) target = $region108
        $region107: #{sbf_transformer_forward.1} parent=83 // pred_region
          %s985 = sand.u32 %s69, 1
          %s986 = scalar_lea.sflag [#allocation8], %s985
          %s987 = sand.u32 %s524, 1
          %s988 = scalar_lea.vmem [#allocation21], %s987
          %990 = vsyncadd %s986, 0
          %s991 = scalar_lea.hbm %s41, %s69
          %s993 = sshll.u32 %s991, 4
          %s994 = int_to_ptr.hbm [resolvable:$true] %s993
          %s995 = sshll.u32 %s988, 4
          %s996 = int_to_ptr.vmem [resolvable:$true] %s995
          %998 = dma.hbm_to_vmem [thread:$0]  %s994, 16, %s996, %s986
        $region108: #{sbf_transformer_forward.1} parent=83 // pred_fallthru
          _
        // Predicated region
        $region109: #{sbf_transformer_forward.1} parent=83 // pred_check
          %p999 = pneg %p560
        $region110: #{sbf_transformer_forward.1} parent=83 // pred_check_branch
          %1001 = sbr.rel (%p999) target = $region112
        $region111: #{sbf_transformer_forward.1} parent=83 // pred_region
          %s1002 = sand.u32 %s69, 1
          %s1003 = scalar_lea.sflag [#allocation8], %s1002
          %s1004 = sand.u32 %s550, 1
          %s1005 = smul.addr %s1004, 32
          %s1006 = scalar_lea.vmem [#allocation22], %s1005
          %1008 = vsyncadd %s1003, 0
          %s1009 = smul.addr %s69, 4
          %s1010 = smul.addr %s1009, 8
          %s1011 = scalar_lea.hbm %s43, %s1010
          %s1012 = sshll.u32 %s1011, 4
          %s1013 = int_to_ptr.hbm [resolvable:$true] %s1012
          %s1014 = sshll.u32 %s1006, 4
          %s1015 = int_to_ptr.vmem [resolvable:$true] %s1014
          %1020 = dma.hbm_to_vmem [thread:$0]  %s1013, 512, %s1015, %s1003, 128, 128, 8
        $region112: #{sbf_transformer_forward.1} parent=83 // pred_fallthru
          _
        // Predicated region
        $region113: #{sbf_transformer_forward.1} parent=83 // pred_check
          %p1021 = pneg %p586
        $region114: #{sbf_transformer_forward.1} parent=83 // pred_check_branch
          %1023 = sbr.rel (%p1021) target = $region116
        $region115: #{sbf_transformer_forward.1} parent=83 // pred_region
          %s1024 = sand.u32 %s69, 1
          %s1025 = scalar_lea.sflag [#allocation8], %s1024
          %s1026 = sand.u32 %s576, 1
          %s1027 = scalar_lea.vmem [#allocation23], %s1026
          %1029 = vsyncadd %s1025, 0
          %s1030 = scalar_lea.hbm %s45, %s69
          %s1032 = sshll.u32 %s1030, 4
          %s1033 = int_to_ptr.hbm [resolvable:$true] %s1032
          %s1034 = sshll.u32 %s1027, 4
          %s1035 = int_to_ptr.vmem [resolvable:$true] %s1034
          %1037 = dma.hbm_to_vmem [thread:$0]  %s1033, 16, %s1035, %s1025
        $region116: #{sbf_transformer_forward.1} parent=83 // pred_fallthru
          _
        // Predicated region
        $region117: #{sbf_transformer_forward.1} parent=83 // pred_check
          %p1038 = pneg %p612
        $region118: #{sbf_transformer_forward.1} parent=83 // pred_check_branch
          %1040 = sbr.rel (%p1038) target = $region120
        $region119: #{sbf_transformer_forward.1} parent=83 // pred_region
          %s1041 = sand.u32 %s69, 1
          %s1042 = scalar_lea.sflag [#allocation8], %s1041
          %s1043 = sand.u32 %s602, 1
          %s1044 = smul.addr %s1043, 96
          %s1045 = scalar_lea.vmem [#allocation24], %s1044
          %1047 = vsyncadd %s1042, 0
          %s1048 = smul.addr %s69, 12
          %s1049 = smul.addr %s1048, 8
          %s1050 = scalar_lea.hbm %s47, %s1049
          %s1051 = sshll.u32 %s1050, 4
          %s1052 = int_to_ptr.hbm [resolvable:$true] %s1051
          %s1053 = sshll.u32 %s1045, 4
          %s1054 = int_to_ptr.vmem [resolvable:$true] %s1053
          %1059 = dma.hbm_to_vmem [thread:$0]  %s1052, 1536, %s1054, %s1042, 128, 128, 8
        $region120: #{sbf_transformer_forward.1} parent=83 // pred_fallthru
          _
        // Predicated region
        $region121: #{sbf_transformer_forward.1} parent=83 // pred_check
          %p1060 = pneg %p638
        $region122: #{sbf_transformer_forward.1} parent=83 // pred_check_branch
          %1062 = sbr.rel (%p1060) target = $region124
        $region123: #{sbf_transformer_forward.1} parent=83 // pred_region
          %s1063 = sand.u32 %s69, 1
          %s1064 = scalar_lea.sflag [#allocation8], %s1063
          %s1065 = sand.u32 %s628, 1
          %s1066 = smul.addr %s1065, 3
          %s1067 = scalar_lea.vmem [#allocation25], %s1066
          %1069 = vsyncadd %s1064, 0
          %s1070 = smul.addr %s69, 3
          %s1071 = scalar_lea.hbm %s49, %s1070
          %s1072 = sshll.u32 %s1071, 4
          %s1073 = int_to_ptr.hbm [resolvable:$true] %s1072
          %s1074 = sshll.u32 %s1067, 4
          %s1075 = int_to_ptr.vmem [resolvable:$true] %s1074
          %1080 = dma.hbm_to_vmem [thread:$0]  %s1073, 48, %s1075, %s1064, 16, 16, 1
        $region124: #{sbf_transformer_forward.1} parent=83 // pred_fallthru
          _
        // Predicated region
        $region125: #{sbf_transformer_forward.1} parent=83 // pred_check
          %p1081 = pneg %p664
        $region126: #{sbf_transformer_forward.1} parent=83 // pred_check_branch
          %1083 = sbr.rel (%p1081) target = $region128
        $region127: #{sbf_transformer_forward.1} parent=83 // pred_region
          %s1084 = sand.u32 %s69, 1
          %s1085 = scalar_lea.sflag [#allocation8], %s1084
          %s1086 = sand.u32 %s654, 1
          %s1087 = smul.addr %s1086, 96
          %s1088 = scalar_lea.vmem [#allocation26], %s1087
          %1090 = vsyncadd %s1085, 0
          %s1091 = smul.addr %s69, 12
          %s1092 = smul.addr %s1091, 8
          %s1093 = scalar_lea.hbm %s51, %s1092
          %s1094 = sshll.u32 %s1093, 4
          %s1095 = int_to_ptr.hbm [resolvable:$true] %s1094
          %s1096 = sshll.u32 %s1088, 4
          %s1097 = int_to_ptr.vmem [resolvable:$true] %s1096
          %1102 = dma.hbm_to_vmem [thread:$0]  %s1095, 1536, %s1097, %s1085, 128, 128, 8
        $region128: #{sbf_transformer_forward.1} parent=83 // pred_fallthru
          _
        // Predicated region
        $region129: #{sbf_transformer_forward.1} parent=83 // pred_check
          %p1103 = pneg %p690
        $region130: #{sbf_transformer_forward.1} parent=83 // pred_check_branch
          %1105 = sbr.rel (%p1103) target = $region132
        $region131: #{sbf_transformer_forward.1} parent=83 // pred_region
          %s1106 = sand.u32 %s69, 1
          %s1107 = scalar_lea.sflag [#allocation8], %s1106
          %s1108 = sand.u32 %s680, 1
          %s1109 = smul.addr %s1108, 3
          %s1110 = scalar_lea.vmem [#allocation27], %s1109
          %1112 = vsyncadd %s1107, 0
          %s1113 = smul.addr %s69, 3
          %s1114 = scalar_lea.hbm %s53, %s1113
          %s1115 = sshll.u32 %s1114, 4
          %s1116 = int_to_ptr.hbm [resolvable:$true] %s1115
          %s1117 = sshll.u32 %s1110, 4
          %s1118 = int_to_ptr.vmem [resolvable:$true] %s1117
          %1123 = dma.hbm_to_vmem [thread:$0]  %s1116, 48, %s1118, %s1107, 16, 16, 1
        $region132: #{sbf_transformer_forward.1} parent=83 // pred_fallthru
          _
      $region84: #{sbf_transformer_forward.1} parent=5 // pred_fallthru
        _
      %p1124 = scmp.le.s32.totalorder 1, %s69
      %p1125 = scmp.lt.s32.totalorder %s69, 3
      %p1126 = pnand %p1124, %p1125
      %p1127 = pneg %p1126
      // Predicated region
      $region133: #{sbf_transformer_forward.1} parent=5 // pred_check
        _
      $region134: #{sbf_transformer_forward.1} parent=5 // pred_check_branch
        %1129 = sbr.rel (%p1126) target = $region136
      $region135: #{sbf_transformer_forward.1} parent=5 // pred_region
        %s1130 = ssub.s32 %s69, 1
        // Predicated region
        $region137: #{sbf_transformer_forward.1} parent=135 // pred_check
          %p1131 = pneg %p111
        $region138: #{sbf_transformer_forward.1} parent=135 // pred_check_branch
          %1133 = sbr.rel (%p1131) target = $region140
        $region139: #{sbf_transformer_forward.1} parent=135 // pred_region
          %1135 = dma.done [#allocation8], 512
        $region140: #{sbf_transformer_forward.1} parent=135 // pred_fallthru
          _
        // Predicated region
        $region141: #{sbf_transformer_forward.1} parent=135 // pred_check
          %p1136 = pneg %p132
        $region142: #{sbf_transformer_forward.1} parent=135 // pred_check_branch
          %1138 = sbr.rel (%p1136) target = $region144
        $region143: #{sbf_transformer_forward.1} parent=135 // pred_region
          %1140 = dma.done [#allocation10], 512
        $region144: #{sbf_transformer_forward.1} parent=135 // pred_fallthru
          _
        // Predicated region
        $region145: #{sbf_transformer_forward.1} parent=135 // pred_check
          %p1141 = pneg %p321
        $region146: #{sbf_transformer_forward.1} parent=135 // pred_check_branch
          %1143 = sbr.rel (%p1141) target = $region148
        $region147: #{sbf_transformer_forward.1} parent=135 // pred_region
          %1145 = dma.done [#allocation10], 512
        $region148: #{sbf_transformer_forward.1} parent=135 // pred_fallthru
          _
        // Predicated region
        $region149: #{sbf_transformer_forward.1} parent=135 // pred_check
          %p1146 = pneg %p342
        $region150: #{sbf_transformer_forward.1} parent=135 // pred_check_branch
          %1148 = sbr.rel (%p1146) target = $region152
        $region151: #{sbf_transformer_forward.1} parent=135 // pred_region
          %1150 = dma.done [#allocation13], 16
        $region152: #{sbf_transformer_forward.1} parent=135 // pred_fallthru
          _
        // Predicated region
        $region153: #{sbf_transformer_forward.1} parent=135 // pred_check
          %p1151 = pneg %p363
        $region154: #{sbf_transformer_forward.1} parent=135 // pred_check_branch
          %1153 = sbr.rel (%p1151) target = $region156
        $region155: #{sbf_transformer_forward.1} parent=135 // pred_region
          %1155 = dma.done [#allocation13], 512
        $region156: #{sbf_transformer_forward.1} parent=135 // pred_fallthru
          _
        // Predicated region
        $region157: #{sbf_transformer_forward.1} parent=135 // pred_check
          %p1156 = pneg %p384
        $region158: #{sbf_transformer_forward.1} parent=135 // pred_check_branch
          %1158 = sbr.rel (%p1156) target = $region160
        $region159: #{sbf_transformer_forward.1} parent=135 // pred_region
          %1160 = dma.done [#allocation16], 16
        $region160: #{sbf_transformer_forward.1} parent=135 // pred_fallthru
          _
        %s1161 = sand.u32 %s74, 1
        %s1162 = scalar_lea.sflag [#allocation8], %s1161
        %s1163 = sand.u32 %s423, 1
        %s1164 = smul.addr %s1163, 16
        %s1165 = scalar_lea.vmem [#allocation17], %s1164
        // Predicated region
        $region161: #{sbf_transformer_forward.1} parent=135 // pred_check
          %p1166 = pneg %p436
        $region162: #{sbf_transformer_forward.1} parent=135 // pred_check_branch
          %1168 = sbr.rel (%p1166) target = $region164
        $region163: #{sbf_transformer_forward.1} parent=135 // pred_region
          %1170 = dma.done %s1162, 256
        $region164: #{sbf_transformer_forward.1} parent=135 // pred_fallthru
          _
        %s1171 = sand.u32 %s74, 1
        %s1172 = scalar_lea.sflag [#allocation8], %s1171
        %s1173 = sand.u32 %s449, 1
        %s1174 = smul.addr %s1173, 2
        %s1175 = scalar_lea.vmem [#allocation18], %s1174
        // Predicated region
        $region165: #{sbf_transformer_forward.1} parent=135 // pred_check
          %p1176 = pneg %p462
        $region166: #{sbf_transformer_forward.1} parent=135 // pred_check_branch
          %1178 = sbr.rel (%p1176) target = $region168
        $region167: #{sbf_transformer_forward.1} parent=135 // pred_region
          %1180 = dma.done %s1172, 32
        $region168: #{sbf_transformer_forward.1} parent=135 // pred_fallthru
          _
        %s1181 = sand.u32 %s74, 1
        %s1182 = scalar_lea.sflag [#allocation8], %s1181
        %s1183 = sand.u32 %s475, 1
        %s1184 = smul.addr %s1183, 32
        %s1185 = scalar_lea.vmem [#allocation19], %s1184
        // Predicated region
        $region169: #{sbf_transformer_forward.1} parent=135 // pred_check
          %p1186 = pneg %p488
        $region170: #{sbf_transformer_forward.1} parent=135 // pred_check_branch
          %1188 = sbr.rel (%p1186) target = $region172
        $region171: #{sbf_transformer_forward.1} parent=135 // pred_region
          %1190 = dma.done %s1182, 512
        $region172: #{sbf_transformer_forward.1} parent=135 // pred_fallthru
          _
        %s1191 = sand.u32 %s74, 1
        %s1192 = scalar_lea.sflag [#allocation8], %s1191
        %s1193 = sand.u32 %s501, 1
        %s1194 = smul.addr %s1193, 64
        %s1195 = scalar_lea.vmem [#allocation20], %s1194
        // Predicated region
        $region173: #{sbf_transformer_forward.1} parent=135 // pred_check
          %p1196 = pneg %p514
        $region174: #{sbf_transformer_forward.1} parent=135 // pred_check_branch
          %1198 = sbr.rel (%p1196) target = $region176
        $region175: #{sbf_transformer_forward.1} parent=135 // pred_region
          %1200 = dma.done %s1192, 1024
        $region176: #{sbf_transformer_forward.1} parent=135 // pred_fallthru
          _
        %s1201 = sand.u32 %s74, 1
        %s1202 = scalar_lea.sflag [#allocation8], %s1201
        %s1203 = sand.u32 %s527, 1
        %s1204 = scalar_lea.vmem [#allocation21], %s1203
        // Predicated region
        $region177: #{sbf_transformer_forward.1} parent=135 // pred_check
          %p1205 = pneg %p540
        $region178: #{sbf_transformer_forward.1} parent=135 // pred_check_branch
          %1207 = sbr.rel (%p1205) target = $region180
        $region179: #{sbf_transformer_forward.1} parent=135 // pred_region
          %1209 = dma.done %s1202, 16
        $region180: #{sbf_transformer_forward.1} parent=135 // pred_fallthru
          _
        %s1210 = sand.u32 %s74, 1
        %s1211 = scalar_lea.sflag [#allocation8], %s1210
        %s1212 = sand.u32 %s553, 1
        %s1213 = smul.addr %s1212, 32
        %s1214 = scalar_lea.vmem [#allocation22], %s1213
        // Predicated region
        $region181: #{sbf_transformer_forward.1} parent=135 // pred_check
          %p1215 = pneg %p566
        $region182: #{sbf_transformer_forward.1} parent=135 // pred_check_branch
          %1217 = sbr.rel (%p1215) target = $region184
        $region183: #{sbf_transformer_forward.1} parent=135 // pred_region
          %1219 = dma.done %s1211, 512
        $region184: #{sbf_transformer_forward.1} parent=135 // pred_fallthru
          _
        %s1220 = sand.u32 %s74, 1
        %s1221 = scalar_lea.sflag [#allocation8], %s1220
        %s1222 = sand.u32 %s579, 1
        %s1223 = scalar_lea.vmem [#allocation23], %s1222
        // Predicated region
        $region185: #{sbf_transformer_forward.1} parent=135 // pred_check
          %p1224 = pneg %p592
        $region186: #{sbf_transformer_forward.1} parent=135 // pred_check_branch
          %1226 = sbr.rel (%p1224) target = $region188
        $region187: #{sbf_transformer_forward.1} parent=135 // pred_region
          %1228 = dma.done %s1221, 16
        $region188: #{sbf_transformer_forward.1} parent=135 // pred_fallthru
          _
        %s1229 = sand.u32 %s74, 1
        %s1230 = scalar_lea.sflag [#allocation8], %s1229
        %s1231 = sand.u32 %s605, 1
        %s1232 = smul.addr %s1231, 96
        %s1233 = scalar_lea.vmem [#allocation24], %s1232
        // Predicated region
        $region189: #{sbf_transformer_forward.1} parent=135 // pred_check
          %p1234 = pneg %p618
        $region190: #{sbf_transformer_forward.1} parent=135 // pred_check_branch
          %1236 = sbr.rel (%p1234) target = $region192
        $region191: #{sbf_transformer_forward.1} parent=135 // pred_region
          %1238 = dma.done %s1230, 1536
        $region192: #{sbf_transformer_forward.1} parent=135 // pred_fallthru
          _
        %s1239 = sand.u32 %s74, 1
        %s1240 = scalar_lea.sflag [#allocation8], %s1239
        %s1241 = sand.u32 %s631, 1
        %s1242 = smul.addr %s1241, 3
        %s1243 = scalar_lea.vmem [#allocation25], %s1242
        // Predicated region
        $region193: #{sbf_transformer_forward.1} parent=135 // pred_check
          %p1244 = pneg %p644
        $region194: #{sbf_transformer_forward.1} parent=135 // pred_check_branch
          %1246 = sbr.rel (%p1244) target = $region196
        $region195: #{sbf_transformer_forward.1} parent=135 // pred_region
          %1248 = dma.done %s1240, 48
        $region196: #{sbf_transformer_forward.1} parent=135 // pred_fallthru
          _
        %s1249 = sand.u32 %s74, 1
        %s1250 = scalar_lea.sflag [#allocation8], %s1249
        %s1251 = sand.u32 %s657, 1
        %s1252 = smul.addr %s1251, 96
        %s1253 = scalar_lea.vmem [#allocation26], %s1252
        // Predicated region
        $region197: #{sbf_transformer_forward.1} parent=135 // pred_check
          %p1254 = pneg %p670
        $region198: #{sbf_transformer_forward.1} parent=135 // pred_check_branch
          %1256 = sbr.rel (%p1254) target = $region200
        $region199: #{sbf_transformer_forward.1} parent=135 // pred_region
          %1258 = dma.done %s1250, 1536
        $region200: #{sbf_transformer_forward.1} parent=135 // pred_fallthru
          _
        %s1259 = sand.u32 %s74, 1
        %s1260 = scalar_lea.sflag [#allocation8], %s1259
        %s1261 = sand.u32 %s683, 1
        %s1262 = smul.addr %s1261, 3
        %s1263 = scalar_lea.vmem [#allocation27], %s1262
        // Predicated region
        $region201: #{sbf_transformer_forward.1} parent=135 // pred_check
          %p1264 = pneg %p696
        $region202: #{sbf_transformer_forward.1} parent=135 // pred_check_branch
          %1266 = sbr.rel (%p1264) target = $region204
        $region203: #{sbf_transformer_forward.1} parent=135 // pred_region
          %1268 = dma.done %s1260, 48
        $region204: #{sbf_transformer_forward.1} parent=135 // pred_fallthru
          _
        %p1269 = pneg %p90
        %p1270 = pneg %p87
        %p1271 = pneg %p111
        %p1272 = pneg %p108
        %p1273 = pneg %p132
        %p1274 = pneg %p129
        %p1275 = pneg %p153
        %p1276 = pneg %p150
        %p1277 = pneg %p174
        %p1278 = pneg %p171
        %p1279 = pneg %p195
        %p1280 = pneg %p192
        %p1281 = pneg %p216
        %p1282 = pneg %p213
        %p1283 = pneg %p237
        %p1284 = pneg %p234
        %p1285 = pneg %p258
        %p1286 = pneg %p255
        %p1287 = pneg %p279
        %p1288 = pneg %p276
        %p1289 = pneg %p300
        %p1290 = pneg %p297
        %p1291 = pneg %p321
        %p1292 = pneg %p318
        %p1293 = pneg %p342
        %p1294 = pneg %p339
        %p1295 = pneg %p363
        %p1296 = pneg %p360
        %p1297 = pneg %p384
        %p1298 = pneg %p381
        %p1299 = scmp.lt.s32.totalorder %s74, 1
        %s1300 = scalar_select %p1299, %s74, 1
        %s1301 = smul.addr %s1300, 8
        %s1302 = smul.addr %s1301, 8
        %s1303 = scalar_lea.vmem %s31, %s1302
        %p1304 = pneg %p410
        %p1305 = pneg %p407
        %s1306 = sand.u32 %s74, 1
        %s1307 = scalar_lea.sflag [#allocation8], %s1306
        %s1308 = sand.u32 %s423, 1
        %s1309 = smul.addr %s1308, 16
        %s1310 = scalar_lea.vmem [#allocation17], %s1309
        %p1311 = pneg %p436
        %p1312 = pneg %p433
        %s1313 = sand.u32 %s74, 1
        %s1314 = scalar_lea.sflag [#allocation8], %s1313
        %s1315 = sand.u32 %s449, 1
        %s1316 = smul.addr %s1315, 2
        %s1317 = scalar_lea.vmem [#allocation18], %s1316
        %p1318 = pneg %p462
        %p1319 = pneg %p459
        %s1320 = sand.u32 %s74, 1
        %s1321 = scalar_lea.sflag [#allocation8], %s1320
        %s1322 = sand.u32 %s475, 1
        %s1323 = smul.addr %s1322, 32
        %s1324 = scalar_lea.vmem [#allocation19], %s1323
        %p1325 = pneg %p488
        %p1326 = pneg %p485
        %s1327 = sand.u32 %s74, 1
        %s1328 = scalar_lea.sflag [#allocation8], %s1327
        %s1329 = sand.u32 %s501, 1
        %s1330 = smul.addr %s1329, 64
        %s1331 = scalar_lea.vmem [#allocation20], %s1330
        %p1332 = pneg %p514
        %p1333 = pneg %p511
        %s1334 = sand.u32 %s74, 1
        %s1335 = scalar_lea.sflag [#allocation8], %s1334
        %s1336 = sand.u32 %s527, 1
        %s1337 = scalar_lea.vmem [#allocation21], %s1336
        %p1338 = pneg %p540
        %p1339 = pneg %p537
        %s1340 = sand.u32 %s74, 1
        %s1341 = scalar_lea.sflag [#allocation8], %s1340
        %s1342 = sand.u32 %s553, 1
        %s1343 = smul.addr %s1342, 32
        %s1344 = scalar_lea.vmem [#allocation22], %s1343
        %p1345 = pneg %p566
        %p1346 = pneg %p563
        %s1347 = sand.u32 %s74, 1
        %s1348 = scalar_lea.sflag [#allocation8], %s1347
        %s1349 = sand.u32 %s579, 1
        %s1350 = scalar_lea.vmem [#allocation23], %s1349
        %p1351 = pneg %p592
        %p1352 = pneg %p589
        %s1353 = sand.u32 %s74, 1
        %s1354 = scalar_lea.sflag [#allocation8], %s1353
        %s1355 = sand.u32 %s605, 1
        %s1356 = smul.addr %s1355, 96
        %s1357 = scalar_lea.vmem [#allocation24], %s1356
        %p1358 = pneg %p618
        %p1359 = pneg %p615
        %s1360 = sand.u32 %s74, 1
        %s1361 = scalar_lea.sflag [#allocation8], %s1360
        %s1362 = sand.u32 %s631, 1
        %s1363 = smul.addr %s1362, 3
        %s1364 = scalar_lea.vmem [#allocation25], %s1363
        %p1365 = pneg %p644
        %p1366 = pneg %p641
        %s1367 = sand.u32 %s74, 1
        %s1368 = scalar_lea.sflag [#allocation8], %s1367
        %s1369 = sand.u32 %s657, 1
        %s1370 = smul.addr %s1369, 96
        %s1371 = scalar_lea.vmem [#allocation26], %s1370
        %p1372 = pneg %p670
        %p1373 = pneg %p667
        %s1374 = sand.u32 %s74, 1
        %s1375 = scalar_lea.sflag [#allocation8], %s1374
        %s1376 = sand.u32 %s683, 1
        %s1377 = smul.addr %s1376, 3
        %s1378 = scalar_lea.vmem [#allocation27], %s1377
        %p1379 = pneg %p696
        %p1380 = pneg %p693
        %p1381 = pneg %p717
        %p1382 = pneg %p714
        %p1383 = pneg %p738
        %p1384 = pneg %p735
        %p1385 = pneg %p759
        %p1386 = pneg %p756
        %p1387 = scmp.lt.s32.totalorder %s74, 1
        %s1388 = scalar_select %p1387, %s74, 1
        %s1389 = smul.addr %s1388, 8
        %s1390 = smul.addr %s1389, 8
        %s1391 = scalar_lea.vmem %s31, %s1390
        %p1393 = scmp.eq.s32.totalorder %s74, 0
        // Predicated region
        $region205: #{sbf_transformer_forward.1} parent=135 // pred_check
          %p1394 = pneg %p1393
        $region206: #{sbf_transformer_forward.1} parent=135 // pred_check_branch
          %1396 = sbr.rel (%p1394) target = $region208
        $region207: #{sbf_transformer_forward.1} parent=135 // pred_region
          %v1397 = vld [vmem:[%s1] sm:$0xff]
          %v1398 = vld [vmem:[%s1 + $0x8] sm:$0xff]
          %vm1399 = vcmask 261120
          %1400 = vst.msk [vmem:[#allocation2] sm:$0xff] %vm1399, %v1397
          %1401 = vst.msk [vmem:[#allocation2 + $0x8] sm:$0xff] %vm1399, %v1398
          %v1402 = vld [vmem:[#allocation7] sm:$0xff]
          %v1403 = vld [vmem:[#allocation7 + $0x8] sm:$0xff]
          %v1404 = vld [vmem:[#allocation7 + $0x10] sm:$0xff]
          %v1405 = vld [vmem:[#allocation7 + $0x18] sm:$0xff]
          %v1406 = vld [vmem:[#allocation11] sm:$0xff]
          %v1407 = vld [vmem:[#allocation11 + $0x8] sm:$0xff]
          %v1408 = vld [vmem:[#allocation11 + $0x10] sm:$0xff]
          %v1409 = vld [vmem:[#allocation11 + $0x18] sm:$0xff]
          %v1410 = vpack.c.bf16 %v1403, %v1402
          %v1411 = vpack.c.bf16 %v1405, %v1404
          %v1412 = vpack.c.bf16 %v1407, %v1406
          %v1413 = vpack.c.bf16 %v1409, %v1408
          %v1414 = vld [vmem:[#allocation12] sm:$0x1]
          %v1416 = vperm.slane %v1414, 0
          %v1419 = vsel %vm1399, %v1410, 0
          %v1422 = vsel %vm1399, %v1411, 0
          %1424 = vmatpush.bf16.msra.mxu0 0
          %1425 = vmatpush.bf16.msra.mxu0 0
          %1426 = vmatpush.bf16.msra.mxu0 0
          %1427 = vmatpush.bf16.msra.mxu0 0
          %1428 = vmatpush.bf16.msra.mxu0 0
          %1429 = vmatpush.bf16.msra.mxu0 0
          %1430 = vmatpush.bf16.msra.mxu0 %v1413
          %1431 = vmatpush.bf16.msra.mxu0 %v1412
          %1432 = vmatmul.bf16.gmra.mxu0 %v1419
          %v1433 = vpop.f32.mrf.mxu0
          %v1434 = vadd.f32 %v1416, %v1433
          %v1435 = vpop.f32.mrf.mxu0
          %v1436 = vadd.f32 %v1416, %v1435
          %1437 = vmatmul.bf16.gmra.mxu0 %v1422
          %v1438 = vpop.f32.mrf.mxu0
          %v1439 = vadd.f32 %v1416, %v1438
          %v1440 = vpop.f32.mrf.mxu0
          %v1441 = vadd.f32 %v1416, %v1440
          %1442 = vdwg.mxu0
          %v1443 = vxor.u32 %v1434, 2147483648
          %v1444 = vxor.u32 %v1436, 2147483648
          %v1445 = vxor.u32 %v1439, 2147483648
          %v1446 = vxor.u32 %v1441, 2147483648
          %v1447 = vmul.f32 %v1443, 1.442695
          %v1448 = vpow.pop %v1447
          %v1449 = vmul.f32 %v1444, 1.442695
          %v1450 = vpow.pop %v1449
          %v1451 = vmul.f32 %v1445, 1.442695
          %v1452 = vpow.pop %v1451
          %v1453 = vmul.f32 %v1446, 1.442695
          %v1454 = vpow.pop %v1453
          %v1455 = vadd.f32 %v1448, 1.0
          %v1456 = vadd.f32 %v1450, 1.0
          %v1457 = vadd.f32 %v1452, 1.0
          %v1458 = vadd.f32 %v1454, 1.0
          %v1459 = vrcp.pop %v1455
          %v1460 = vmul.f32 %v1455, %v1459
          %v1461 = vsub.f32 1.0, %v1460
          %v1462 = vmul.f32 %v1459, %v1461
          %v1463 = vadd.f32 %v1459, %v1462
          %vm1464 = vweird.f32 %v1455
          %vm1465 = vweird.f32 %v1459
          %vm1466 = vmor %vm1464, %vm1465
          %v1467 = vsel %vm1466, %v1459, %v1463
          %v1468 = vand.u32 2147483647, %v1455
          %vm1469 = vcmp.eq.f32.partialorder %v1468, 8.507059e+37
          %v1470 = vand.u32 %v1455, 2147483648
          %v1471 = vor.u32 1.1754944e-38, %v1470
          %v1472 = vsel %vm1469, %v1471, %v1467
          %v1473 = vmul.f32 1.0, %v1472
          %v1474 = vrcp.pop %v1456
          %v1475 = vmul.f32 %v1456, %v1474
          %v1476 = vsub.f32 1.0, %v1475
          %v1477 = vmul.f32 %v1474, %v1476
          %v1478 = vadd.f32 %v1474, %v1477
          %vm1479 = vweird.f32 %v1456
          %vm1480 = vweird.f32 %v1474
          %vm1481 = vmor %vm1479, %vm1480
          %v1482 = vsel %vm1481, %v1474, %v1478
          %v1483 = vand.u32 2147483647, %v1456
          %vm1484 = vcmp.eq.f32.partialorder %v1483, 8.507059e+37
          %v1485 = vand.u32 %v1456, 2147483648
          %v1486 = vor.u32 1.1754944e-38, %v1485
          %v1487 = vsel %vm1484, %v1486, %v1482
          %v1488 = vmul.f32 1.0, %v1487
          %v1489 = vrcp.pop %v1457
          %v1490 = vmul.f32 %v1457, %v1489
          %v1491 = vsub.f32 1.0, %v1490
          %v1492 = vmul.f32 %v1489, %v1491
          %v1493 = vadd.f32 %v1489, %v1492
          %vm1494 = vweird.f32 %v1457
          %vm1495 = vweird.f32 %v1489
          %vm1496 = vmor %vm1494, %vm1495
          %v1497 = vsel %vm1496, %v1489, %v1493
          %v1498 = vand.u32 2147483647, %v1457
          %vm1499 = vcmp.eq.f32.partialorder %v1498, 8.507059e+37
          %v1500 = vand.u32 %v1457, 2147483648
          %v1501 = vor.u32 1.1754944e-38, %v1500
          %v1502 = vsel %vm1499, %v1501, %v1497
          %v1503 = vmul.f32 1.0, %v1502
          %v1504 = vrcp.pop %v1458
          %v1505 = vmul.f32 %v1458, %v1504
          %v1506 = vsub.f32 1.0, %v1505
          %v1507 = vmul.f32 %v1504, %v1506
          %v1508 = vadd.f32 %v1504, %v1507
          %vm1509 = vweird.f32 %v1458
          %vm1510 = vweird.f32 %v1504
          %vm1511 = vmor %vm1509, %vm1510
          %v1512 = vsel %vm1511, %v1504, %v1508
          %v1513 = vand.u32 2147483647, %v1458
          %vm1514 = vcmp.eq.f32.partialorder %v1513, 8.507059e+37
          %v1515 = vand.u32 %v1458, 2147483648
          %v1516 = vor.u32 1.1754944e-38, %v1515
          %v1517 = vsel %vm1514, %v1516, %v1512
          %v1518 = vmul.f32 1.0, %v1517
          %v1519 = vmul.f32 %v1434, %v1473
          %v1520 = vmul.f32 %v1436, %v1488
          %v1521 = vmul.f32 %v1439, %v1503
          %v1522 = vmul.f32 %v1441, %v1518
          %v1523 = vld [vmem:[#allocation14] sm:$0xff]
          %v1524 = vld [vmem:[#allocation14 + $0x8] sm:$0xff]
          %v1525 = vld [vmem:[#allocation14 + $0x10] sm:$0xff]
          %v1526 = vld [vmem:[#allocation14 + $0x18] sm:$0xff]
          %v1527 = vpack.c.bf16 %v1520, %v1519
          %v1528 = vpack.c.bf16 %v1522, %v1521
          %v1529 = vpack.c.bf16 %v1524, %v1523
          %v1530 = vpack.c.bf16 %v1526, %v1525
          %v1531 = vld [vmem:[#allocation15] sm:$0x1]
          %v1533 = vperm.slane %v1531, 0
          %v1536 = vsel %vm1399, %v1527, 0
          %v1539 = vsel %vm1399, %v1528, 0
          %1541 = vmatpush.bf16.msra.mxu0 0
          %1542 = vmatpush.bf16.msra.mxu0 0
          %1543 = vmatpush.bf16.msra.mxu0 0
          %1544 = vmatpush.bf16.msra.mxu0 0
          %1545 = vmatpush.bf16.msra.mxu0 0
          %1546 = vmatpush.bf16.msra.mxu0 0
          %1547 = vmatpush.bf16.msra.mxu0 %v1530
          %1548 = vmatpush.bf16.msra.mxu0 %v1529
          %1549 = vmatmul.bf16.gmra.mxu0 %v1536
          %v1550 = vpop.f32.mrf.mxu0
          %v1551 = vadd.f32 %v1533, %v1550
          %v1552 = vpop.f32.mrf.mxu0
          %v1553 = vadd.f32 %v1533, %v1552
          %1554 = vmatmul.bf16.gmra.mxu0 %v1539
          %v1555 = vpop.f32.mrf.mxu0
          %v1556 = vadd.f32 %v1533, %v1555
          %v1557 = vpop.f32.mrf.mxu0
          %v1558 = vadd.f32 %v1533, %v1557
          %1559 = vdwg.mxu0
          %1560 = vst.msk [vmem:[#allocation3] sm:$0xff] %vm1399, %v1551
          %1561 = vst.msk [vmem:[#allocation3 + $0x8] sm:$0xff] %vm1399, %v1553
          %1562 = vst.msk [vmem:[#allocation3 + $0x10] sm:$0xff] %vm1399, %v1556
          %1563 = vst.msk [vmem:[#allocation3 + $0x18] sm:$0xff] %vm1399, %v1558
          %v1564 = vlaneseq
          %v1565 = vand.u32 %v1564, 127
          %v1566 = vld [vmem:[%s11] sm:$0xff]
          %v1567 = vld [vmem:[%s11 + $0x8] sm:$0xff]
          %v1568 = vld [vmem:[%s11 + $0x10] sm:$0xff]
          %v1569 = vld [vmem:[%s11 + $0x18] sm:$0xff]
          %1570 = vset.pattern.permute.xlu0 0
          %1571 = vperm.xlu0 %1570, %v1566
          %v1572 = vpop.permute.xlu0 %1571
          %1573 = vset.pattern.permute.xlu0 0
          %1574 = vperm.xlu0 %1573, %v1567
          %v1575 = vpop.permute.xlu0 %1574
          %1576 = vset.pattern.permute.xlu0 0
          %1577 = vperm.xlu0 %1576, %v1568
          %v1578 = vpop.permute.xlu0 %1577
          %1579 = vset.pattern.permute.xlu0 0
          %1580 = vperm.xlu0 %1579, %v1569
          %v1581 = vpop.permute.xlu0 %1580
          %vm1582 = vcmp.eq.s32.totalorder %v1572, %v1565
          %vm1583 = vcmp.eq.s32.totalorder %v1575, %v1565
          %vm1584 = vcmp.eq.s32.totalorder %v1578, %v1565
          %vm1585 = vcmp.eq.s32.totalorder %v1581, %v1565
          %v1586 = vsel %vm1582, 1, 0
          %v1587 = vsel %vm1583, 1, 0
          %v1588 = vsel %vm1584, 1, 0
          %v1589 = vsel %vm1585, 1, 0
          %v1590 = vcvt.s32.f32 %v1586
          %v1591 = vcvt.s32.f32 %v1587
          %v1592 = vcvt.s32.f32 %v1588
          %v1593 = vcvt.s32.f32 %v1589
          %v1594 = vpack.c.bf16 %v1590, %v1590
          %v1595 = vpack.c.bf16 %v1591, %v1591
          %v1596 = vpack.c.bf16 %v1592, %v1592
          %v1597 = vpack.c.bf16 %v1593, %v1593
          %vm1598 = vcmask 125952
          %1599 = vst.msk [vmem:[#allocation4] sm:$0xf] %vm1598, %v1594
          %1600 = vst.msk [vmem:[#allocation4 + $0x4] sm:$0xf] %vm1598, %v1595
          %1601 = vst.msk [vmem:[#allocation4 + $0x8] sm:$0xf] %vm1598, %v1596
          %1602 = vst.msk [vmem:[#allocation4 + $0xc] sm:$0xf] %vm1598, %v1597
          %v1603 = vld [vmem:[%s13] sm:$0xff]
          %v1604 = vld [vmem:[%s13 + $0x8] sm:$0xff]
          %v1605 = vld [vmem:[%s13 + $0x10] sm:$0xff]
          %v1606 = vld [vmem:[%s13 + $0x18] sm:$0xff]
          %1607 = vset.pattern.permute.xlu0 0
          %1608 = vperm.xlu0 %1607, %v1603
          %v1609 = vpop.permute.xlu0 %1608
          %1610 = vset.pattern.permute.xlu0 0
          %1611 = vperm.xlu0 %1610, %v1604
          %v1612 = vpop.permute.xlu0 %1611
          %1613 = vset.pattern.permute.xlu0 0
          %1614 = vperm.xlu0 %1613, %v1605
          %v1615 = vpop.permute.xlu0 %1614
          %1616 = vset.pattern.permute.xlu0 0
          %1617 = vperm.xlu0 %1616, %v1606
          %v1618 = vpop.permute.xlu0 %1617
          %vm1619 = vcmp.eq.s32.totalorder %v1609, %v1565
          %vm1620 = vcmp.eq.s32.totalorder %v1612, %v1565
          %vm1621 = vcmp.eq.s32.totalorder %v1615, %v1565
          %vm1622 = vcmp.eq.s32.totalorder %v1618, %v1565
          %v1623 = vsel %vm1619, 1, 0
          %v1624 = vsel %vm1620, 1, 0
          %v1625 = vsel %vm1621, 1, 0
          %v1626 = vsel %vm1622, 1, 0
          %v1627 = vcvt.s32.f32 %v1623
          %v1628 = vcvt.s32.f32 %v1624
          %v1629 = vcvt.s32.f32 %v1625
          %v1630 = vcvt.s32.f32 %v1626
          %v1631 = vpack.c.bf16 %v1627, %v1627
          %v1632 = vpack.c.bf16 %v1628, %v1628
          %v1633 = vpack.c.bf16 %v1629, %v1629
          %v1634 = vpack.c.bf16 %v1630, %v1630
          %1635 = vst.msk [vmem:[#allocation5] sm:$0xf] %vm1598, %v1631
          %1636 = vst.msk [vmem:[#allocation5 + $0x4] sm:$0xf] %vm1598, %v1632
          %1637 = vst.msk [vmem:[#allocation5 + $0x8] sm:$0xf] %vm1598, %v1633
          %1638 = vst.msk [vmem:[#allocation5 + $0xc] sm:$0xf] %vm1598, %v1634
          %v1639 = vlaneseq
          %v1640 = vshrl.u32 %v1639, 7
          %v1641 = vadd.s32 %v1640, 8
          %v1642 = vld [vmem:[%s15] sm:$0x1]
          %v1643 = vperm.slane %v1642, 0
          %vm1644 = vcmp.eq.s32.totalorder %v1643, %v1640
          %vm1645 = vcmp.eq.s32.totalorder %v1643, %v1641
          %v1646 = vsel %vm1644, 1, 0
          %v1647 = vsel %vm1645, 1, 0
          %v1648 = vcvt.s32.f32 %v1646
          %v1649 = vcvt.s32.f32 %v1647
          %v1650 = vpack.c.bf16 %v1648, %v1648
          %v1651 = vpack.c.bf16 %v1649, %v1649
          %vm1652 = vcmask 257024
          %1653 = vst.msk [vmem:[#allocation6] sm:$0xf] %vm1652, %v1650
          %1654 = vst.msk [vmem:[#allocation6 + $0x4] sm:$0xf] %vm1652, %v1651
        $region208: #{sbf_transformer_forward.1} parent=135 // pred_fallthru
          _
        %v1655 = vld [vmem:[#allocation2] sm:$0xff]
        %v1656 = vld [vmem:[#allocation2 + $0x8] sm:$0xff]
        %v1657 = vld [vmem:[#allocation4] sm:$0xf]
        %v1658 = vld [vmem:[#allocation4 + $0x4] sm:$0xf]
        %v1659 = vld [vmem:[#allocation4 + $0x8] sm:$0xf]
        %v1660 = vld [vmem:[#allocation4 + $0xc] sm:$0xf]
        %v1661 = vld [vmem:[#allocation5] sm:$0xf]
        %v1662 = vld [vmem:[#allocation5 + $0x4] sm:$0xf]
        %v1663 = vld [vmem:[#allocation5 + $0x8] sm:$0xf]
        %v1664 = vld [vmem:[#allocation5 + $0xc] sm:$0xf]
        %v1665 = vld [vmem:[#allocation6] sm:$0xf]
        %v1666 = vld [vmem:[#allocation6 + $0x4] sm:$0xf]
        %v1667 = vld [vmem:[%s1391] sm:$0xff]
        %v1668 = vld [vmem:[%s1391 + $0x8] sm:$0xff]
        %v1669 = vld [vmem:[%s1391 + $0x10] sm:$0xff]
        %v1670 = vld [vmem:[%s1391 + $0x18] sm:$0xff]
        %v1671 = vld [vmem:[%s1391 + $0x20] sm:$0xff]
        %v1672 = vld [vmem:[%s1391 + $0x28] sm:$0xff]
        %v1673 = vld [vmem:[%s1391 + $0x30] sm:$0xff]
        %v1674 = vld [vmem:[%s1391 + $0x38] sm:$0xff]
        %v1675 = vpack.c.bf16 %v1656, %v1655
        %v1676 = vpack.c.bf16 %v1669, %v1667
        %v1677 = vpack.c.bf16 %v1670, %v1668
        %v1678 = vpack.c.bf16 %v1673, %v1671
        %v1679 = vpack.c.bf16 %v1674, %v1672
        %v1680 = vld [vmem:[%s7] sm:$0xff]
        %v1681 = vld [vmem:[%s7 + $0x8] sm:$0xff]
        %v1682 = vld [vmem:[%s1165] sm:$0xff]
        %v1683 = vld [vmem:[%s1165 + $0x8] sm:$0xff]
        %v1684 = vpack.c.bf16 %v1681, %v1680
        %v1685 = vpack.c.bf16 %v1682, %v1682
        %v1686 = vpack.c.bf16 %v1683, %v1683
        %vm1687 = vcmask 64512
        %v1689 = vsel %vm1687, %v1684, 0
        %vm1691 = vcmask 1043456
        %v1693 = vsel %vm1691, %v1685, 0
        %v1696 = vsel %vm1691, %v1686, 0
        %1698 = vmatpush.bf16.msra.mxu0 0
        %1699 = vmatpush.bf16.msra.mxu0 0
        %1700 = vmatpush.bf16.msra.mxu0 0
        %1701 = vmatpush.bf16.msra.mxu0 0
        %1702 = vmatpush.bf16.msra.mxu0 0
        %1703 = vmatpush.bf16.msra.mxu0 0
        %1704 = vmatpush.bf16.msra.mxu0 0
        %1705 = vmatpush.bf16.msra.mxu0 %v1693
        %1706 = vmatmul.bf16.gmra.mxu0 %v1689
        %v1707 = vpop.f32.mrf.mxu0
        %v1708 = vadd.f32 0.0, %v1707
        %v1709 = vpop.f32.mrf.mxu0
        %v1710 = vadd.f32 0.0, %v1709
        %1711 = vdwg.mxu0
        %1712 = vmatpush.bf16.msra.mxu0 0
        %1713 = vmatpush.bf16.msra.mxu0 0
        %1714 = vmatpush.bf16.msra.mxu0 0
        %1715 = vmatpush.bf16.msra.mxu0 0
        %1716 = vmatpush.bf16.msra.mxu0 0
        %1717 = vmatpush.bf16.msra.mxu0 0
        %1718 = vmatpush.bf16.msra.mxu0 0
        %1719 = vmatpush.bf16.msra.mxu0 %v1696
        %1720 = vmatmul.bf16.gmra.mxu0 %v1689
        %v1721 = vpop.f32.mrf.mxu0
        %v1722 = vadd.f32 0.0, %v1721
        %v1723 = vpop.f32.mrf.mxu0
        %v1724 = vadd.f32 0.0, %v1723
        %1725 = vdwg.mxu0
        %vm1726 = vcmask 261120
        %v1728 = vsel %vm1726, %v1675, 0
        %1730 = vmatpush.bf16.msra.mxu0 0
        %1731 = vmatpush.bf16.msra.mxu0 0
        %1732 = vmatpush.bf16.msra.mxu0 0
        %1733 = vmatpush.bf16.msra.mxu0 0
        %1734 = vmatpush.bf16.msra.mxu0 0
        %1735 = vmatpush.bf16.msra.mxu0 0
        %1736 = vmatpush.bf16.msra.mxu0 %v1678
        %1737 = vmatpush.bf16.msra.mxu0 %v1676
        %1738 = vmatmul.bf16.gmra.mxu0 %v1728
        %v1739 = vpop.f32.mrf.mxu0
        %v1740 = vadd.f32 %v1708, %v1739
        %v1741 = vpop.f32.mrf.mxu0
        %v1742 = vadd.f32 %v1710, %v1741
        %1743 = vdwg.mxu0
        %1744 = vmatpush.bf16.msra.mxu0 0
        %1745 = vmatpush.bf16.msra.mxu0 0
        %1746 = vmatpush.bf16.msra.mxu0 0
        %1747 = vmatpush.bf16.msra.mxu0 0
        %1748 = vmatpush.bf16.msra.mxu0 0
        %1749 = vmatpush.bf16.msra.mxu0 0
        %1750 = vmatpush.bf16.msra.mxu0 %v1679
        %1751 = vmatpush.bf16.msra.mxu0 %v1677
        %1752 = vmatmul.bf16.gmra.mxu0 %v1728
        %v1753 = vpop.f32.mrf.mxu0
        %v1754 = vadd.f32 %v1722, %v1753
        %v1755 = vpop.f32.mrf.mxu0
        %v1756 = vadd.f32 %v1724, %v1755
        %1757 = vdwg.mxu0
        %v1758 = vld [vmem:[%s1175] sm:$0x3]
        %v1760 = vperm.slane %v1758, 0
        %v1761 = vperm.slane %v1758, 1
        %v1764 = vadd.f32 %v1740, %v1760
        %v1765 = vadd.f32 %v1754, %v1761
        %v1766 = vadd.f32 %v1742, %v1760
        %v1767 = vadd.f32 %v1756, %v1761
        %1770 = vrot.lane.b32.xlu0 %v1765, 64
        %v1771 = vpop.permute.xlu0 %1770
        %1772 = vrot.lane.b32.xlu0 %v1767, 64
        %v1773 = vpop.permute.xlu0 %1772
        %v1776 = vmul.f32 %v1764, %v1771
        %v1777 = vmul.f32 %v1766, %v1773
        %v1778 = vld [vmem:[#allocation3] sm:$0xff]
        %v1779 = vld [vmem:[#allocation3 + $0x8] sm:$0xff]
        %v1780 = vld [vmem:[#allocation3 + $0x10] sm:$0xff]
        %v1781 = vld [vmem:[#allocation3 + $0x18] sm:$0xff]
        %v1782 = vld [vmem:[%s1185] sm:$0xff]
        %v1783 = vld [vmem:[%s1185 + $0x8] sm:$0xff]
        %v1784 = vld [vmem:[%s1185 + $0x10] sm:$0xff]
        %v1785 = vld [vmem:[%s1185 + $0x18] sm:$0xff]
        %v1786 = vpack.c.bf16 %v1779, %v1778
        %v1787 = vpack.c.bf16 %v1781, %v1780
        %v1788 = vpack.c.bf16 %v1783, %v1782
        %v1789 = vpack.c.bf16 %v1785, %v1784
        %v1790 = vld [vmem:[#allocation9] sm:$0xff]
        %v1791 = vld [vmem:[#allocation9 + $0x8] sm:$0xff]
        %v1792 = vld [vmem:[#allocation9 + $0x10] sm:$0xff]
        %v1793 = vld [vmem:[#allocation9 + $0x18] sm:$0xff]
        %v1794 = vld [vmem:[%s1195] sm:$0xff]
        %v1795 = vld [vmem:[%s1195 + $0x8] sm:$0xff]
        %v1796 = vld [vmem:[%s1195 + $0x10] sm:$0xff]
        %v1797 = vld [vmem:[%s1195 + $0x18] sm:$0xff]
        %v1798 = vld [vmem:[%s1195 + $0x20] sm:$0xff]
        %v1799 = vld [vmem:[%s1195 + $0x28] sm:$0xff]
        %v1800 = vld [vmem:[%s1195 + $0x30] sm:$0xff]
        %v1801 = vld [vmem:[%s1195 + $0x38] sm:$0xff]
        %v1802 = vpack.c.bf16 %v1791, %v1790
        %v1803 = vpack.c.bf16 %v1793, %v1792
        %v1804 = vpack.c.bf16 %v1795, %v1794
        %v1805 = vpack.c.bf16 %v1797, %v1796
        %v1806 = vpack.c.bf16 %v1799, %v1798
        %v1807 = vpack.c.bf16 %v1801, %v1800
        %vm1808 = vcmask 523264
        %v1810 = vsel %vm1808, %v1802, 0
        %v1813 = vsel %vm1808, %v1803, 0
        %1815 = vmatpush.bf16.msra.mxu0 0
        %1816 = vmatpush.bf16.msra.mxu0 0
        %1817 = vmatpush.bf16.msra.mxu0 0
        %1818 = vmatpush.bf16.msra.mxu0 0
        %1819 = vmatpush.bf16.msra.mxu0 %v1807
        %1820 = vmatpush.bf16.msra.mxu0 %v1806
        %1821 = vmatpush.bf16.msra.mxu0 %v1805
        %1822 = vmatpush.bf16.msra.mxu0 %v1804
        %1823 = vmatmul.bf16.gmra.mxu0 %v1810
        %v1824 = vpop.f32.mrf.mxu0
        %v1825 = vadd.f32 0.0, %v1824
        %v1826 = vpop.f32.mrf.mxu0
        %v1827 = vadd.f32 0.0, %v1826
        %1828 = vmatmul.bf16.gmra.mxu0 %v1813
        %v1829 = vpop.f32.mrf.mxu0
        %v1830 = vadd.f32 0.0, %v1829
        %v1831 = vpop.f32.mrf.mxu0
        %v1832 = vadd.f32 0.0, %v1831
        %1833 = vdwg.mxu0
        %v1835 = vsel %vm1726, %v1786, 0
        %v1838 = vsel %vm1726, %v1787, 0
        %1840 = vmatpush.bf16.msra.mxu0 0
        %1841 = vmatpush.bf16.msra.mxu0 0
        %1842 = vmatpush.bf16.msra.mxu0 0
        %1843 = vmatpush.bf16.msra.mxu0 0
        %1844 = vmatpush.bf16.msra.mxu0 0
        %1845 = vmatpush.bf16.msra.mxu0 0
        %1846 = vmatpush.bf16.msra.mxu0 %v1789
        %1847 = vmatpush.bf16.msra.mxu0 %v1788
        %1848 = vmatmul.bf16.gmra.mxu0 %v1835
        %v1849 = vpop.f32.mrf.mxu0
        %v1850 = vadd.f32 %v1825, %v1849
        %v1851 = vpop.f32.mrf.mxu0
        %v1852 = vadd.f32 %v1827, %v1851
        %1853 = vmatmul.bf16.gmra.mxu0 %v1838
        %v1854 = vpop.f32.mrf.mxu0
        %v1855 = vadd.f32 %v1830, %v1854
        %v1856 = vpop.f32.mrf.mxu0
        %v1857 = vadd.f32 %v1832, %v1856
        %1858 = vdwg.mxu0
        %v1859 = vld [vmem:[%s1204] sm:$0x1]
        %v1861 = vperm.slane %v1859, 0
        %v1863 = vadd.f32 %v1850, %v1861
        %v1864 = vadd.f32 %v1852, %v1861
        %v1865 = vadd.f32 %v1855, %v1861
        %v1866 = vadd.f32 %v1857, %v1861
        %v1867 = vpack.c.bf16 %v1766, %v1764
        %v1872 = vunpack.c.l.b16 %v1661
        %v1873 = vunpack.c.l.b16 %v1662
        %v1874 = vunpack.c.l.b16 %v1663
        %v1875 = vunpack.c.l.b16 %v1664
        %v1876 = vpack.c.b16 %v1873, %v1872
        %v1877 = vpack.c.b16 %v1875, %v1874
        %vm1878 = vcmask 130048
        %v1880 = vsel %vm1878, %v1876, 0
        %v1883 = vsel %vm1878, %v1877, 0
        %1885 = vmatpush.bf16.msra.mxu0 0
        %1886 = vmatpush.bf16.msra.mxu0 0
        %1887 = vmatpush.bf16.msra.mxu0 0
        %1888 = vmatpush.bf16.msra.mxu0 0
        %1889 = vmatpush.bf16.msra.mxu0 0
        %1890 = vmatpush.bf16.msra.mxu0 0
        %1891 = vmatpush.bf16.msra.mxu0 0
        %1892 = vmatpush.bf16.msra.mxu0 %v1867
        %1893 = vmatmul.bf16.gmra.mxu0 %v1880
        %v1894 = vpop.f32.mrf.mxu0
        %v1895 = vadd.f32 0.0, %v1894
        %v1896 = vpop.f32.mrf.mxu0
        %v1897 = vadd.f32 0.0, %v1896
        %1898 = vmatmul.bf16.gmra.mxu0 %v1883
        %v1899 = vpop.f32.mrf.mxu0
        %v1900 = vadd.f32 0.0, %v1899
        %v1901 = vpop.f32.mrf.mxu0
        %v1902 = vadd.f32 0.0, %v1901
        %1903 = vdwg.mxu0
        %v1904 = vpack.c.bf16 %v1777, %v1776
        %v1909 = vunpack.c.l.b16 %v1657
        %v1910 = vunpack.c.l.b16 %v1658
        %v1911 = vunpack.c.l.b16 %v1659
        %v1912 = vunpack.c.l.b16 %v1660
        %v1913 = vpack.c.b16 %v1910, %v1909
        %v1914 = vpack.c.b16 %v1912, %v1911
        %1916 = vrot.lane.b32.xlu0 %v1867, 96
        %v1917 = vpop.permute.xlu0 %1916
        %v1920 = vsel %vm1878, %v1913, 0
        %v1923 = vsel %vm1878, %v1914, 0
        %1925 = vmatpush.bf16.msra.mxu0 0
        %1926 = vmatpush.bf16.msra.mxu0 0
        %1927 = vmatpush.bf16.msra.mxu0 0
        %1928 = vmatpush.bf16.msra.mxu0 0
        %1929 = vmatpush.bf16.msra.mxu0 0
        %1930 = vmatpush.bf16.msra.mxu0 0
        %1931 = vmatpush.bf16.msra.mxu0 0
        %1932 = vmatpush.bf16.msra.mxu0 %v1917
        %1933 = vmatmul.bf16.gmra.mxu0 %v1920
        %v1934 = vpop.f32.mrf.mxu0
        %v1935 = vadd.f32 %v1863, %v1934
        %v1936 = vpop.f32.mrf.mxu0
        %v1937 = vadd.f32 %v1864, %v1936
        %1938 = vmatmul.bf16.gmra.mxu0 %v1923
        %v1939 = vpop.f32.mrf.mxu0
        %v1940 = vadd.f32 %v1865, %v1939
        %v1941 = vpop.f32.mrf.mxu0
        %v1942 = vadd.f32 %v1866, %v1941
        %1943 = vdwg.mxu0
        %v1944 = vmul.f32 %v1895, %v1935
        %v1945 = vmul.f32 %v1897, %v1937
        %v1946 = vmul.f32 %v1900, %v1940
        %v1947 = vmul.f32 %v1902, %v1942
        %v1948 = vld [vmem:[%s19] sm:$0xff]
        %v1949 = vld [vmem:[%s19 + $0x8] sm:$0xff]
        %v1950 = vld [vmem:[%s19 + $0x10] sm:$0xff]
        %v1951 = vld [vmem:[%s19 + $0x18] sm:$0xff]
        %v1952 = vpack.c.bf16 %v1945, %v1944
        %v1953 = vpack.c.bf16 %v1947, %v1946
        %v1954 = vpack.c.bf16 %v1949, %v1948
        %v1955 = vpack.c.bf16 %v1951, %v1950
        %v1957 = vsel %vm1726, %v1952, 0
        %v1960 = vsel %vm1726, %v1953, 0
        %1962 = vmatpush.bf16.msra.mxu0 0
        %1963 = vmatpush.bf16.msra.mxu0 0
        %1964 = vmatpush.bf16.msra.mxu0 0
        %1965 = vmatpush.bf16.msra.mxu0 0
        %1966 = vmatpush.bf16.msra.mxu0 0
        %1967 = vmatpush.bf16.msra.mxu0 0
        %1968 = vmatpush.bf16.msra.mxu0 %v1955
        %1969 = vmatpush.bf16.msra.mxu0 %v1954
        %1970 = vmatmul.bf16.gmra.mxu0 %v1957
        %v1971 = vpop.f32.mrf.mxu0
        %v1972 = vadd.f32 0.0, %v1971
        %v1973 = vpop.f32.mrf.mxu0
        %v1974 = vadd.f32 0.0, %v1973
        %1975 = vmatmul.bf16.gmra.mxu0 %v1960
        %v1976 = vpop.f32.mrf.mxu0
        %v1977 = vadd.f32 0.0, %v1976
        %v1978 = vpop.f32.mrf.mxu0
        %v1979 = vadd.f32 0.0, %v1978
        %1980 = vdwg.mxu0
        %v1981 = vmul.f32 %v1972, 0.35355338
        %v1982 = vmul.f32 %v1974, 0.35355338
        %v1983 = vmul.f32 %v1977, 0.35355338
        %v1984 = vmul.f32 %v1979, 0.35355338
        %vm1985 = vcmask 31744
        %v1986 = vsel %vm1985, %v1981, -inf
        %v1987 = vsel %vm1985, %v1982, -inf
        %v1988 = vsel %vm1985, %v1983, -inf
        %v1989 = vsel %vm1985, %v1984, -inf
        %v1990 = vmax.f32 %v1986, %v1987
        %v1991 = vmax.f32 %v1988, %v1989
        %v1992 = vmax.f32 %v1990, %v1991
        %v1993 = vrot.slane %v1992, 4
        %v1994 = vmax.f32 %v1992, %v1993
        %v1995 = vrot.slane %v1994, 2
        %v1996 = vmax.f32 %v1994, %v1995
        %v1997 = vrot.slane %v1996, 1
        %v1998 = vmax.f32 %v1996, %v1997
        %v1999 = vsub.f32 %v1981, %v1998
        %v2000 = vsub.f32 %v1982, %v1998
        %v2001 = vsub.f32 %v1983, %v1998
        %v2002 = vsub.f32 %v1984, %v1998
        %v2003 = vmul.f32 %v1999, 1.442695
        %v2004 = vpow.pop %v2003
        %v2005 = vmul.f32 %v2000, 1.442695
        %v2006 = vpow.pop %v2005
        %v2007 = vmul.f32 %v2001, 1.442695
        %v2008 = vpow.pop %v2007
        %v2009 = vmul.f32 %v2002, 1.442695
        %v2010 = vpow.pop %v2009
        %v2011 = vpack.c.bf16 %v2006, %v2004
        %v2012 = vpack.c.bf16 %v2010, %v2008
        %v2015 = vunpack.c.l.b16 %v1665
        %v2016 = vunpack.c.l.b16 %v1666
        %v2017 = vpack.c.b16 %v2016, %v2015
        %v2019 = vsel %vm1726, %v2017, 0
        %2021 = vmatpush.bf16.msra.mxu0 0
        %2022 = vmatpush.bf16.msra.mxu0 0
        %2023 = vmatpush.bf16.msra.mxu0 0
        %2024 = vmatpush.bf16.msra.mxu0 0
        %2025 = vmatpush.bf16.msra.mxu0 0
        %2026 = vmatpush.bf16.msra.mxu0 0
        %2027 = vmatpush.bf16.msra.mxu0 %v2012
        %2028 = vmatpush.bf16.msra.mxu0 %v2011
        %2029 = vmatmul.bf16.gmra.mxu0 %v2019
        %v2030 = vpop.f32.mrf.mxu0
        %v2031 = vadd.f32 0.0, %v2030
        %v2032 = vpop.f32.mrf.mxu0
        %v2033 = vadd.f32 0.0, %v2032
        %2034 = vdwg.mxu0
        %v2035 = vpack.c.bf16 %v2033, %v2031
        %2036 = vmatpush.bf16.msra.mxu0 0
        %2037 = vmatpush.bf16.msra.mxu0 0
        %2038 = vmatpush.bf16.msra.mxu0 0
        %2039 = vmatpush.bf16.msra.mxu0 0
        %2040 = vmatpush.bf16.msra.mxu0 0
        %2041 = vmatpush.bf16.msra.mxu0 0
        %2042 = vmatpush.bf16.msra.mxu0 0
        %2043 = vmatpush.bf16.msra.mxu0 %v2035
        %2044 = vmatmul.bf16.gmra.mxu0 %v1880
        %v2045 = vpop.f32.mrf.mxu0
        %v2046 = vadd.f32 1e-16, %v2045
        %v2047 = vpop.f32.mrf.mxu0
        %v2048 = vadd.f32 1e-16, %v2047
        %2049 = vmatmul.bf16.gmra.mxu0 %v1883
        %v2050 = vpop.f32.mrf.mxu0
        %v2051 = vadd.f32 1e-16, %v2050
        %v2052 = vpop.f32.mrf.mxu0
        %v2053 = vadd.f32 1e-16, %v2052
        %2054 = vdwg.mxu0
        %v2055 = vrcp.pop %v2046
        %v2056 = vmul.f32 %v2046, %v2055
        %v2057 = vsub.f32 1.0, %v2056
        %v2058 = vmul.f32 %v2055, %v2057
        %v2059 = vadd.f32 %v2055, %v2058
        %vm2060 = vweird.f32 %v2046
        %vm2061 = vweird.f32 %v2055
        %vm2062 = vmor %vm2060, %vm2061
        %v2063 = vsel %vm2062, %v2055, %v2059
        %v2064 = vand.u32 2147483647, %v2046
        %vm2065 = vcmp.eq.f32.partialorder %v2064, 8.507059e+37
        %v2066 = vand.u32 %v2046, 2147483648
        %v2067 = vor.u32 1.1754944e-38, %v2066
        %v2068 = vsel %vm2065, %v2067, %v2063
        %v2069 = vmul.f32 %v2004, %v2068
        %v2070 = vrcp.pop %v2048
        %v2071 = vmul.f32 %v2048, %v2070
        %v2072 = vsub.f32 1.0, %v2071
        %v2073 = vmul.f32 %v2070, %v2072
        %v2074 = vadd.f32 %v2070, %v2073
        %vm2075 = vweird.f32 %v2048
        %vm2076 = vweird.f32 %v2070
        %vm2077 = vmor %vm2075, %vm2076
        %v2078 = vsel %vm2077, %v2070, %v2074
        %v2079 = vand.u32 2147483647, %v2048
        %vm2080 = vcmp.eq.f32.partialorder %v2079, 8.507059e+37
        %v2081 = vand.u32 %v2048, 2147483648
        %v2082 = vor.u32 1.1754944e-38, %v2081
        %v2083 = vsel %vm2080, %v2082, %v2078
        %v2084 = vmul.f32 %v2006, %v2083
        %v2085 = vrcp.pop %v2051
        %v2086 = vmul.f32 %v2051, %v2085
        %v2087 = vsub.f32 1.0, %v2086
        %v2088 = vmul.f32 %v2085, %v2087
        %v2089 = vadd.f32 %v2085, %v2088
        %vm2090 = vweird.f32 %v2051
        %vm2091 = vweird.f32 %v2085
        %vm2092 = vmor %vm2090, %vm2091
        %v2093 = vsel %vm2092, %v2085, %v2089
        %v2094 = vand.u32 2147483647, %v2051
        %vm2095 = vcmp.eq.f32.partialorder %v2094, 8.507059e+37
        %v2096 = vand.u32 %v2051, 2147483648
        %v2097 = vor.u32 1.1754944e-38, %v2096
        %v2098 = vsel %vm2095, %v2097, %v2093
        %v2099 = vmul.f32 %v2008, %v2098
        %v2100 = vrcp.pop %v2053
        %v2101 = vmul.f32 %v2053, %v2100
        %v2102 = vsub.f32 1.0, %v2101
        %v2103 = vmul.f32 %v2100, %v2102
        %v2104 = vadd.f32 %v2100, %v2103
        %vm2105 = vweird.f32 %v2053
        %vm2106 = vweird.f32 %v2100
        %vm2107 = vmor %vm2105, %vm2106
        %v2108 = vsel %vm2107, %v2100, %v2104
        %v2109 = vand.u32 2147483647, %v2053
        %vm2110 = vcmp.eq.f32.partialorder %v2109, 8.507059e+37
        %v2111 = vand.u32 %v2053, 2147483648
        %v2112 = vor.u32 1.1754944e-38, %v2111
        %v2113 = vsel %vm2110, %v2112, %v2108
        %v2114 = vmul.f32 %v2010, %v2113
        %v2115 = vld [vmem:[%s21] sm:$0xf]
        %v2116 = vpack.c.bf16 %v2084, %v2069
        %v2117 = vpack.c.bf16 %v2114, %v2099
        %v2118 = vpack.c.bf16 %v2115, %v2115
        %v2120 = vsel %vm1985, %v2116, 0
        %v2123 = vsel %vm1985, %v2117, 0
        %vm2125 = vcmask 1041408
        %v2127 = vsel %vm2125, %v2118, 0
        %2129 = vmatpush.bf16.msra.mxu0 0
        %2130 = vmatpush.bf16.msra.mxu0 0
        %2131 = vmatpush.bf16.msra.mxu0 0
        %2132 = vmatpush.bf16.msra.mxu0 0
        %2133 = vmatpush.bf16.msra.mxu0 0
        %2134 = vmatpush.bf16.msra.mxu0 0
        %2135 = vmatpush.bf16.msra.mxu0 0
        %2136 = vmatpush.bf16.msra.mxu0 %v2127
        %2137 = vmatmul.bf16.gmra.mxu0 %v2120
        %v2138 = vpop.f32.mrf.mxu0
        %v2139 = vadd.f32 0.0, %v2138
        %v2140 = vpop.f32.mrf.mxu0
        %v2141 = vadd.f32 0.0, %v2140
        %2142 = vmatmul.bf16.gmra.mxu0 %v2123
        %v2143 = vpop.f32.mrf.mxu0
        %v2144 = vadd.f32 0.0, %v2143
        %v2145 = vpop.f32.mrf.mxu0
        %v2146 = vadd.f32 0.0, %v2145
        %2147 = vdwg.mxu0
        %2149 = vrot.lane.b32.xlu0 %v1904, 64
        %v2150 = vpop.permute.xlu0 %2149
        %2152 = vmatpush.bf16.msra.mxu0 0
        %2153 = vmatpush.bf16.msra.mxu0 0
        %2154 = vmatpush.bf16.msra.mxu0 0
        %2155 = vmatpush.bf16.msra.mxu0 0
        %2156 = vmatpush.bf16.msra.mxu0 0
        %2157 = vmatpush.bf16.msra.mxu0 0
        %2158 = vmatpush.bf16.msra.mxu0 0
        %2159 = vmatpush.bf16.msra.mxu0 %v2150
        %2160 = vmatmul.bf16.gmra.mxu0 %v1920
        %v2161 = vpop.f32.mrf.mxu0
        %v2162 = vadd.f32 %v1863, %v2161
        %v2163 = vpop.f32.mrf.mxu0
        %v2164 = vadd.f32 %v1864, %v2163
        %2165 = vmatmul.bf16.gmra.mxu0 %v1923
        %v2166 = vpop.f32.mrf.mxu0
        %v2167 = vadd.f32 %v1865, %v2166
        %v2168 = vpop.f32.mrf.mxu0
        %v2169 = vadd.f32 %v1866, %v2168
        %2170 = vdwg.mxu0
        %v2171 = vmul.f32 %v2139, %v2162
        %v2172 = vmul.f32 %v2141, %v2164
        %v2173 = vmul.f32 %v2144, %v2167
        %v2174 = vmul.f32 %v2146, %v2169
        %2179 = vrot.lane.b32.xlu0 %v1863, 96
        %v2180 = vpop.permute.xlu0 %2179
        %2181 = vrot.lane.b32.xlu0 %v1864, 96
        %v2182 = vpop.permute.xlu0 %2181
        %2183 = vrot.lane.b32.xlu0 %v1865, 96
        %v2184 = vpop.permute.xlu0 %2183
        %2185 = vrot.lane.b32.xlu0 %v1866, 96
        %v2186 = vpop.permute.xlu0 %2185
        %v2191 = vmul.f32 %v2171, %v2180
        %v2192 = vmul.f32 %v2172, %v2182
        %v2193 = vmul.f32 %v2173, %v2184
        %v2194 = vmul.f32 %v2174, %v2186
        %v2195 = vpack.c.bf16 %v2192, %v2191
        %v2196 = vpack.c.bf16 %v2194, %v2193
        %2199 = vrot.lane.b32.xlu0 %v1764, 32
        %v2200 = vpop.permute.xlu0 %2199
        %2201 = vrot.lane.b32.xlu0 %v1766, 32
        %v2202 = vpop.permute.xlu0 %2201
        %2205 = vmatpush.bf16.msra.mxu0 0
        %2206 = vmatpush.bf16.msra.mxu0 0
        %2207 = vmatpush.bf16.msra.mxu0 0
        %2208 = vmatpush.bf16.msra.mxu0 0
        %2209 = vmatpush.bf16.msra.mxu0 0
        %2210 = vmatpush.bf16.msra.mxu0 0
        %2211 = vmatpush.bf16.msra.mxu0 %v2196
        %2212 = vmatpush.bf16.msra.mxu0 %v2195
        %2213 = vmatmul.bf16.gmra.mxu0 %v2019
        %v2214 = vpop.f32.mrf.mxu0
        %v2215 = vadd.f32 %v2200, %v2214
        %v2216 = vpop.f32.mrf.mxu0
        %v2217 = vadd.f32 %v2202, %v2216
        %2218 = vdwg.mxu0
        %v2219 = vsel %vm1726, %v2215, 0.0
        %2220 = vadd.xlane.f32.xlu0 %v2219
        %v2221 = vpop.xlane.xlu0 %2220
        %v2222 = vsel %vm1726, %v2217, 0.0
        %2223 = vadd.xlane.f32.xlu0 %v2222
        %v2224 = vpop.xlane.xlu0 %2223
        %v2225 = vrcp.pop 32.0
        %v2226 = vmul.f32 32.0, %v2225
        %v2227 = vsub.f32 1.0, %v2226
        %v2228 = vmul.f32 %v2225, %v2227
        %v2229 = vadd.f32 %v2225, %v2228
        %vm2230 = vweird.f32 %v2225
        %v2231 = vsel %vm2230, %v2225, %v2229
        %v2232 = vmul.f32 %v2221, %v2231
        %v2233 = vmul.f32 %v2224, %v2231
        %v2234 = vsub.f32 %v2215, %v2232
        %v2235 = vsub.f32 %v2217, %v2233
        %v2236 = vmul.f32 %v2234, %v2234
        %v2237 = vmul.f32 %v2235, %v2235
        %v2238 = vsel %vm1726, %v2236, 0.0
        %2239 = vadd.xlane.f32.xlu0 %v2238
        %v2240 = vpop.xlane.xlu0 %2239
        %v2241 = vsel %vm1726, %v2237, 0.0
        %2242 = vadd.xlane.f32.xlu0 %v2241
        %v2243 = vpop.xlane.xlu0 %2242
        %v2244 = vmul.f32 %v2240, %v2231
        %v2245 = vmul.f32 %v2243, %v2231
        %v2246 = vadd.f32 %v2244, 1e-08
        %v2247 = vadd.f32 %v2245, 1e-08
        %v2248 = vrsqrt.pop %v2246
        %v2249 = vmul.f32 %v2248, %v2246
        %v2250 = vmul.f32 %v2249, %v2248
        %v2251 = vmul.f32 0.5, %v2250
        %v2252 = vsub.f32 1.5, %v2251
        %v2253 = vmul.f32 %v2248, %v2252
        %vm2254 = vweird.f32 %v2246
        %vm2255 = vweird.f32 %v2248
        %vm2256 = vmor %vm2254, %vm2255
        %v2257 = vsel %vm2256, %v2248, %v2253
        %v2258 = vrsqrt.pop %v2247
        %v2259 = vmul.f32 %v2258, %v2247
        %v2260 = vmul.f32 %v2259, %v2258
        %v2261 = vmul.f32 0.5, %v2260
        %v2262 = vsub.f32 1.5, %v2261
        %v2263 = vmul.f32 %v2258, %v2262
        %vm2264 = vweird.f32 %v2247
        %vm2265 = vweird.f32 %v2258
        %vm2266 = vmor %vm2264, %vm2265
        %v2267 = vsel %vm2266, %v2258, %v2263
        %v2268 = vmul.f32 %v2234, %v2257
        %v2269 = vmul.f32 %v2235, %v2267
        %v2270 = vld [vmem:[%s1233] sm:$0xff]
        %v2271 = vld [vmem:[%s1233 + $0x8] sm:$0xff]
        %v2272 = vld [vmem:[%s1233 + $0x10] sm:$0xff]
        %v2273 = vld [vmem:[%s1233 + $0x18] sm:$0xff]
        %v2274 = vld [vmem:[%s1233 + $0x20] sm:$0xff]
        %v2275 = vld [vmem:[%s1233 + $0x28] sm:$0xff]
        %v2276 = vld [vmem:[%s1233 + $0x30] sm:$0xff]
        %v2277 = vld [vmem:[%s1233 + $0x38] sm:$0xff]
        %v2278 = vld [vmem:[%s1233 + $0x40] sm:$0xff]
        %v2279 = vld [vmem:[%s1233 + $0x48] sm:$0xff]
        %v2280 = vld [vmem:[%s1233 + $0x50] sm:$0xff]
        %v2281 = vld [vmem:[%s1233 + $0x58] sm:$0xff]
        %v2282 = vld [vmem:[%s1243] sm:$0x1]
        %v2283 = vld [vmem:[%s1243 + $0x1] sm:$0x1]
        %v2284 = vld [vmem:[%s1243 + $0x2] sm:$0x1]
        %v2285 = vld [vmem:[%s1253] sm:$0xff]
        %v2286 = vld [vmem:[%s1253 + $0x8] sm:$0xff]
        %v2287 = vld [vmem:[%s1253 + $0x10] sm:$0xff]
        %v2288 = vld [vmem:[%s1253 + $0x18] sm:$0xff]
        %v2289 = vld [vmem:[%s1253 + $0x20] sm:$0xff]
        %v2290 = vld [vmem:[%s1253 + $0x28] sm:$0xff]
        %v2291 = vld [vmem:[%s1253 + $0x30] sm:$0xff]
        %v2292 = vld [vmem:[%s1253 + $0x38] sm:$0xff]
        %v2293 = vld [vmem:[%s1253 + $0x40] sm:$0xff]
        %v2294 = vld [vmem:[%s1253 + $0x48] sm:$0xff]
        %v2295 = vld [vmem:[%s1253 + $0x50] sm:$0xff]
        %v2296 = vld [vmem:[%s1253 + $0x58] sm:$0xff]
        %v2297 = vld [vmem:[%s1263] sm:$0x1]
        %v2298 = vld [vmem:[%s1263 + $0x1] sm:$0x1]
        %v2299 = vld [vmem:[%s1263 + $0x2] sm:$0x1]
        %v2300 = vpack.c.bf16 %v2269, %v2268
        %v2301 = vpack.c.bf16 %v2271, %v2270
        %v2302 = vpack.c.bf16 %v2273, %v2272
        %v2304 = vperm.slane %v2282, 0
        %v2307 = vsel %vm1726, %v2300, 0
        %2309 = vmatpush.bf16.msra.mxu0 0
        %2310 = vmatpush.bf16.msra.mxu0 0
        %2311 = vmatpush.bf16.msra.mxu0 0
        %2312 = vmatpush.bf16.msra.mxu0 0
        %2313 = vmatpush.bf16.msra.mxu0 0
        %2314 = vmatpush.bf16.msra.mxu0 0
        %2315 = vmatpush.bf16.msra.mxu0 %v2302
        %2316 = vmatpush.bf16.msra.mxu0 %v2301
        %2317 = vmatmul.bf16.gmra.mxu0 %v2307
        %v2318 = vpop.f32.mrf.mxu0
        %v2319 = vadd.f32 %v2304, %v2318
        %v2320 = vpop.f32.mrf.mxu0
        %v2321 = vadd.f32 %v2304, %v2320
        %2322 = vdwg.mxu0
        %v2323 = vxor.u32 %v2319, 2147483648
        %v2324 = vxor.u32 %v2321, 2147483648
        %v2325 = vmul.f32 %v2323, 1.442695
        %v2326 = vpow.pop %v2325
        %v2327 = vmul.f32 %v2324, 1.442695
        %v2328 = vpow.pop %v2327
        %v2329 = vadd.f32 %v2326, 1.0
        %v2330 = vadd.f32 %v2328, 1.0
        %v2331 = vrcp.pop %v2329
        %v2332 = vmul.f32 %v2329, %v2331
        %v2333 = vsub.f32 1.0, %v2332
        %v2334 = vmul.f32 %v2331, %v2333
        %v2335 = vadd.f32 %v2331, %v2334
        %vm2336 = vweird.f32 %v2329
        %vm2337 = vweird.f32 %v2331
        %vm2338 = vmor %vm2336, %vm2337
        %v2339 = vsel %vm2338, %v2331, %v2335
        %v2340 = vand.u32 2147483647, %v2329
        %vm2341 = vcmp.eq.f32.partialorder %v2340, 8.507059e+37
        %v2342 = vand.u32 %v2329, 2147483648
        %v2343 = vor.u32 1.1754944e-38, %v2342
        %v2344 = vsel %vm2341, %v2343, %v2339
        %v2345 = vmul.f32 1.0, %v2344
        %v2346 = vrcp.pop %v2330
        %v2347 = vmul.f32 %v2330, %v2346
        %v2348 = vsub.f32 1.0, %v2347
        %v2349 = vmul.f32 %v2346, %v2348
        %v2350 = vadd.f32 %v2346, %v2349
        %vm2351 = vweird.f32 %v2330
        %vm2352 = vweird.f32 %v2346
        %vm2353 = vmor %vm2351, %vm2352
        %v2354 = vsel %vm2353, %v2346, %v2350
        %v2355 = vand.u32 2147483647, %v2330
        %vm2356 = vcmp.eq.f32.partialorder %v2355, 8.507059e+37
        %v2357 = vand.u32 %v2330, 2147483648
        %v2358 = vor.u32 1.1754944e-38, %v2357
        %v2359 = vsel %vm2356, %v2358, %v2354
        %v2360 = vmul.f32 1.0, %v2359
        %v2361 = vmul.f32 %v2319, %v2345
        %v2362 = vmul.f32 %v2321, %v2360
        %v2363 = vpack.c.bf16 %v2362, %v2361
        %v2364 = vpack.c.bf16 %v2286, %v2285
        %v2365 = vpack.c.bf16 %v2288, %v2287
        %v2367 = vperm.slane %v2297, 0
        %v2370 = vsel %vm1726, %v2363, 0
        %2372 = vmatpush.bf16.msra.mxu0 0
        %2373 = vmatpush.bf16.msra.mxu0 0
        %2374 = vmatpush.bf16.msra.mxu0 0
        %2375 = vmatpush.bf16.msra.mxu0 0
        %2376 = vmatpush.bf16.msra.mxu0 0
        %2377 = vmatpush.bf16.msra.mxu0 0
        %2378 = vmatpush.bf16.msra.mxu0 %v2365
        %2379 = vmatpush.bf16.msra.mxu0 %v2364
        %2380 = vmatmul.bf16.gmra.mxu0 %v2370
        %v2381 = vpop.f32.mrf.mxu0
        %v2382 = vadd.f32 %v2367, %v2381
        %v2383 = vpop.f32.mrf.mxu0
        %v2384 = vadd.f32 %v2367, %v2383
        %2385 = vdwg.mxu0
        %v2386 = vxor.u32 %v2382, 2147483648
        %v2387 = vxor.u32 %v2384, 2147483648
        %v2388 = vmul.f32 %v2386, 1.442695
        %v2389 = vpow.pop %v2388
        %v2390 = vmul.f32 %v2387, 1.442695
        %v2391 = vpow.pop %v2390
        %v2392 = vadd.f32 %v2389, 1.0
        %v2393 = vadd.f32 %v2391, 1.0
        %v2394 = vrcp.pop %v2392
        %v2395 = vmul.f32 %v2392, %v2394
        %v2396 = vsub.f32 1.0, %v2395
        %v2397 = vmul.f32 %v2394, %v2396
        %v2398 = vadd.f32 %v2394, %v2397
        %vm2399 = vweird.f32 %v2392
        %vm2400 = vweird.f32 %v2394
        %vm2401 = vmor %vm2399, %vm2400
        %v2402 = vsel %vm2401, %v2394, %v2398
        %v2403 = vand.u32 2147483647, %v2392
        %vm2404 = vcmp.eq.f32.partialorder %v2403, 8.507059e+37
        %v2405 = vand.u32 %v2392, 2147483648
        %v2406 = vor.u32 1.1754944e-38, %v2405
        %v2407 = vsel %vm2404, %v2406, %v2402
        %v2408 = vmul.f32 1.0, %v2407
        %v2409 = vrcp.pop %v2393
        %v2410 = vmul.f32 %v2393, %v2409
        %v2411 = vsub.f32 1.0, %v2410
        %v2412 = vmul.f32 %v2409, %v2411
        %v2413 = vadd.f32 %v2409, %v2412
        %vm2414 = vweird.f32 %v2393
        %vm2415 = vweird.f32 %v2409
        %vm2416 = vmor %vm2414, %vm2415
        %v2417 = vsel %vm2416, %v2409, %v2413
        %v2418 = vand.u32 2147483647, %v2393
        %vm2419 = vcmp.eq.f32.partialorder %v2418, 8.507059e+37
        %v2420 = vand.u32 %v2393, 2147483648
        %v2421 = vor.u32 1.1754944e-38, %v2420
        %v2422 = vsel %vm2419, %v2421, %v2417
        %v2423 = vmul.f32 1.0, %v2422
        %v2424 = vmul.f32 %v2382, %v2408
        %v2425 = vmul.f32 %v2384, %v2423
        %v2426 = vadd.f32 %v2268, %v2424
        %v2427 = vadd.f32 %v2269, %v2425
        %v2428 = vld [vmem:[%s1214] sm:$0xff]
        %v2429 = vld [vmem:[%s1214 + $0x8] sm:$0xff]
        %v2430 = vld [vmem:[%s1214 + $0x10] sm:$0xff]
        %v2431 = vld [vmem:[%s1214 + $0x18] sm:$0xff]
        %v2432 = vpack.c.bf16 %v2427, %v2426
        %v2433 = vpack.c.bf16 %v2429, %v2428
        %v2434 = vpack.c.bf16 %v2431, %v2430
        %v2435 = vld [vmem:[%s1223] sm:$0x1]
        %v2437 = vperm.slane %v2435, 0
        %v2440 = vsel %vm1726, %v2432, 0
        %2442 = vmatpush.bf16.msra.mxu0 0
        %2443 = vmatpush.bf16.msra.mxu0 0
        %2444 = vmatpush.bf16.msra.mxu0 0
        %2445 = vmatpush.bf16.msra.mxu0 0
        %2446 = vmatpush.bf16.msra.mxu0 0
        %2447 = vmatpush.bf16.msra.mxu0 0
        %2448 = vmatpush.bf16.msra.mxu0 %v2434
        %2449 = vmatpush.bf16.msra.mxu0 %v2433
        %2450 = vmatmul.bf16.gmra.mxu0 %v2440
        %v2451 = vpop.f32.mrf.mxu0
        %v2452 = vadd.f32 %v2437, %v2451
        %v2453 = vpop.f32.mrf.mxu0
        %v2454 = vadd.f32 %v2437, %v2453
        %2455 = vdwg.mxu0
        %v2456 = vxor.u32 %v2452, 2147483648
        %v2457 = vxor.u32 %v2454, 2147483648
        %v2458 = vmul.f32 %v2456, 1.442695
        %v2459 = vpow.pop %v2458
        %v2460 = vmul.f32 %v2457, 1.442695
        %v2461 = vpow.pop %v2460
        %v2462 = vadd.f32 %v2459, 1.0
        %v2463 = vadd.f32 %v2461, 1.0
        %v2464 = vrcp.pop %v2462
        %v2465 = vmul.f32 %v2462, %v2464
        %v2466 = vsub.f32 1.0, %v2465
        %v2467 = vmul.f32 %v2464, %v2466
        %v2468 = vadd.f32 %v2464, %v2467
        %vm2469 = vweird.f32 %v2462
        %vm2470 = vweird.f32 %v2464
        %vm2471 = vmor %vm2469, %vm2470
        %v2472 = vsel %vm2471, %v2464, %v2468
        %v2473 = vand.u32 2147483647, %v2462
        %vm2474 = vcmp.eq.f32.partialorder %v2473, 8.507059e+37
        %v2475 = vand.u32 %v2462, 2147483648
        %v2476 = vor.u32 1.1754944e-38, %v2475
        %v2477 = vsel %vm2474, %v2476, %v2472
        %v2478 = vmul.f32 1.0, %v2477
        %v2479 = vrcp.pop %v2463
        %v2480 = vmul.f32 %v2463, %v2479
        %v2481 = vsub.f32 1.0, %v2480
        %v2482 = vmul.f32 %v2479, %v2481
        %v2483 = vadd.f32 %v2479, %v2482
        %vm2484 = vweird.f32 %v2463
        %vm2485 = vweird.f32 %v2479
        %vm2486 = vmor %vm2484, %vm2485
        %v2487 = vsel %vm2486, %v2479, %v2483
        %v2488 = vand.u32 2147483647, %v2463
        %vm2489 = vcmp.eq.f32.partialorder %v2488, 8.507059e+37
        %v2490 = vand.u32 %v2463, 2147483648
        %v2491 = vor.u32 1.1754944e-38, %v2490
        %v2492 = vsel %vm2489, %v2491, %v2487
        %v2493 = vmul.f32 1.0, %v2492
        %v2494 = vmul.f32 %v2452, %v2478
        %v2495 = vmul.f32 %v2454, %v2493
        %v2496 = vadd.f32 %v2494, %v1655
        %v2497 = vadd.f32 %v2495, %v1656
        %v2498 = vpack.c.bf16 %v2497, %v2496
        %v2499 = vpack.c.bf16 %v2275, %v2274
        %v2500 = vpack.c.bf16 %v2277, %v2276
        %v2502 = vperm.slane %v2283, 0
        %v2505 = vsel %vm1726, %v2498, 0
        %2507 = vmatpush.bf16.msra.mxu0 0
        %2508 = vmatpush.bf16.msra.mxu0 0
        %2509 = vmatpush.bf16.msra.mxu0 0
        %2510 = vmatpush.bf16.msra.mxu0 0
        %2511 = vmatpush.bf16.msra.mxu0 0
        %2512 = vmatpush.bf16.msra.mxu0 0
        %2513 = vmatpush.bf16.msra.mxu0 %v2500
        %2514 = vmatpush.bf16.msra.mxu0 %v2499
        %2515 = vmatmul.bf16.gmra.mxu0 %v2505
        %v2516 = vpop.f32.mrf.mxu0
        %v2517 = vadd.f32 %v2502, %v2516
        %v2518 = vpop.f32.mrf.mxu0
        %v2519 = vadd.f32 %v2502, %v2518
        %2520 = vdwg.mxu0
        %v2521 = vxor.u32 %v2517, 2147483648
        %v2522 = vxor.u32 %v2519, 2147483648
        %v2523 = vmul.f32 %v2521, 1.442695
        %v2524 = vpow.pop %v2523
        %v2525 = vmul.f32 %v2522, 1.442695
        %v2526 = vpow.pop %v2525
        %v2527 = vadd.f32 %v2524, 1.0
        %v2528 = vadd.f32 %v2526, 1.0
        %v2529 = vrcp.pop %v2527
        %v2530 = vmul.f32 %v2527, %v2529
        %v2531 = vsub.f32 1.0, %v2530
        %v2532 = vmul.f32 %v2529, %v2531
        %v2533 = vadd.f32 %v2529, %v2532
        %vm2534 = vweird.f32 %v2527
        %vm2535 = vweird.f32 %v2529
        %vm2536 = vmor %vm2534, %vm2535
        %v2537 = vsel %vm2536, %v2529, %v2533
        %v2538 = vand.u32 2147483647, %v2527
        %vm2539 = vcmp.eq.f32.partialorder %v2538, 8.507059e+37
        %v2540 = vand.u32 %v2527, 2147483648
        %v2541 = vor.u32 1.1754944e-38, %v2540
        %v2542 = vsel %vm2539, %v2541, %v2537
        %v2543 = vmul.f32 1.0, %v2542
        %v2544 = vrcp.pop %v2528
        %v2545 = vmul.f32 %v2528, %v2544
        %v2546 = vsub.f32 1.0, %v2545
        %v2547 = vmul.f32 %v2544, %v2546
        %v2548 = vadd.f32 %v2544, %v2547
        %vm2549 = vweird.f32 %v2528
        %vm2550 = vweird.f32 %v2544
        %vm2551 = vmor %vm2549, %vm2550
        %v2552 = vsel %vm2551, %v2544, %v2548
        %v2553 = vand.u32 2147483647, %v2528
        %vm2554 = vcmp.eq.f32.partialorder %v2553, 8.507059e+37
        %v2555 = vand.u32 %v2528, 2147483648
        %v2556 = vor.u32 1.1754944e-38, %v2555
        %v2557 = vsel %vm2554, %v2556, %v2552
        %v2558 = vmul.f32 1.0, %v2557
        %v2559 = vmul.f32 %v2517, %v2543
        %v2560 = vmul.f32 %v2519, %v2558
        %v2561 = vpack.c.bf16 %v2560, %v2559
        %v2562 = vpack.c.bf16 %v2290, %v2289
        %v2563 = vpack.c.bf16 %v2292, %v2291
        %v2565 = vperm.slane %v2298, 0
        %v2568 = vsel %vm1726, %v2561, 0
        %2570 = vmatpush.bf16.msra.mxu0 0
        %2571 = vmatpush.bf16.msra.mxu0 0
        %2572 = vmatpush.bf16.msra.mxu0 0
        %2573 = vmatpush.bf16.msra.mxu0 0
        %2574 = vmatpush.bf16.msra.mxu0 0
        %2575 = vmatpush.bf16.msra.mxu0 0
        %2576 = vmatpush.bf16.msra.mxu0 %v2563
        %2577 = vmatpush.bf16.msra.mxu0 %v2562
        %2578 = vmatmul.bf16.gmra.mxu0 %v2568
        %v2579 = vpop.f32.mrf.mxu0
        %v2580 = vadd.f32 %v2565, %v2579
        %v2581 = vpop.f32.mrf.mxu0
        %v2582 = vadd.f32 %v2565, %v2581
        %2583 = vdwg.mxu0
        %v2584 = vxor.u32 %v2580, 2147483648
        %v2585 = vxor.u32 %v2582, 2147483648
        %v2586 = vmul.f32 %v2584, 1.442695
        %v2587 = vpow.pop %v2586
        %v2588 = vmul.f32 %v2585, 1.442695
        %v2589 = vpow.pop %v2588
        %v2590 = vadd.f32 %v2587, 1.0
        %v2591 = vadd.f32 %v2589, 1.0
        %v2592 = vrcp.pop %v2590
        %v2593 = vmul.f32 %v2590, %v2592
        %v2594 = vsub.f32 1.0, %v2593
        %v2595 = vmul.f32 %v2592, %v2594
        %v2596 = vadd.f32 %v2592, %v2595
        %vm2597 = vweird.f32 %v2590
        %vm2598 = vweird.f32 %v2592
        %vm2599 = vmor %vm2597, %vm2598
        %v2600 = vsel %vm2599, %v2592, %v2596
        %v2601 = vand.u32 2147483647, %v2590
        %vm2602 = vcmp.eq.f32.partialorder %v2601, 8.507059e+37
        %v2603 = vand.u32 %v2590, 2147483648
        %v2604 = vor.u32 1.1754944e-38, %v2603
        %v2605 = vsel %vm2602, %v2604, %v2600
        %v2606 = vmul.f32 1.0, %v2605
        %v2607 = vrcp.pop %v2591
        %v2608 = vmul.f32 %v2591, %v2607
        %v2609 = vsub.f32 1.0, %v2608
        %v2610 = vmul.f32 %v2607, %v2609
        %v2611 = vadd.f32 %v2607, %v2610
        %vm2612 = vweird.f32 %v2591
        %vm2613 = vweird.f32 %v2607
        %vm2614 = vmor %vm2612, %vm2613
        %v2615 = vsel %vm2614, %v2607, %v2611
        %v2616 = vand.u32 2147483647, %v2591
        %vm2617 = vcmp.eq.f32.partialorder %v2616, 8.507059e+37
        %v2618 = vand.u32 %v2591, 2147483648
        %v2619 = vor.u32 1.1754944e-38, %v2618
        %v2620 = vsel %vm2617, %v2619, %v2615
        %v2621 = vmul.f32 1.0, %v2620
        %v2622 = vmul.f32 %v2580, %v2606
        %v2623 = vmul.f32 %v2582, %v2621
        %v2624 = vadd.f32 %v2496, %v2622
        %v2625 = vadd.f32 %v2497, %v2623
        %v2626 = vpack.c.bf16 %v2625, %v2624
        %v2627 = vpack.c.bf16 %v2279, %v2278
        %v2628 = vpack.c.bf16 %v2281, %v2280
        %v2630 = vperm.slane %v2284, 0
        %v2633 = vsel %vm1726, %v2626, 0
        %2635 = vmatpush.bf16.msra.mxu0 0
        %2636 = vmatpush.bf16.msra.mxu0 0
        %2637 = vmatpush.bf16.msra.mxu0 0
        %2638 = vmatpush.bf16.msra.mxu0 0
        %2639 = vmatpush.bf16.msra.mxu0 0
        %2640 = vmatpush.bf16.msra.mxu0 0
        %2641 = vmatpush.bf16.msra.mxu0 %v2628
        %2642 = vmatpush.bf16.msra.mxu0 %v2627
        %2643 = vmatmul.bf16.gmra.mxu0 %v2633
        %v2644 = vpop.f32.mrf.mxu0
        %v2645 = vadd.f32 %v2630, %v2644
        %v2646 = vpop.f32.mrf.mxu0
        %v2647 = vadd.f32 %v2630, %v2646
        %2648 = vdwg.mxu0
        %v2649 = vxor.u32 %v2645, 2147483648
        %v2650 = vxor.u32 %v2647, 2147483648
        %v2651 = vmul.f32 %v2649, 1.442695
        %v2652 = vpow.pop %v2651
        %v2653 = vmul.f32 %v2650, 1.442695
        %v2654 = vpow.pop %v2653
        %v2655 = vadd.f32 %v2652, 1.0
        %v2656 = vadd.f32 %v2654, 1.0
        %v2657 = vrcp.pop %v2655
        %v2658 = vmul.f32 %v2655, %v2657
        %v2659 = vsub.f32 1.0, %v2658
        %v2660 = vmul.f32 %v2657, %v2659
        %v2661 = vadd.f32 %v2657, %v2660
        %vm2662 = vweird.f32 %v2655
        %vm2663 = vweird.f32 %v2657
        %vm2664 = vmor %vm2662, %vm2663
        %v2665 = vsel %vm2664, %v2657, %v2661
        %v2666 = vand.u32 2147483647, %v2655
        %vm2667 = vcmp.eq.f32.partialorder %v2666, 8.507059e+37
        %v2668 = vand.u32 %v2655, 2147483648
        %v2669 = vor.u32 1.1754944e-38, %v2668
        %v2670 = vsel %vm2667, %v2669, %v2665
        %v2671 = vmul.f32 1.0, %v2670
        %v2672 = vrcp.pop %v2656
        %v2673 = vmul.f32 %v2656, %v2672
        %v2674 = vsub.f32 1.0, %v2673
        %v2675 = vmul.f32 %v2672, %v2674
        %v2676 = vadd.f32 %v2672, %v2675
        %vm2677 = vweird.f32 %v2656
        %vm2678 = vweird.f32 %v2672
        %vm2679 = vmor %vm2677, %vm2678
        %v2680 = vsel %vm2679, %v2672, %v2676
        %v2681 = vand.u32 2147483647, %v2656
        %vm2682 = vcmp.eq.f32.partialorder %v2681, 8.507059e+37
        %v2683 = vand.u32 %v2656, 2147483648
        %v2684 = vor.u32 1.1754944e-38, %v2683
        %v2685 = vsel %vm2682, %v2684, %v2680
        %v2686 = vmul.f32 1.0, %v2685
        %v2687 = vmul.f32 %v2645, %v2671
        %v2688 = vmul.f32 %v2647, %v2686
        %v2689 = vpack.c.bf16 %v2688, %v2687
        %v2690 = vpack.c.bf16 %v2294, %v2293
        %v2691 = vpack.c.bf16 %v2296, %v2295
        %v2693 = vperm.slane %v2299, 0
        %v2696 = vsel %vm1726, %v2689, 0
        %2698 = vmatpush.bf16.msra.mxu0 0
        %2699 = vmatpush.bf16.msra.mxu0 0
        %2700 = vmatpush.bf16.msra.mxu0 0
        %2701 = vmatpush.bf16.msra.mxu0 0
        %2702 = vmatpush.bf16.msra.mxu0 0
        %2703 = vmatpush.bf16.msra.mxu0 0
        %2704 = vmatpush.bf16.msra.mxu0 %v2691
        %2705 = vmatpush.bf16.msra.mxu0 %v2690
        %2706 = vmatmul.bf16.gmra.mxu0 %v2696
        %v2707 = vpop.f32.mrf.mxu0
        %v2708 = vadd.f32 %v2693, %v2707
        %v2709 = vpop.f32.mrf.mxu0
        %v2710 = vadd.f32 %v2693, %v2709
        %2711 = vdwg.mxu0
        %v2712 = vxor.u32 %v2708, 2147483648
        %v2713 = vxor.u32 %v2710, 2147483648
        %v2714 = vmul.f32 %v2712, 1.442695
        %v2715 = vpow.pop %v2714
        %v2716 = vmul.f32 %v2713, 1.442695
        %v2717 = vpow.pop %v2716
        %v2718 = vadd.f32 %v2715, 1.0
        %v2719 = vadd.f32 %v2717, 1.0
        %v2720 = vrcp.pop %v2718
        %v2721 = vmul.f32 %v2718, %v2720
        %v2722 = vsub.f32 1.0, %v2721
        %v2723 = vmul.f32 %v2720, %v2722
        %v2724 = vadd.f32 %v2720, %v2723
        %vm2725 = vweird.f32 %v2718
        %vm2726 = vweird.f32 %v2720
        %vm2727 = vmor %vm2725, %vm2726
        %v2728 = vsel %vm2727, %v2720, %v2724
        %v2729 = vand.u32 2147483647, %v2718
        %vm2730 = vcmp.eq.f32.partialorder %v2729, 8.507059e+37
        %v2731 = vand.u32 %v2718, 2147483648
        %v2732 = vor.u32 1.1754944e-38, %v2731
        %v2733 = vsel %vm2730, %v2732, %v2728
        %v2734 = vmul.f32 1.0, %v2733
        %v2735 = vrcp.pop %v2719
        %v2736 = vmul.f32 %v2719, %v2735
        %v2737 = vsub.f32 1.0, %v2736
        %v2738 = vmul.f32 %v2735, %v2737
        %v2739 = vadd.f32 %v2735, %v2738
        %vm2740 = vweird.f32 %v2719
        %vm2741 = vweird.f32 %v2735
        %vm2742 = vmor %vm2740, %vm2741
        %v2743 = vsel %vm2742, %v2735, %v2739
        %v2744 = vand.u32 2147483647, %v2719
        %vm2745 = vcmp.eq.f32.partialorder %v2744, 8.507059e+37
        %v2746 = vand.u32 %v2719, 2147483648
        %v2747 = vor.u32 1.1754944e-38, %v2746
        %v2748 = vsel %vm2745, %v2747, %v2743
        %v2749 = vmul.f32 1.0, %v2748
        %v2750 = vmul.f32 %v2708, %v2734
        %v2751 = vmul.f32 %v2710, %v2749
        %v2752 = vadd.f32 %v2624, %v2750
        %v2753 = vadd.f32 %v2625, %v2751
        %2754 = vst.msk [vmem:[#allocation2] sm:$0xff] %vm1726, %v2752
        %2755 = vst.msk [vmem:[#allocation2 + $0x8] sm:$0xff] %vm1726, %v2753
        %p2756 = scmp.eq.s32.totalorder %s74, 1
        // Predicated region
        $region209: #{sbf_transformer_forward.1} parent=135 // pred_check
          %p2757 = pneg %p2756
        $region210: #{sbf_transformer_forward.1} parent=135 // pred_check_branch
          %2759 = sbr.rel (%p2757) target = $region212
        $region211: #{sbf_transformer_forward.1} parent=135 // pred_region
          %v2760 = vld [vmem:[%s7] sm:$0xff]
          %v2761 = vld [vmem:[%s7 + $0x8] sm:$0xff]
          %v2762 = vld [vmem:[%s55] sm:$0xff]
          %v2763 = vpack.c.bf16 %v2761, %v2760
          %v2764 = vpack.c.bf16 %v2762, %v2762
          %v2766 = vsel %vm1687, %v2763, 0
          %v2769 = vsel %vm1691, %v2764, 0
          %2771 = vmatpush.bf16.msra.mxu0 0
          %2772 = vmatpush.bf16.msra.mxu0 0
          %2773 = vmatpush.bf16.msra.mxu0 0
          %2774 = vmatpush.bf16.msra.mxu0 0
          %2775 = vmatpush.bf16.msra.mxu0 0
          %2776 = vmatpush.bf16.msra.mxu0 0
          %2777 = vmatpush.bf16.msra.mxu0 0
          %2778 = vmatpush.bf16.msra.mxu0 %v2769
          %2779 = vmatmul.bf16.gmra.mxu0 %v2766
          %v2780 = vpop.f32.mrf.mxu0
          %v2781 = vadd.f32 0.0, %v2780
          %v2782 = vpop.f32.mrf.mxu0
          %v2783 = vadd.f32 0.0, %v2782
          %2784 = vdwg.mxu0
          %v2785 = vmul.f32 %v2752, %v2781
          %v2786 = vmul.f32 %v2753, %v2783
          %v2787 = vld [vmem:[%s57] sm:$0x1]
          %v2789 = vperm.slane %v2787, 0
          %v2791 = vmul.f32 %v2785, %v2789
          %v2792 = vmul.f32 %v2786, %v2789
          %v2793 = vsel %vm1726, %v2791, 0.0
          %2794 = vadd.xlane.f32.xlu0 %v2793
          %v2795 = vpop.xlane.xlu0 %2794
          %v2796 = vsel %vm1726, %v2792, 0.0
          %2797 = vadd.xlane.f32.xlu0 %v2796
          %v2798 = vpop.xlane.xlu0 %2797
          %v2799 = vld [vmem:[%s9] sm:$0xff]
          %v2800 = vld [vmem:[%s9 + $0x8] sm:$0xff]
          %v2801 = vmul.f32 %v2795, %v2799
          %v2802 = vmul.f32 %v2798, %v2800
          %v2803 = vlaneseq
          %v2804 = vshrl.u32 %v2803, 7
          %v2805 = vld [vmem:[%s17] sm:$0x1]
          %v2806 = vperm.slane %v2805, 0
          %vm2807 = vcmp.eq.s32.totalorder %v2806, %v2804
          %v2808 = vsel %vm2807, 1, 0
          %v2809 = vcvt.s32.f32 %v2808
          %v2811 = vsel %vm1878, %v2809, 0
          %2813 = vmatpush.msra.mxu0 0.0
          %2814 = vmatpush.msra.mxu0 0.0
          %2815 = vmatpush.msra.mxu0 0.0
          %2816 = vmatpush.msra.mxu0 0.0
          %2817 = vmatpush.msra.mxu0 0.0
          %2818 = vmatpush.msra.mxu0 0.0
          %2819 = vmatpush.msra.mxu0 0.0
          %2820 = vmatpush.msra.mxu0 0.0
          %2821 = vmatpush.msra.mxu0 0.0
          %2822 = vmatpush.msra.mxu0 0.0
          %2823 = vmatpush.msra.mxu0 0.0
          %2824 = vmatpush.msra.mxu0 0.0
          %2825 = vmatpush.msra.mxu0 0.0
          %2826 = vmatpush.msra.mxu0 0.0
          %2827 = vmatpush.msra.mxu0 %v2802
          %2828 = vmatpush.msra.mxu0 %v2801
          %2829 = vmatmul.f32.gmra.mxu0 %v2811
          %v2830 = vpop.f32.mrf.mxu0
          %v2831 = vadd.f32 0.0, %v2830
          %2832 = vdwg.mxu0
          %vm2833 = vcmask 21504
          %2834 = vst.msk [vmem:[%s59] sm:$0x3f] %vm2833, %v2831
        $region212: #{sbf_transformer_forward.1} parent=135 // pred_fallthru
          _
        // Predicated region
        $region213: #{sbf_transformer_forward.1} parent=135 // pred_check
          %p2835 = pneg %p756
        $region214: #{sbf_transformer_forward.1} parent=135 // pred_check_branch
          %2837 = sbr.rel (%p2835) target = $region216
        $region215: #{sbf_transformer_forward.1} parent=135 // pred_region
          _
        $region216: #{sbf_transformer_forward.1} parent=135 // pred_fallthru
          _
        // Predicated region
        $region217: #{sbf_transformer_forward.1} parent=135 // pred_check
          %p2838 = pneg %p756
        $region218: #{sbf_transformer_forward.1} parent=135 // pred_check_branch
          %2840 = sbr.rel (%p2838) target = $region220
        $region219: #{sbf_transformer_forward.1} parent=135 // pred_region
          _
        $region220: #{sbf_transformer_forward.1} parent=135 // pred_fallthru
          _
      $region136: #{sbf_transformer_forward.1} parent=5 // pred_fallthru
        _
      %p2841 = scmp.le.s32.totalorder 2, %s69
      // Predicated region
      $region221: #{sbf_transformer_forward.1} parent=5 // pred_check
        %p2842 = pneg %p2841
      $region222: #{sbf_transformer_forward.1} parent=5 // pred_check_branch
        %2844 = sbr.rel (%p2842) target = $region224
      $region223: #{sbf_transformer_forward.1} parent=5 // pred_region
        %s2845 = ssub.s32 %s69, 2
      $region224: #{sbf_transformer_forward.1} parent=5 // pred_fallthru
        _
    $region6: #{sbf_transformer_forward.1} parent=1 // loop_footer
      %s73 = sadd.s32 1, %s69
    $region7: #{sbf_transformer_forward.1} parent=1 // loop_footer_branch
      %68 = sbr.rel target = $region3
    $region8: #{sbf_transformer_forward.1} parent=1 // loop_exit
      _
    %2846 = vsyncpa [#allocation8], 1
    %s2847 = scalar_lea.sflag [#allocation8], 1
    %2848 = vsyncpa %s2847, 1
    %2849 = vsyncpa [#allocation10], 1
    %2850 = vsyncpa [#allocation13], 1
    %2851 = vsyncpa [#allocation16], 1

</llo_original>
